<compile_context>
chip_gen: v6e
topology: v6e:2x2x1
jax: 0.10.0
libtpu: 0.0.40
codegen_flags: <defaults>
</compile_context>

<pallas_src>
import functools

import jax
import jax.numpy as jnp
from jax.experimental import pallas as pl
from jax.experimental.pallas import tpu as pltpu


# ----------------------------- shift helpers (in-kernel) ---------------------

def _shift_down(t, axis):
    # new[i] = old[i-1] for i >= 1 ; new[0] = old[0]   (keep-first boundary)
    if axis == 0:
        return jnp.concatenate([t[:1], t[:-1]], axis=0)
    return jnp.concatenate([t[:, :1], t[:, :-1]], axis=1)


def _shift_up(t, axis):
    # new[i] = old[i+1] for i < n-1 ; new[n-1] = old[n-1]   (keep-last boundary)
    if axis == 0:
        return jnp.concatenate([t[1:], t[-1:]], axis=0)
    return jnp.concatenate([t[:, 1:], t[:, -1:]], axis=1)


def _shifted_branches(y_hwc, C):
    """y_hwc: (H, W, 3C) f32 -> (shift1(y1), shift2(y2), y3), each (H, W, C).

    Per-quarter assembly: each channel quarter is sliced first and only its own
    shifted variant is computed (no full-size throwaway copies).
    """
    q = C // 4
    y1 = y_hwc[:, :, 0:C]
    y2 = y_hwc[:, :, C:2 * C]
    x3 = y_hwc[:, :, 2 * C:3 * C]

    # spatial_shift1: quarters [down-H, up-H, down-W, up-W]
    x1s = jnp.concatenate([
        _shift_down(y1[:, :, 0 * q:1 * q], 0),
        _shift_up(y1[:, :, 1 * q:2 * q], 0),
        _shift_down(y1[:, :, 2 * q:3 * q], 1),
        _shift_up(y1[:, :, 3 * q:4 * q], 1),
    ], axis=-1)
    # spatial_shift2: quarters [down-W, up-W, down-H, up-H]
    x2s = jnp.concatenate([
        _shift_down(y2[:, :, 0 * q:1 * q], 1),
        _shift_up(y2[:, :, 1 * q:2 * q], 1),
        _shift_down(y2[:, :, 2 * q:3 * q], 0),
        _shift_up(y2[:, :, 3 * q:4 * q], 0),
    ], axis=-1)
    return x1s, x2s, x3


# ----------------------------- Pallas kernels --------------------------------

def _mlp1_shift_sum_kernel(x_ref, w_ref, b_ref, y_ref, a_ref, *, H, W):
    # x_ref: (1, HW, C)  w_ref: (C, 3C)  b_ref: (1, 3C)
    # y_ref: (1, HW, 3C) [intermediate dtype]  a_ref: (1, 1, C) f32
    C = x_ref.shape[-1]
    y2d = jnp.dot(x_ref[0], w_ref[...],
                  preferred_element_type=jnp.float32) + b_ref[...]
    y_ref[0] = y2d.astype(y_ref.dtype)

    x1s, x2s, x3 = _shifted_branches(y2d.reshape(H, W, 3 * C), C)
    s = x1s + x2s + x3                                    # sum over k
    a_ref[...] = jnp.sum(s, axis=(0, 1), keepdims=True)   # sum over spatial


def _attend_mlp2_kernel(y_ref, hat_ref, w_ref, b_ref, o_ref, *, H, W):
    # y_ref: (1, HW, 3C)  hat_ref: (1, 3, C)  w_ref: (C, C)  b_ref: (1, C)
    # o_ref: (1, HW, C) f32
    C = w_ref.shape[0]
    HW = H * W
    y = y_ref[0].astype(jnp.float32).reshape(H, W, 3 * C)
    x1s, x2s, x3 = _shifted_branches(y, C)

    h = hat_ref[0]                                        # (3, C)
    m = jnp.max(h, axis=0, keepdims=True)
    e = jnp.exp(h - m)
    bar = e / jnp.sum(e, axis=0, keepdims=True)           # softmax over k

    t = (bar[0:1, :] * x1s.reshape(HW, C)
         + bar[1:2, :] * x2s.reshape(HW, C)
         + bar[2:3, :] * x3.reshape(HW, C))               # (HW, C)

    o_ref[0] = jnp.dot(t, w_ref[...],
                       preferred_element_type=jnp.float32) + b_ref[...]


# ----------------------------- wrapper ---------------------------------------

def s2_attention_forward(x, params, *, intermediate_dtype=jnp.bfloat16):
    w1, b1 = params["w1"], params["b1"]
    wa1, wa2 = params["wa1"], params["wa2"]
    w2, b2 = params["w2"], params["b2"]

    B, H, W, C = x.shape
    assert C % 4 == 0, "channels must be divisible by 4 (spatial-shift quarters)"
    HW = H * W
    f32 = jnp.float32
    cp = pltpu.CompilerParams(dimension_semantics=("parallel",))

    x_flat = x.reshape(B, HW, C)

    # ---- fused: mlp1 + spatial shifts + (k, spatial) reduction ----
    y, a3 = pl.pallas_call(
        functools.partial(_mlp1_shift_sum_kernel, H=H, W=W),
        out_shape=(jax.ShapeDtypeStruct((B, HW, 3 * C), intermediate_dtype),
                   jax.ShapeDtypeStruct((B, 1, C), f32)),
        grid=(B,),
        in_specs=[
            pl.BlockSpec((1, HW, C), lambda b: (b, 0, 0)),
            pl.BlockSpec((C, 3 * C), lambda b: (0, 0)),
            pl.BlockSpec((1, 3 * C), lambda b: (0, 0)),
        ],
        out_specs=(pl.BlockSpec((1, HW, 3 * C), lambda b: (b, 0, 0)),
                   pl.BlockSpec((1, 1, C), lambda b: (b, 0, 0))),
        compiler_params=cp,
    )(x_flat, w1, b1.reshape(1, 3 * C))
    a = a3.reshape(B, C)

    # ---- SplitAttention gating MLP (tiny (B,C) compute, plain JAX) ----
    # TODO(synk): exact-erf GELU gating kept in plain JAX (erf lowering in Mosaic
    # not guaranteed); everything heavy stays in the Pallas kernels.
    hat = jax.nn.gelu(a @ wa1, approximate=False) @ wa2      # (B, 3C)
    hat = hat.reshape(B, 3, C)

    # ---- fused: shift recompute + softmax-over-k weighting + mlp2 ----
    out_flat = pl.pallas_call(
        functools.partial(_attend_mlp2_kernel, H=H, W=W),
        out_shape=jax.ShapeDtypeStruct((B, HW, C), f32),
        grid=(B,),
        in_specs=[
            pl.BlockSpec((1, HW, 3 * C), lambda b: (b, 0, 0)),
            pl.BlockSpec((1, 3, C), lambda b: (b, 0, 0)),
            pl.BlockSpec((C, C), lambda b: (0, 0)),
            pl.BlockSpec((1, C), lambda b: (0, 0)),
        ],
        out_specs=pl.BlockSpec((1, HW, C), lambda b: (b, 0, 0)),
        compiler_params=cp,
    )(y, hat, w2, b2.reshape(1, C))

    return out_flat.reshape(B, H, W, C)


# ----------------------------- plain-JAX reference ---------------------------

def _shift1_ref(t):
    q = t.shape[-1] // 4
    a = jnp.concatenate([t[:, :1], t[:, :-1]], axis=1)
    b = jnp.concatenate([t[:, 1:], t[:, -1:]], axis=1)
    c = jnp.concatenate([t[:, :, :1], t[:, :, :-1]], axis=2)
    d = jnp.concatenate([t[:, :, 1:], t[:, :, -1:]], axis=2)
    return jnp.concatenate(
        [a[..., :q], b[..., q:2 * q], c[..., 2 * q:3 * q], d[..., 3 * q:]], axis=-1)


def _shift2_ref(t):
    q = t.shape[-1] // 4
    a = jnp.concatenate([t[:, :1], t[:, :-1]], axis=1)
    b = jnp.concatenate([t[:, 1:], t[:, -1:]], axis=1)
    c = jnp.concatenate([t[:, :, :1], t[:, :, :-1]], axis=2)
    d = jnp.concatenate([t[:, :, 1:], t[:, :, -1:]], axis=2)
    return jnp.concatenate(
        [c[..., :q], d[..., q:2 * q], a[..., 2 * q:3 * q], b[..., 3 * q:]], axis=-1)


def s2_attention_reference(x, params):
    B, H, W, C = x.shape
    y = x @ params["w1"] + params["b1"]
    x1 = _shift1_ref(y[..., :C])
    x2 = _shift2_ref(y[..., C:2 * C])
    x3 = y[..., 2 * C:]
    x_all = jnp.stack([x1, x2, x3], axis=1).reshape(B, 3, H * W, C)
    a = jnp.sum(x_all, axis=(1, 2))
    hat = jax.nn.gelu(a @ params["wa1"], approximate=False) @ params["wa2"]
    bar = jax.nn.softmax(hat.reshape(B, 3, C), axis=1)
    out = jnp.sum(bar[:, :, None, :] * x_all, axis=1).reshape(B, H, W, C)
    return out @ params["w2"] + params["b2"]


# ----------------------------- main -------------------------------------------

if __name__ == "__main__":
    B, H, W, C = 2, 16, 16, 32   # channels must be divisible by 4 (shift quarters)

    key = jax.random.PRNGKey(0)
    ks = jax.random.split(key, 7)
    x = jax.random.normal(ks[0], (B, H, W, C), jnp.float32)

    # Deterministic synthetic parameters (shapes follow the nn.Module __init__):
    #   mlp1: Linear(C, 3C)  [w1, b1]
    #   split_attention.mlp1: Linear(C, C, bias=False)  [wa1]
    #   split_attention.mlp2: Linear(C, 3C, bias=False) [wa2]
    #   mlp2: Linear(C, C)  [w2, b2]
    params = dict(
        w1=jax.random.normal(ks[1], (C, 3 * C), jnp.float32) * 0.05,
        b1=jax.random.normal(ks[2], (3 * C,), jnp.float32) * 0.05,
        wa1=jax.random.normal(ks[3], (C, C), jnp.float32) * 0.05,
        wa2=jax.random.normal(ks[4], (C, 3 * C), jnp.float32) * 0.05,
        w2=jax.random.normal(ks[5], (C, C), jnp.float32) * 0.05,
        b2=jax.random.normal(ks[6], (C,), jnp.float32) * 0.05,
    )

    out = jax.jit(s2_attention_forward)(x, params)
    out = jax.block_until_ready(out)

    ref = s2_attention_reference(x, params)
    assert out.shape == (B, H, W, C)
    if not bool(jnp.allclose(out, ref, rtol=2e-2, atol=2e-3)):
        max_err = float(jnp.max(jnp.abs(out - ref)))
        raise AssertionError(f"Pallas result mismatch vs reference, max abs err {max_err}")

    print("KERNEL_OK")
</pallas_src>

<mosaic_0001>
module attributes {stable_mosaic.version = 11 : i64} {
  func.func @_mlp1_shift_sum_kernel(%arg0: i32, %arg1: memref<1x256x32xf32, #tpu.memory_space<vmem>>, %arg2: memref<32x96xf32, #tpu.memory_space<vmem>>, %arg3: memref<1x96xf32, #tpu.memory_space<vmem>>, %arg4: memref<1x256x96xbf16, #tpu.memory_space<vmem>>, %arg5: memref<1x1x32xf32, #tpu.memory_space<vmem>>) attributes {dimension_semantics = [#tpu.dimension_semantics<parallel>], iteration_bounds = array<i64: 2>, scalar_prefetch = 0 : i64, scratch_operands = 0 : i64, tpu.core_type = #tpu.core_type<tc>, window_params = [{transform_indices = @transform_0, window_bounds = array<i64: 1, 256, 32>}, {pipeline_mode = #tpu.pipeline_mode<synchronous>, transform_indices = @transform_1, window_bounds = array<i64: 32, 96>}, {pipeline_mode = #tpu.pipeline_mode<synchronous>, transform_indices = @transform_2, window_bounds = array<i64: 1, 96>}, {transform_indices = @transform_3, window_bounds = array<i64: 1, 256, 96>}, {transform_indices = @transform_4, window_bounds = array<i64: 1, 1, 32>}]} {
    %c0 = arith.constant 0 : index
    %c0_0 = arith.constant 0 : index
    %c0_1 = arith.constant 0 : index
    %0 = vector.load %arg1[%c0, %c0_0, %c0_1] : memref<1x256x32xf32, #tpu.memory_space<vmem>>, vector<1x256x32xf32>
    %1 = vector.shape_cast %0 : vector<1x256x32xf32> to vector<256x32xf32>
    %c0_2 = arith.constant 0 : index
    %c0_3 = arith.constant 0 : index
    %2 = vector.load %arg2[%c0_2, %c0_3] : memref<32x96xf32, #tpu.memory_space<vmem>>, vector<32x96xf32>
    %cst = arith.constant dense<0.000000e+00> : vector<256x96xf32>
    %3 = tpu.matmul %1, %2, %cst {dimension_numbers = #tpu.dot_dimension_numbers<[1], [0], [0], [1], [0, 0, 1, 1], [], []>} : vector<256x32xf32>, vector<32x96xf32>, vector<256x96xf32> -> vector<256x96xf32>
    %c0_4 = arith.constant 0 : index
    %c0_5 = arith.constant 0 : index
    %4 = vector.load %arg3[%c0_4, %c0_5] : memref<1x96xf32, #tpu.memory_space<vmem>>, vector<1x96xf32>
    %5 = vector.broadcast %4 : vector<1x96xf32> to vector<256x96xf32>
    %6 = arith.addf %3, %5 : vector<256x96xf32>
    %7 = arith.truncf %6 : vector<256x96xf32> to vector<256x96xbf16>
    %c0_6 = arith.constant 0 : index
    %c0_7 = arith.constant 0 : index
    %c0_8 = arith.constant 0 : index
    %8 = vector.load %arg4[%c0_6, %c0_7, %c0_8] : memref<1x256x96xbf16, #tpu.memory_space<vmem>>, vector<1x256x96xbf16>
    %9 = vector.shape_cast %8 : vector<1x256x96xbf16> to vector<256x96xbf16>
    %10 = vector.shape_cast %7 : vector<256x96xbf16> to vector<1x256x96xbf16>
    tpu.vector_store %arg4[%c0_6, %c0_7, %c0_8], %10 {strides = array<i32>} : memref<1x256x96xbf16, #tpu.memory_space<vmem>>, vector<1x256x96xbf16>,
    %11 = vector.shape_cast %6 : vector<256x96xf32> to vector<16x16x96xf32>
    %12 = vector.extract_strided_slice %11 {offsets = [0, 0, 0], sizes = [16, 16, 32], strides = [1, 1, 1]} : vector<16x16x96xf32> to vector<16x16x32xf32>
    %13 = vector.extract_strided_slice %11 {offsets = [0, 0, 32], sizes = [16, 16, 32], strides = [1, 1, 1]} : vector<16x16x96xf32> to vector<16x16x32xf32>
    %14 = vector.extract_strided_slice %11 {offsets = [0, 0, 64], sizes = [16, 16, 32], strides = [1, 1, 1]} : vector<16x16x96xf32> to vector<16x16x32xf32>
    %15 = vector.extract_strided_slice %12 {offsets = [0, 0, 0], sizes = [16, 16, 8], strides = [1, 1, 1]} : vector<16x16x32xf32> to vector<16x16x8xf32>
    %16 = vector.extract_strided_slice %15 {offsets = [0, 0, 0], sizes = [1, 16, 8], strides = [1, 1, 1]} : vector<16x16x8xf32> to vector<1x16x8xf32>
    %17 = vector.extract_strided_slice %15 {offsets = [0, 0, 0], sizes = [15, 16, 8], strides = [1, 1, 1]} : vector<16x16x8xf32> to vector<15x16x8xf32>
    %18 = tpu.concatenate %16, %17 in 0 : vector<1x16x8xf32>, vector<15x16x8xf32> -> vector<16x16x8xf32>
    %19 = vector.extract_strided_slice %12 {offsets = [0, 0, 8], sizes = [16, 16, 8], strides = [1, 1, 1]} : vector<16x16x32xf32> to vector<16x16x8xf32>
    %20 = vector.extract_strided_slice %19 {offsets = [1, 0, 0], sizes = [15, 16, 8], strides = [1, 1, 1]} : vector<16x16x8xf32> to vector<15x16x8xf32>
    %21 = vector.extract_strided_slice %19 {offsets = [15, 0, 0], sizes = [1, 16, 8], strides = [1, 1, 1]} : vector<16x16x8xf32> to vector<1x16x8xf32>
    %22 = tpu.concatenate %20, %21 in 0 : vector<15x16x8xf32>, vector<1x16x8xf32> -> vector<16x16x8xf32>
    %23 = vector.extract_strided_slice %12 {offsets = [0, 0, 16], sizes = [16, 16, 8], strides = [1, 1, 1]} : vector<16x16x32xf32> to vector<16x16x8xf32>
    %24 = vector.extract_strided_slice %23 {offsets = [0, 0, 0], sizes = [16, 1, 8], strides = [1, 1, 1]} : vector<16x16x8xf32> to vector<16x1x8xf32>
    %25 = vector.extract_strided_slice %23 {offsets = [0, 0, 0], sizes = [16, 15, 8], strides = [1, 1, 1]} : vector<16x16x8xf32> to vector<16x15x8xf32>
    %26 = tpu.concatenate %24, %25 in 1 : vector<16x1x8xf32>, vector<16x15x8xf32> -> vector<16x16x8xf32>
    %27 = vector.extract_strided_slice %12 {offsets = [0, 0, 24], sizes = [16, 16, 8], strides = [1, 1, 1]} : vector<16x16x32xf32> to vector<16x16x8xf32>
    %28 = vector.extract_strided_slice %27 {offsets = [0, 1, 0], sizes = [16, 15, 8], strides = [1, 1, 1]} : vector<16x16x8xf32> to vector<16x15x8xf32>
    %29 = vector.extract_strided_slice %27 {offsets = [0, 15, 0], sizes = [16, 1, 8], strides = [1, 1, 1]} : vector<16x16x8xf32> to vector<16x1x8xf32>
    %30 = tpu.concatenate %28, %29 in 1 : vector<16x15x8xf32>, vector<16x1x8xf32> -> vector<16x16x8xf32>
    %31 = tpu.concatenate %18, %22, %26, %30 in 2 : vector<16x16x8xf32>, vector<16x16x8xf32>, vector<16x16x8xf32>, vector<16x16x8xf32> -> vector<16x16x32xf32>
    %32 = vector.extract_strided_slice %13 {offsets = [0, 0, 0], sizes = [16, 16, 8], strides = [1, 1, 1]} : vector<16x16x32xf32> to vector<16x16x8xf32>
    %33 = vector.extract_strided_slice %32 {offsets = [0, 0, 0], sizes = [16, 1, 8], strides = [1, 1, 1]} : vector<16x16x8xf32> to vector<16x1x8xf32>
    %34 = vector.extract_strided_slice %32 {offsets = [0, 0, 0], sizes = [16, 15, 8], strides = [1, 1, 1]} : vector<16x16x8xf32> to vector<16x15x8xf32>
    %35 = tpu.concatenate %33, %34 in 1 : vector<16x1x8xf32>, vector<16x15x8xf32> -> vector<16x16x8xf32>
    %36 = vector.extract_strided_slice %13 {offsets = [0, 0, 8], sizes = [16, 16, 8], strides = [1, 1, 1]} : vector<16x16x32xf32> to vector<16x16x8xf32>
    %37 = vector.extract_strided_slice %36 {offsets = [0, 1, 0], sizes = [16, 15, 8], strides = [1, 1, 1]} : vector<16x16x8xf32> to vector<16x15x8xf32>
    %38 = vector.extract_strided_slice %36 {offsets = [0, 15, 0], sizes = [16, 1, 8], strides = [1, 1, 1]} : vector<16x16x8xf32> to vector<16x1x8xf32>
    %39 = tpu.concatenate %37, %38 in 1 : vector<16x15x8xf32>, vector<16x1x8xf32> -> vector<16x16x8xf32>
    %40 = vector.extract_strided_slice %13 {offsets = [0, 0, 16], sizes = [16, 16, 8], strides = [1, 1, 1]} : vector<16x16x32xf32> to vector<16x16x8xf32>
    %41 = vector.extract_strided_slice %40 {offsets = [0, 0, 0], sizes = [1, 16, 8], strides = [1, 1, 1]} : vector<16x16x8xf32> to vector<1x16x8xf32>
    %42 = vector.extract_strided_slice %40 {offsets = [0, 0, 0], sizes = [15, 16, 8], strides = [1, 1, 1]} : vector<16x16x8xf32> to vector<15x16x8xf32>
    %43 = tpu.concatenate %41, %42 in 0 : vector<1x16x8xf32>, vector<15x16x8xf32> -> vector<16x16x8xf32>
    %44 = vector.extract_strided_slice %13 {offsets = [0, 0, 24], sizes = [16, 16, 8], strides = [1, 1, 1]} : vector<16x16x32xf32> to vector<16x16x8xf32>
    %45 = vector.extract_strided_slice %44 {offsets = [1, 0, 0], sizes = [15, 16, 8], strides = [1, 1, 1]} : vector<16x16x8xf32> to vector<15x16x8xf32>
    %46 = vector.extract_strided_slice %44 {offsets = [15, 0, 0], sizes = [1, 16, 8], strides = [1, 1, 1]} : vector<16x16x8xf32> to vector<1x16x8xf32>
    %47 = tpu.concatenate %45, %46 in 0 : vector<15x16x8xf32>, vector<1x16x8xf32> -> vector<16x16x8xf32>
    %48 = tpu.concatenate %35, %39, %43, %47 in 2 : vector<16x16x8xf32>, vector<16x16x8xf32>, vector<16x16x8xf32>, vector<16x16x8xf32> -> vector<16x16x32xf32>
    %49 = arith.addf %31, %48 : vector<16x16x32xf32>
    %50 = arith.addf %49, %14 : vector<16x16x32xf32>
    %cst_9 = arith.constant dense<0.000000e+00> : vector<32xf32>
    %51 = vector.multi_reduction <add>, %50, %cst_9 [0, 1] : vector<16x16x32xf32> to vector<32xf32>
    %52 = vector.shape_cast %51 : vector<32xf32> to vector<1x1x32xf32>
    %c0_10 = arith.constant 0 : index
    %c0_11 = arith.constant 0 : index
    %c0_12 = arith.constant 0 : index
    %53 = vector.load %arg5[%c0_10, %c0_11, %c0_12] : memref<1x1x32xf32, #tpu.memory_space<vmem>>, vector<1x1x32xf32>
    tpu.vector_store %arg5[%c0_10, %c0_11, %c0_12], %52 {strides = array<i32>} : memref<1x1x32xf32, #tpu.memory_space<vmem>>, vector<1x1x32xf32>,
    return
  }
  func.func @transform_0(%arg0: i32) -> (i32, i32, i32) {
    %c0_i32 = arith.constant 0 : i32
    %c0_i32_0 = arith.constant 0 : i32
    %c0_i32_1 = arith.constant 0 : i32
    return %arg0, %c0_i32, %c0_i32_0 : i32, i32, i32
  }
  func.func @transform_1(%arg0: i32) -> (i32, i32) {
    %c0_i32 = arith.constant 0 : i32
    %c0_i32_0 = arith.constant 0 : i32
    %c0_i32_1 = arith.constant 0 : i32
    return %c0_i32, %c0_i32_0 : i32, i32
  }
  func.func @transform_2(%arg0: i32) -> (i32, i32) {
    %c0_i32 = arith.constant 0 : i32
    %c0_i32_0 = arith.constant 0 : i32
    %c0_i32_1 = arith.constant 0 : i32
    return %c0_i32, %c0_i32_0 : i32, i32
  }
  func.func @transform_3(%arg0: i32) -> (i32, i32, i32) {
    %c0_i32 = arith.constant 0 : i32
    %c0_i32_0 = arith.constant 0 : i32
    %c0_i32_1 = arith.constant 0 : i32
    return %arg0, %c0_i32, %c0_i32_0 : i32, i32, i32
  }
  func.func @transform_4(%arg0: i32) -> (i32, i32, i32) {
    %c0_i32 = arith.constant 0 : i32
    %c0_i32_0 = arith.constant 0 : i32
    %c0_i32_1 = arith.constant 0 : i32
    return %arg0, %c0_i32, %c0_i32_0 : i32, i32, i32
  }
}

module attributes {stable_mosaic.version = 11 : i64} {
  func.func @_attend_mlp2_kernel(%arg0: i32, %arg1: memref<1x256x96xbf16, #tpu.memory_space<vmem>>, %arg2: memref<1x3x32xf32, #tpu.memory_space<vmem>>, %arg3: memref<32x32xf32, #tpu.memory_space<vmem>>, %arg4: memref<1x32xf32, #tpu.memory_space<vmem>>, %arg5: memref<1x256x32xf32, #tpu.memory_space<vmem>>) attributes {dimension_semantics = [#tpu.dimension_semantics<parallel>], iteration_bounds = array<i64: 2>, scalar_prefetch = 0 : i64, scratch_operands = 0 : i64, tpu.core_type = #tpu.core_type<tc>, window_params = [{transform_indices = @transform_0, window_bounds = array<i64: 1, 256, 96>}, {transform_indices = @transform_1, window_bounds = array<i64: 1, 3, 32>}, {pipeline_mode = #tpu.pipeline_mode<synchronous>, transform_indices = @transform_2, window_bounds = array<i64: 32, 32>}, {pipeline_mode = #tpu.pipeline_mode<synchronous>, transform_indices = @transform_3, window_bounds = array<i64: 1, 32>}, {transform_indices = @transform_4, window_bounds = array<i64: 1, 256, 32>}]} {
    %c0 = arith.constant 0 : index
    %c0_0 = arith.constant 0 : index
    %c0_1 = arith.constant 0 : index
    %0 = vector.load %arg1[%c0, %c0_0, %c0_1] : memref<1x256x96xbf16, #tpu.memory_space<vmem>>, vector<1x256x96xbf16>
    %1 = vector.shape_cast %0 : vector<1x256x96xbf16> to vector<256x96xbf16>
    %2 = arith.extf %1 : vector<256x96xbf16> to vector<256x96xf32>
    %3 = vector.shape_cast %2 : vector<256x96xf32> to vector<16x16x96xf32>
    %4 = vector.extract_strided_slice %3 {offsets = [0, 0, 0], sizes = [16, 16, 32], strides = [1, 1, 1]} : vector<16x16x96xf32> to vector<16x16x32xf32>
    %5 = vector.extract_strided_slice %3 {offsets = [0, 0, 32], sizes = [16, 16, 32], strides = [1, 1, 1]} : vector<16x16x96xf32> to vector<16x16x32xf32>
    %6 = vector.extract_strided_slice %3 {offsets = [0, 0, 64], sizes = [16, 16, 32], strides = [1, 1, 1]} : vector<16x16x96xf32> to vector<16x16x32xf32>
    %7 = vector.extract_strided_slice %4 {offsets = [0, 0, 0], sizes = [16, 16, 8], strides = [1, 1, 1]} : vector<16x16x32xf32> to vector<16x16x8xf32>
    %8 = vector.extract_strided_slice %7 {offsets = [0, 0, 0], sizes = [1, 16, 8], strides = [1, 1, 1]} : vector<16x16x8xf32> to vector<1x16x8xf32>
    %9 = vector.extract_strided_slice %7 {offsets = [0, 0, 0], sizes = [15, 16, 8], strides = [1, 1, 1]} : vector<16x16x8xf32> to vector<15x16x8xf32>
    %10 = tpu.concatenate %8, %9 in 0 : vector<1x16x8xf32>, vector<15x16x8xf32> -> vector<16x16x8xf32>
    %11 = vector.extract_strided_slice %4 {offsets = [0, 0, 8], sizes = [16, 16, 8], strides = [1, 1, 1]} : vector<16x16x32xf32> to vector<16x16x8xf32>
    %12 = vector.extract_strided_slice %11 {offsets = [1, 0, 0], sizes = [15, 16, 8], strides = [1, 1, 1]} : vector<16x16x8xf32> to vector<15x16x8xf32>
    %13 = vector.extract_strided_slice %11 {offsets = [15, 0, 0], sizes = [1, 16, 8], strides = [1, 1, 1]} : vector<16x16x8xf32> to vector<1x16x8xf32>
    %14 = tpu.concatenate %12, %13 in 0 : vector<15x16x8xf32>, vector<1x16x8xf32> -> vector<16x16x8xf32>
    %15 = vector.extract_strided_slice %4 {offsets = [0, 0, 16], sizes = [16, 16, 8], strides = [1, 1, 1]} : vector<16x16x32xf32> to vector<16x16x8xf32>
    %16 = vector.extract_strided_slice %15 {offsets = [0, 0, 0], sizes = [16, 1, 8], strides = [1, 1, 1]} : vector<16x16x8xf32> to vector<16x1x8xf32>
    %17 = vector.extract_strided_slice %15 {offsets = [0, 0, 0], sizes = [16, 15, 8], strides = [1, 1, 1]} : vector<16x16x8xf32> to vector<16x15x8xf32>
    %18 = tpu.concatenate %16, %17 in 1 : vector<16x1x8xf32>, vector<16x15x8xf32> -> vector<16x16x8xf32>
    %19 = vector.extract_strided_slice %4 {offsets = [0, 0, 24], sizes = [16, 16, 8], strides = [1, 1, 1]} : vector<16x16x32xf32> to vector<16x16x8xf32>
    %20 = vector.extract_strided_slice %19 {offsets = [0, 1, 0], sizes = [16, 15, 8], strides = [1, 1, 1]} : vector<16x16x8xf32> to vector<16x15x8xf32>
    %21 = vector.extract_strided_slice %19 {offsets = [0, 15, 0], sizes = [16, 1, 8], strides = [1, 1, 1]} : vector<16x16x8xf32> to vector<16x1x8xf32>
    %22 = tpu.concatenate %20, %21 in 1 : vector<16x15x8xf32>, vector<16x1x8xf32> -> vector<16x16x8xf32>
    %23 = tpu.concatenate %10, %14, %18, %22 in 2 : vector<16x16x8xf32>, vector<16x16x8xf32>, vector<16x16x8xf32>, vector<16x16x8xf32> -> vector<16x16x32xf32>
    %24 = vector.extract_strided_slice %5 {offsets = [0, 0, 0], sizes = [16, 16, 8], strides = [1, 1, 1]} : vector<16x16x32xf32> to vector<16x16x8xf32>
    %25 = vector.extract_strided_slice %24 {offsets = [0, 0, 0], sizes = [16, 1, 8], strides = [1, 1, 1]} : vector<16x16x8xf32> to vector<16x1x8xf32>
    %26 = vector.extract_strided_slice %24 {offsets = [0, 0, 0], sizes = [16, 15, 8], strides = [1, 1, 1]} : vector<16x16x8xf32> to vector<16x15x8xf32>
    %27 = tpu.concatenate %25, %26 in 1 : vector<16x1x8xf32>, vector<16x15x8xf32> -> vector<16x16x8xf32>
    %28 = vector.extract_strided_slice %5 {offsets = [0, 0, 8], sizes = [16, 16, 8], strides = [1, 1, 1]} : vector<16x16x32xf32> to vector<16x16x8xf32>
    %29 = vector.extract_strided_slice %28 {offsets = [0, 1, 0], sizes = [16, 15, 8], strides = [1, 1, 1]} : vector<16x16x8xf32> to vector<16x15x8xf32>
    %30 = vector.extract_strided_slice %28 {offsets = [0, 15, 0], sizes = [16, 1, 8], strides = [1, 1, 1]} : vector<16x16x8xf32> to vector<16x1x8xf32>
    %31 = tpu.concatenate %29, %30 in 1 : vector<16x15x8xf32>, vector<16x1x8xf32> -> vector<16x16x8xf32>
    %32 = vector.extract_strided_slice %5 {offsets = [0, 0, 16], sizes = [16, 16, 8], strides = [1, 1, 1]} : vector<16x16x32xf32> to vector<16x16x8xf32>
    %33 = vector.extract_strided_slice %32 {offsets = [0, 0, 0], sizes = [1, 16, 8], strides = [1, 1, 1]} : vector<16x16x8xf32> to vector<1x16x8xf32>
    %34 = vector.extract_strided_slice %32 {offsets = [0, 0, 0], sizes = [15, 16, 8], strides = [1, 1, 1]} : vector<16x16x8xf32> to vector<15x16x8xf32>
    %35 = tpu.concatenate %33, %34 in 0 : vector<1x16x8xf32>, vector<15x16x8xf32> -> vector<16x16x8xf32>
    %36 = vector.extract_strided_slice %5 {offsets = [0, 0, 24], sizes = [16, 16, 8], strides = [1, 1, 1]} : vector<16x16x32xf32> to vector<16x16x8xf32>
    %37 = vector.extract_strided_slice %36 {offsets = [1, 0, 0], sizes = [15, 16, 8], strides = [1, 1, 1]} : vector<16x16x8xf32> to vector<15x16x8xf32>
    %38 = vector.extract_strided_slice %36 {offsets = [15, 0, 0], sizes = [1, 16, 8], strides = [1, 1, 1]} : vector<16x16x8xf32> to vector<1x16x8xf32>
    %39 = tpu.concatenate %37, %38 in 0 : vector<15x16x8xf32>, vector<1x16x8xf32> -> vector<16x16x8xf32>
    %40 = tpu.concatenate %27, %31, %35, %39 in 2 : vector<16x16x8xf32>, vector<16x16x8xf32>, vector<16x16x8xf32>, vector<16x16x8xf32> -> vector<16x16x32xf32>
    %c0_2 = arith.constant 0 : index
    %c0_3 = arith.constant 0 : index
    %c0_4 = arith.constant 0 : index
    %41 = vector.load %arg2[%c0_2, %c0_3, %c0_4] : memref<1x3x32xf32, #tpu.memory_space<vmem>>, vector<1x3x32xf32>
    %42 = vector.shape_cast %41 : vector<1x3x32xf32> to vector<3x32xf32>
    %cst = arith.constant dense<0xFF800000> : vector<32xf32>
    %43 = vector.multi_reduction <maximumf>, %42, %cst [0] : vector<3x32xf32> to vector<32xf32>
    %44 = vector.shape_cast %43 : vector<32xf32> to vector<1x32xf32>
    %45 = vector.broadcast %44 : vector<1x32xf32> to vector<3x32xf32>
    %46 = arith.subf %42, %45 : vector<3x32xf32>
    %47 = math.exp %46 : vector<3x32xf32>
    %cst_5 = arith.constant dense<0.000000e+00> : vector<32xf32>
    %48 = vector.multi_reduction <add>, %47, %cst_5 [0] : vector<3x32xf32> to vector<32xf32>
    %49 = vector.shape_cast %48 : vector<32xf32> to vector<1x32xf32>
    %50 = vector.broadcast %49 : vector<1x32xf32> to vector<3x32xf32>
    %51 = arith.divf %47, %50 : vector<3x32xf32>
    %52 = vector.extract_strided_slice %51 {offsets = [0, 0], sizes = [1, 32], strides = [1, 1]} : vector<3x32xf32> to vector<1x32xf32>
    %53 = vector.shape_cast %23 : vector<16x16x32xf32> to vector<256x32xf32>
    %54 = vector.broadcast %52 : vector<1x32xf32> to vector<256x32xf32>
    %55 = arith.mulf %54, %53 : vector<256x32xf32>
    %56 = vector.extract_strided_slice %51 {offsets = [1, 0], sizes = [1, 32], strides = [1, 1]} : vector<3x32xf32> to vector<1x32xf32>
    %57 = vector.shape_cast %40 : vector<16x16x32xf32> to vector<256x32xf32>
    %58 = vector.broadcast %56 : vector<1x32xf32> to vector<256x32xf32>
    %59 = arith.mulf %58, %57 : vector<256x32xf32>
    %60 = arith.addf %55, %59 : vector<256x32xf32>
    %61 = vector.extract_strided_slice %51 {offsets = [2, 0], sizes = [1, 32], strides = [1, 1]} : vector<3x32xf32> to vector<1x32xf32>
    %62 = vector.shape_cast %6 : vector<16x16x32xf32> to vector<256x32xf32>
    %63 = vector.broadcast %61 : vector<1x32xf32> to vector<256x32xf32>
    %64 = arith.mulf %63, %62 : vector<256x32xf32>
    %65 = arith.addf %60, %64 : vector<256x32xf32>
    %c0_6 = arith.constant 0 : index
    %c0_7 = arith.constant 0 : index
    %66 = vector.load %arg3[%c0_6, %c0_7] : memref<32x32xf32, #tpu.memory_space<vmem>>, vector<32x32xf32>
    %cst_8 = arith.constant dense<0.000000e+00> : vector<256x32xf32>
    %67 = tpu.matmul %65, %66, %cst_8 {dimension_numbers = #tpu.dot_dimension_numbers<[1], [0], [0], [1], [0, 0, 1, 1], [], []>} : vector<256x32xf32>, vector<32x32xf32>, vector<256x32xf32> -> vector<256x32xf32>
    %c0_9 = arith.constant 0 : index
    %c0_10 = arith.constant 0 : index
    %68 = vector.load %arg4[%c0_9, %c0_10] : memref<1x32xf32, #tpu.memory_space<vmem>>, vector<1x32xf32>
    %69 = vector.broadcast %68 : vector<1x32xf32> to vector<256x32xf32>
    %70 = arith.addf %67, %69 : vector<256x32xf32>
    %c0_11 = arith.constant 0 : index
    %c0_12 = arith.constant 0 : index
    %c0_13 = arith.constant 0 : index
    %71 = vector.load %arg5[%c0_11, %c0_12, %c0_13] : memref<1x256x32xf32, #tpu.memory_space<vmem>>, vector<1x256x32xf32>
    %72 = vector.shape_cast %71 : vector<1x256x32xf32> to vector<256x32xf32>
    %73 = vector.shape_cast %70 : vector<256x32xf32> to vector<1x256x32xf32>
    tpu.vector_store %arg5[%c0_11, %c0_12, %c0_13], %73 {strides = array<i32>} : memref<1x256x32xf32, #tpu.memory_space<vmem>>, vector<1x256x32xf32>,
    return
  }
  func.func @transform_0(%arg0: i32) -> (i32, i32, i32) {
    %c0_i32 = arith.constant 0 : i32
    %c0_i32_0 = arith.constant 0 : i32
    %c0_i32_1 = arith.constant 0 : i32
    return %arg0, %c0_i32, %c0_i32_0 : i32, i32, i32
  }
  func.func @transform_1(%arg0: i32) -> (i32, i32, i32) {
    %c0_i32 = arith.constant 0 : i32
    %c0_i32_0 = arith.constant 0 : i32
    %c0_i32_1 = arith.constant 0 : i32
    return %arg0, %c0_i32, %c0_i32_0 : i32, i32, i32
  }
  func.func @transform_2(%arg0: i32) -> (i32, i32) {
    %c0_i32 = arith.constant 0 : i32
    %c0_i32_0 = arith.constant 0 : i32
    %c0_i32_1 = arith.constant 0 : i32
    return %c0_i32, %c0_i32_0 : i32, i32
  }
  func.func @transform_3(%arg0: i32) -> (i32, i32) {
    %c0_i32 = arith.constant 0 : i32
    %c0_i32_0 = arith.constant 0 : i32
    %c0_i32_1 = arith.constant 0 : i32
    return %c0_i32, %c0_i32_0 : i32, i32
  }
  func.func @transform_4(%arg0: i32) -> (i32, i32, i32) {
    %c0_i32 = arith.constant 0 : i32
    %c0_i32_0 = arith.constant 0 : i32
    %c0_i32_1 = arith.constant 0 : i32
    return %arg0, %c0_i32, %c0_i32_0 : i32, i32, i32
  }
}

</mosaic_0001>

<llo_original>
// kernel: s2_attention_forward.2
$region0: #{s2_attention_forward.2}
  #allocation0 [shape = 'u32[]', space=smem, size = 0x4, offset = 0x4, fixed_abs, tag = 'smem constant byte address 0x4 - core index']
  #allocation1 [shape = 'u32[144,128]{1,0:T(1,128)}', space=vmem, size = 0x12000, scoped, tag = 'internal scratch']
  %s0 = inlined_call_operand.hbm [shape: f32[2,256,32], index: 0, kind: input, shape index: {}]
  %s1 = inlined_call_operand.hbm [shape: f32[32,96], index: 1, kind: input, shape index: {}]
  %s2 = inlined_call_operand.vmem [shape: f32[1,96], index: 2, kind: input, shape index: {}]
  %s3 = inlined_call_operand.vmem [shape: bf16[2,256,96], index: 3, kind: output, shape index: {0}]
  %s4 = inlined_call_operand.vmem [shape: f32[2,1,32], index: 4, kind: output, shape index: {1}]
  %5 = xla_tuple %s3, %s4
  %s6 = sld [smem:[#allocation0]]
  $region61: #{s2_attention_forward.2} parent=0
    _
  %s8 = ssub.s32 1, %s6
  %s9 = scalar_select 0, %s8, %s6
  $region1: #{s2_attention_forward.2} parent=0
    #allocation2 [shape = 'u8[262144]{0}', space=vmem, size = 0x40000, scoped, tag = 'input window, operand 0']
    #allocation3 [shape = 's32[2]{0}', space=sflag, size = 0x8, scoped, tag = 'scoped memory for s2_attention_forward.2']
    #allocation4 [shape = 'u8[16384]{0}', space=vmem, size = 0x4000, scoped, tag = 'input window, operand 1, single buffered']
    #allocation5 [shape = 's32[1]{0}', space=sflag, size = 0x4, scoped, tag = 'scoped memory for s2_attention_forward.2']
    %10 = vsyncpa [#allocation3], 0
    %s11 = scalar_lea.sflag [#allocation3], 1
    %12 = vsyncpa %s11, 0
    %13 = vsyncpa [#allocation5], 0
    loop: start=0, step=1, limit=4
    $region2: #{s2_attention_forward.2} parent=1 // loop_pre_header
      _
    $region3: #{s2_attention_forward.2} parent=1 // loop_header
      %s15 = sphi 0, %s19
      %p16 = scmp.ge.s32.totalorder %s15, 4
      %s25 = sphi 0, %s27
      %s28 = sphi 0, %s25
      %s29 = sphi 0, %s28
      %s45 = sphi 0, %s29
      %s49 = sphi 0, %s49
      %s51 = sphi 0, %s49
      %s52 = sphi 0, %s51
      %s66 = sphi 0, %s52
      %s70 = sphi 0, %s70
      %s72 = sphi 0, %s70
      %s73 = sphi 0, %s72
      %s87 = sphi 0, %s73
      %s93 = sphi 0, %s95
      %s96 = sphi 0, %s93
      %s97 = sphi 0, %s96
      %s113 = sphi 0, %s97
      %s119 = sphi 0, %s121
      %s122 = sphi 0, %s119
      %s123 = sphi 0, %s122
      %s139 = sphi 0, %s123
    $region4: #{s2_attention_forward.2} parent=1 // loop_header_branch
      %18 = sbr.rel (%p16) target = $region8
    $region5: #{s2_attention_forward.2} parent=1 // loop_body
      %s20 = ssub.s32 %s15, 1
      %s21 = ssub.s32 %s15, 2
      %s22 = sadd.s32 %s15, 1
      %s23 = ssub.s32 %s15, %s22
      %p24 = scmp.eq.s32.totalorder %s23, 0
      %s26 = sadd.s32 %s25, 1
      %s27 = scalar_select %p24, %s25, %s26
      %p30 = pneg %p24
      %p31 = scmp.eq.s32.totalorder %s15, 1
      %p32 = por %p30, %p31
      %p33 = scmp.ne.s32.totalorder %s25, %s28
      %p34 = scmp.eq.s32.totalorder %s15, 0
      %p35 = por %p33, %p34
      %p36 = scmp.ne.s32.totalorder %s25, %s28
      %p37 = scmp.eq.s32.totalorder %s20, 1
      %p38 = por %p36, %p37
      %p39 = scmp.ne.s32.totalorder %s28, %s29
      %p40 = scmp.eq.s32.totalorder %s20, 0
      %p41 = por %p39, %p40
      %p42 = scmp.ne.s32.totalorder %s28, %s29
      %p43 = scmp.eq.s32.totalorder %s21, 1
      %p44 = por %p42, %p43
      %p46 = scmp.ne.s32.totalorder %s29, %s45
      %p47 = scmp.eq.s32.totalorder %s21, 0
      %p48 = por %p46, %p47
      %s50 = sadd.s32 %s49, 1
      %p53 = scmp.eq.s32.totalorder %s15, 1
      %p54 = scmp.ne.s32.totalorder %s49, %s51
      %p55 = scmp.eq.s32.totalorder %s15, 0
      %p56 = por %p54, %p55
      %p57 = scmp.ne.s32.totalorder %s49, %s51
      %p58 = scmp.eq.s32.totalorder %s20, 1
      %p59 = por %p57, %p58
      %p60 = scmp.ne.s32.totalorder %s51, %s52
      %p61 = scmp.eq.s32.totalorder %s20, 0
      %p62 = por %p60, %p61
      %p63 = scmp.ne.s32.totalorder %s51, %s52
      %p64 = scmp.eq.s32.totalorder %s21, 1
      %p65 = por %p63, %p64
      %p67 = scmp.ne.s32.totalorder %s52, %s66
      %p68 = scmp.eq.s32.totalorder %s21, 0
      %p69 = por %p67, %p68
      %s71 = sadd.s32 %s70, 1
      %p74 = scmp.eq.s32.totalorder %s15, 1
      %p75 = scmp.ne.s32.totalorder %s70, %s72
      %p76 = scmp.eq.s32.totalorder %s15, 0
      %p77 = por %p75, %p76
      %p78 = scmp.ne.s32.totalorder %s70, %s72
      %p79 = scmp.eq.s32.totalorder %s20, 1
      %p80 = por %p78, %p79
      %p81 = scmp.ne.s32.totalorder %s72, %s73
      %p82 = scmp.eq.s32.totalorder %s20, 0
      %p83 = por %p81, %p82
      %p84 = scmp.ne.s32.totalorder %s72, %s73
      %p85 = scmp.eq.s32.totalorder %s21, 1
      %p86 = por %p84, %p85
      %p88 = scmp.ne.s32.totalorder %s73, %s87
      %p89 = scmp.eq.s32.totalorder %s21, 0
      %p90 = por %p88, %p89
      %s91 = ssub.s32 %s15, %s22
      %p92 = scmp.eq.s32.totalorder %s91, 0
      %s94 = sadd.s32 %s93, 1
      %s95 = scalar_select %p92, %s93, %s94
      %p98 = pneg %p92
      %p99 = scmp.eq.s32.totalorder %s15, 1
      %p100 = por %p98, %p99
      %p101 = scmp.ne.s32.totalorder %s93, %s96
      %p102 = scmp.eq.s32.totalorder %s15, 0
      %p103 = por %p101, %p102
      %p104 = scmp.ne.s32.totalorder %s93, %s96
      %p105 = scmp.eq.s32.totalorder %s20, 1
      %p106 = por %p104, %p105
      %p107 = scmp.ne.s32.totalorder %s96, %s97
      %p108 = scmp.eq.s32.totalorder %s20, 0
      %p109 = por %p107, %p108
      %p110 = scmp.ne.s32.totalorder %s96, %s97
      %p111 = scmp.eq.s32.totalorder %s21, 1
      %p112 = por %p110, %p111
      %p114 = scmp.ne.s32.totalorder %s97, %s113
      %p115 = scmp.eq.s32.totalorder %s21, 0
      %p116 = por %p114, %p115
      %s117 = ssub.s32 %s15, %s22
      %p118 = scmp.eq.s32.totalorder %s117, 0
      %s120 = sadd.s32 %s119, 1
      %s121 = scalar_select %p118, %s119, %s120
      %p124 = pneg %p118
      %p125 = scmp.eq.s32.totalorder %s15, 1
      %p126 = por %p124, %p125
      %p127 = scmp.ne.s32.totalorder %s119, %s122
      %p128 = scmp.eq.s32.totalorder %s15, 0
      %p129 = por %p127, %p128
      %p130 = scmp.ne.s32.totalorder %s119, %s122
      %p131 = scmp.eq.s32.totalorder %s20, 1
      %p132 = por %p130, %p131
      %p133 = scmp.ne.s32.totalorder %s122, %s123
      %p134 = scmp.eq.s32.totalorder %s20, 0
      %p135 = por %p133, %p134
      %p136 = scmp.ne.s32.totalorder %s122, %s123
      %p137 = scmp.eq.s32.totalorder %s21, 1
      %p138 = por %p136, %p137
      %p140 = scmp.ne.s32.totalorder %s123, %s139
      %p141 = scmp.eq.s32.totalorder %s21, 0
      %p142 = por %p140, %p141
      %p143 = scmp.le.s32.totalorder 1, %s15
      %p144 = scmp.lt.s32.totalorder %s15, 3
      %p145 = pnand %p143, %p144
      %p146 = pneg %p145
      // Predicated region
      $region9: #{s2_attention_forward.2} parent=5 // pred_check
        _
      $region10: #{s2_attention_forward.2} parent=5 // pred_check_branch
        %148 = sbr.rel (%p145) target = $region12
      $region11: #{s2_attention_forward.2} parent=5 // pred_region
        %s149 = ssub.s32 %s15, 1
        // Predicated region
        $region13: #{s2_attention_forward.2} parent=11 // pred_check
          %p150 = pneg %p62
        $region14: #{s2_attention_forward.2} parent=11 // pred_check_branch
          %152 = sbr.rel (%p150) target = $region16
        $region15: #{s2_attention_forward.2} parent=11 // pred_region
          %s154 = ssub.s32 512, 512
          %155 = vsyncadd [#allocation5], %s154
          %s156 = sshll.u32 [#allocation4], 4
          %s157 = int_to_ptr.vmem [resolvable:$true] %s156
          %162 = dma.hbm_to_vmem [thread:$0]  %s1, 512, %s157, [#allocation5], 128, 128, 8
        $region16: #{s2_attention_forward.2} parent=11 // pred_fallthru
          _
        // Predicated region
        $region17: #{s2_attention_forward.2} parent=11 // pred_check
          %p163 = pneg %p83
        $region18: #{s2_attention_forward.2} parent=11 // pred_check_branch
          %165 = sbr.rel (%p163) target = $region20
        $region19: #{s2_attention_forward.2} parent=11 // pred_region
          _
        $region20: #{s2_attention_forward.2} parent=11 // pred_fallthru
          _
      $region12: #{s2_attention_forward.2} parent=5 // pred_fallthru
        _
      %p166 = scmp.lt.s32.totalorder %s15, 2
      // Predicated region
      $region21: #{s2_attention_forward.2} parent=5 // pred_check
        %p167 = pneg %p166
      $region22: #{s2_attention_forward.2} parent=5 // pred_check_branch
        %169 = sbr.rel (%p167) target = $region24
      $region23: #{s2_attention_forward.2} parent=5 // pred_region
        // Predicated region
        $region25: #{s2_attention_forward.2} parent=23 // pred_check
          %p170 = pneg %p35
        $region26: #{s2_attention_forward.2} parent=23 // pred_check_branch
          %172 = sbr.rel (%p170) target = $region28
        $region27: #{s2_attention_forward.2} parent=23 // pred_region
          %s173 = sand.u32 %s25, 1
          %s174 = scalar_lea.sflag [#allocation3], %s173
          %s175 = sand.u32 %s25, 1
          %s176 = smul.addr %s175, 256
          %s177 = scalar_lea.vmem [#allocation2], %s176
          %s179 = ssub.s32 4096, 4096
          %180 = vsyncadd %s174, %s179
          %s181 = smul.addr %s15, 32
          %s182 = smul.addr %s181, 128
          %s183 = scalar_lea.hbm %s0, %s182
          %s184 = sshll.u32 %s177, 4
          %s185 = int_to_ptr.vmem [resolvable:$true] %s184
          %190 = dma.hbm_to_vmem [thread:$0]  %s183, 4096, %s185, %s174, 128, 128, 8
        $region28: #{s2_attention_forward.2} parent=23 // pred_fallthru
          _
      $region24: #{s2_attention_forward.2} parent=5 // pred_fallthru
        _
      %p191 = scmp.le.s32.totalorder 1, %s15
      %p192 = scmp.lt.s32.totalorder %s15, 3
      %p193 = pnand %p191, %p192
      %p194 = pneg %p193
      // Predicated region
      $region29: #{s2_attention_forward.2} parent=5 // pred_check
        _
      $region30: #{s2_attention_forward.2} parent=5 // pred_check_branch
        %196 = sbr.rel (%p193) target = $region32
      $region31: #{s2_attention_forward.2} parent=5 // pred_region
        %s197 = ssub.s32 %s15, 1
        %s198 = sand.u32 %s28, 1
        %s199 = scalar_lea.sflag [#allocation3], %s198
        %s200 = sand.u32 %s28, 1
        %s201 = smul.addr %s200, 256
        %s202 = scalar_lea.vmem [#allocation2], %s201
        // Predicated region
        $region33: #{s2_attention_forward.2} parent=31 // pred_check
          %p203 = pneg %p41
        $region34: #{s2_attention_forward.2} parent=31 // pred_check_branch
          %205 = sbr.rel (%p203) target = $region36
        $region35: #{s2_attention_forward.2} parent=31 // pred_region
          %206 = dma.done %s199, 4096
        $region36: #{s2_attention_forward.2} parent=31 // pred_fallthru
          _
        // Predicated region
        $region37: #{s2_attention_forward.2} parent=31 // pred_check
          %p207 = pneg %p62
        $region38: #{s2_attention_forward.2} parent=31 // pred_check_branch
          %209 = sbr.rel (%p207) target = $region40
        $region39: #{s2_attention_forward.2} parent=31 // pred_region
          %210 = dma.done [#allocation5], 512
        $region40: #{s2_attention_forward.2} parent=31 // pred_fallthru
          _
        %s211 = sand.u32 %s28, 1
        %s212 = scalar_lea.sflag [#allocation3], %s211
        %s213 = sand.u32 %s28, 1
        %s214 = smul.addr %s213, 256
        %s215 = scalar_lea.vmem [#allocation2], %s214
        %p216 = pneg %p41
        %p217 = pneg %p38
        %p218 = pneg %p62
        %p219 = pneg %p59
        %p220 = pneg %p83
        %p221 = pneg %p80
        %p222 = pneg %p109
        %p223 = pneg %p106
        %p224 = scmp.lt.s32.totalorder %s20, 1
        %s225 = scalar_select %p224, %s20, 1
        %s226 = smul.addr %s225, 32
        %s227 = smul.addr %s226, 4
        %s228 = scalar_lea.vmem %s3, %s227
        %p229 = pneg %p135
        %p230 = pneg %p132
        %p231 = scmp.lt.s32.totalorder %s20, 1
        %s232 = scalar_select %p231, %s20, 1
        %s233 = scalar_lea.vmem %s4, %s232
        %p234 = scmp.lt.s32.totalorder %s20, 1
        %s235 = scalar_select %p234, %s20, 1
        %s236 = smul.addr %s235, 32
        %s237 = smul.addr %s236, 4
        %s238 = scalar_lea.vmem %s3, %s237
        %p239 = scmp.lt.s32.totalorder %s20, 1
        %s240 = scalar_select %p239, %s20, 1
        %s241 = scalar_lea.vmem %s4, %s240
        %v242 = vld [vmem:[%s202] sm:$0xff]
        %v243 = vld [vmem:[%s202 + $0x8] sm:$0xff]
        %v244 = vld [vmem:[%s202 + $0x10] sm:$0xff]
        %v245 = vld [vmem:[%s202 + $0x18] sm:$0xff]
        %v246 = vld [vmem:[%s202 + $0x20] sm:$0xff]
        %v247 = vld [vmem:[%s202 + $0x28] sm:$0xff]
        %v248 = vld [vmem:[%s202 + $0x30] sm:$0xff]
        %v249 = vld [vmem:[%s202 + $0x38] sm:$0xff]
        %v250 = vld [vmem:[%s202 + $0x40] sm:$0xff]
        %v251 = vld [vmem:[%s202 + $0x48] sm:$0xff]
        %v252 = vld [vmem:[%s202 + $0x50] sm:$0xff]
        %v253 = vld [vmem:[%s202 + $0x58] sm:$0xff]
        %v254 = vld [vmem:[%s202 + $0x60] sm:$0xff]
        %v255 = vld [vmem:[%s202 + $0x68] sm:$0xff]
        %v256 = vld [vmem:[%s202 + $0x70] sm:$0xff]
        %v257 = vld [vmem:[%s202 + $0x78] sm:$0xff]
        %v258 = vld [vmem:[%s202 + $0x80] sm:$0xff]
        %v259 = vld [vmem:[%s202 + $0x88] sm:$0xff]
        %v260 = vld [vmem:[%s202 + $0x90] sm:$0xff]
        %v261 = vld [vmem:[%s202 + $0x98] sm:$0xff]
        %v262 = vld [vmem:[%s202 + $0xa0] sm:$0xff]
        %v263 = vld [vmem:[%s202 + $0xa8] sm:$0xff]
        %v264 = vld [vmem:[%s202 + $0xb0] sm:$0xff]
        %v265 = vld [vmem:[%s202 + $0xb8] sm:$0xff]
        %v266 = vld [vmem:[%s202 + $0xc0] sm:$0xff]
        %v267 = vld [vmem:[%s202 + $0xc8] sm:$0xff]
        %v268 = vld [vmem:[%s202 + $0xd0] sm:$0xff]
        %v269 = vld [vmem:[%s202 + $0xd8] sm:$0xff]
        %v270 = vld [vmem:[%s202 + $0xe0] sm:$0xff]
        %v271 = vld [vmem:[%s202 + $0xe8] sm:$0xff]
        %v272 = vld [vmem:[%s202 + $0xf0] sm:$0xff]
        %v273 = vld [vmem:[%s202 + $0xf8] sm:$0xff]
        %v274 = vld [vmem:[#allocation4] sm:$0xff]
        %v275 = vld [vmem:[#allocation4 + $0x8] sm:$0xff]
        %v276 = vld [vmem:[#allocation4 + $0x10] sm:$0xff]
        %v277 = vld [vmem:[#allocation4 + $0x18] sm:$0xff]
        %v278 = vld [vmem:[%s2] sm:$0x1]
        %v280 = vlaneseq
        %v281 = vshrl.u32 %v280, 7
        %v282 = vsub.s32 0, %v281
        %v283 = vrot.slane %v278, %v282
        %vm285 = vcmask 261120
        %v287 = vsel %vm285, %v242, 0
        %v290 = vsel %vm285, %v243, 0
        %v293 = vsel %vm285, %v244, 0
        %v296 = vsel %vm285, %v245, 0
        %v299 = vsel %vm285, %v246, 0
        %v302 = vsel %vm285, %v247, 0
        %v305 = vsel %vm285, %v248, 0
        %v308 = vsel %vm285, %v249, 0
        %v311 = vsel %vm285, %v250, 0
        %v314 = vsel %vm285, %v251, 0
        %v317 = vsel %vm285, %v252, 0
        %v320 = vsel %vm285, %v253, 0
        %v323 = vsel %vm285, %v254, 0
        %v326 = vsel %vm285, %v255, 0
        %v329 = vsel %vm285, %v256, 0
        %v332 = vsel %vm285, %v257, 0
        %v335 = vsel %vm285, %v258, 0
        %v338 = vsel %vm285, %v259, 0
        %v341 = vsel %vm285, %v260, 0
        %v344 = vsel %vm285, %v261, 0
        %v347 = vsel %vm285, %v262, 0
        %v350 = vsel %vm285, %v263, 0
        %v353 = vsel %vm285, %v264, 0
        %v356 = vsel %vm285, %v265, 0
        %v359 = vsel %vm285, %v266, 0
        %v362 = vsel %vm285, %v267, 0
        %v365 = vsel %vm285, %v268, 0
        %v368 = vsel %vm285, %v269, 0
        %v371 = vsel %vm285, %v270, 0
        %v374 = vsel %vm285, %v271, 0
        %v377 = vsel %vm285, %v272, 0
        %v380 = vsel %vm285, %v273, 0
        %382 = vmatprep.subr.mxu0 0.0
        %383 = vmatpush1.msra.mxu0 0.0
        %384 = vmatprep.subr.mxu0 0.0
        %385 = vmatpush1.msra.mxu0 0.0
        %386 = vmatprep.subr.mxu0 0.0
        %387 = vmatpush1.msra.mxu0 0.0
        %388 = vmatprep.subr.mxu0 0.0
        %389 = vmatpush1.msra.mxu0 0.0
        %390 = vmatprep.subr.mxu0 0.0
        %391 = vmatpush1.msra.mxu0 0.0
        %392 = vmatprep.subr.mxu0 0.0
        %393 = vmatpush1.msra.mxu0 0.0
        %394 = vmatprep.subr.mxu0 0.0
        %395 = vmatpush1.msra.mxu0 0.0
        %396 = vmatprep.subr.mxu0 0.0
        %397 = vmatpush1.msra.mxu0 0.0
        %398 = vmatprep.subr.mxu0 0.0
        %399 = vmatpush1.msra.mxu0 0.0
        %400 = vmatprep.subr.mxu0 0.0
        %401 = vmatpush1.msra.mxu0 0.0
        %402 = vmatprep.subr.mxu0 0.0
        %403 = vmatpush1.msra.mxu0 0.0
        %404 = vmatprep.subr.mxu0 0.0
        %405 = vmatpush1.msra.mxu0 0.0
        %406 = vmatprep.subr.mxu0 0.0
        %407 = vmatpush1.msra.mxu0 %v277
        %408 = vmatprep.subr.mxu0 0.0
        %409 = vmatpush1.msra.mxu0 %v276
        %410 = vmatprep.subr.mxu0 0.0
        %411 = vmatpush1.msra.mxu0 %v275
        %412 = vmatprep.subr.mxu0 0.0
        %413 = vmatpush1.msra.mxu0 %v274
        %414 = vmatprep.subr.mxu0 0.0
        %415 = vmatpush2.msra.mxu0 0.0
        %416 = vmatprep.subr.mxu0 0.0
        %417 = vmatpush2.msra.mxu0 0.0
        %418 = vmatprep.subr.mxu0 0.0
        %419 = vmatpush2.msra.mxu0 0.0
        %420 = vmatprep.subr.mxu0 0.0
        %421 = vmatpush2.msra.mxu0 0.0
        %422 = vmatprep.subr.mxu0 0.0
        %423 = vmatpush2.msra.mxu0 0.0
        %424 = vmatprep.subr.mxu0 0.0
        %425 = vmatpush2.msra.mxu0 0.0
        %426 = vmatprep.subr.mxu0 0.0
        %427 = vmatpush2.msra.mxu0 0.0
        %428 = vmatprep.subr.mxu0 0.0
        %429 = vmatpush2.msra.mxu0 0.0
        %430 = vmatprep.subr.mxu0 0.0
        %431 = vmatpush2.msra.mxu0 0.0
        %432 = vmatprep.subr.mxu0 0.0
        %433 = vmatpush2.msra.mxu0 0.0
        %434 = vmatprep.subr.mxu0 0.0
        %435 = vmatpush2.msra.mxu0 0.0
        %436 = vmatprep.subr.mxu0 0.0
        %437 = vmatpush2.msra.mxu0 0.0
        %438 = vmatprep.subr.mxu0 0.0
        %439 = vmatpush2.msra.mxu0 0.0
        %440 = vmatprep.subr.mxu0 0.0
        %441 = vmatpush2.msra.mxu0 0.0
        %442 = vmatprep.subr.mxu0 0.0
        %443 = vmatpush2.msra.mxu0 0.0
        %444 = vmatprep.subr.mxu0 0.0
        %445 = vmatpush2.msra.mxu0 0.0
        %446 = vmatprep.mubr.f32.mxu0 0.0
        %447 = vmatmul.mubr.f32.gmra.mxu0 %v287
        %v448 = vpop.f32.mrf.mxu0
        %v449 = vadd.f32 %v283, %v448
        %v450 = vpop.f32.mrf.mxu0
        %451 = vmatprep.mubr.f32.mxu0 0.0
        %452 = vmatmul.mubr.f32.gmra.mxu0 %v290
        %v453 = vpop.f32.mrf.mxu0
        %v454 = vadd.f32 %v283, %v453
        %v455 = vpop.f32.mrf.mxu0
        %456 = vmatprep.mubr.f32.mxu0 0.0
        %457 = vmatmul.mubr.f32.gmra.mxu0 %v293
        %v458 = vpop.f32.mrf.mxu0
        %v459 = vadd.f32 %v283, %v458
        %v460 = vpop.f32.mrf.mxu0
        %461 = vmatprep.mubr.f32.mxu0 0.0
        %462 = vmatmul.mubr.f32.gmra.mxu0 %v296
        %v463 = vpop.f32.mrf.mxu0
        %v464 = vadd.f32 %v283, %v463
        %v465 = vpop.f32.mrf.mxu0
        %466 = vmatprep.mubr.f32.mxu0 0.0
        %467 = vmatmul.mubr.f32.gmra.mxu0 %v299
        %v468 = vpop.f32.mrf.mxu0
        %v469 = vadd.f32 %v283, %v468
        %v470 = vpop.f32.mrf.mxu0
        %471 = vmatprep.mubr.f32.mxu0 0.0
        %472 = vmatmul.mubr.f32.gmra.mxu0 %v302
        %v473 = vpop.f32.mrf.mxu0
        %v474 = vadd.f32 %v283, %v473
        %v475 = vpop.f32.mrf.mxu0
        %476 = vmatprep.mubr.f32.mxu0 0.0
        %477 = vmatmul.mubr.f32.gmra.mxu0 %v305
        %v478 = vpop.f32.mrf.mxu0
        %v479 = vadd.f32 %v283, %v478
        %v480 = vpop.f32.mrf.mxu0
        %481 = vmatprep.mubr.f32.mxu0 0.0
        %482 = vmatmul.mubr.f32.gmra.mxu0 %v308
        %v483 = vpop.f32.mrf.mxu0
        %v484 = vadd.f32 %v283, %v483
        %v485 = vpop.f32.mrf.mxu0
        %486 = vmatprep.mubr.f32.mxu0 0.0
        %487 = vmatmul.mubr.f32.gmra.mxu0 %v311
        %v488 = vpop.f32.mrf.mxu0
        %v489 = vadd.f32 %v283, %v488
        %v490 = vpop.f32.mrf.mxu0
        %491 = vmatprep.mubr.f32.mxu0 0.0
        %492 = vmatmul.mubr.f32.gmra.mxu0 %v314
        %v493 = vpop.f32.mrf.mxu0
        %v494 = vadd.f32 %v283, %v493
        %v495 = vpop.f32.mrf.mxu0
        %496 = vmatprep.mubr.f32.mxu0 0.0
        %497 = vmatmul.mubr.f32.gmra.mxu0 %v317
        %v498 = vpop.f32.mrf.mxu0
        %v499 = vadd.f32 %v283, %v498
        %v500 = vpop.f32.mrf.mxu0
        %501 = vmatprep.mubr.f32.mxu0 0.0
        %502 = vmatmul.mubr.f32.gmra.mxu0 %v320
        %v503 = vpop.f32.mrf.mxu0
        %v504 = vadd.f32 %v283, %v503
        %v505 = vpop.f32.mrf.mxu0
        %506 = vmatprep.mubr.f32.mxu0 0.0
        %507 = vmatmul.mubr.f32.gmra.mxu0 %v323
        %v508 = vpop.f32.mrf.mxu0
        %v509 = vadd.f32 %v283, %v508
        %v510 = vpop.f32.mrf.mxu0
        %511 = vmatprep.mubr.f32.mxu0 0.0
        %512 = vmatmul.mubr.f32.gmra.mxu0 %v326
        %v513 = vpop.f32.mrf.mxu0
        %v514 = vadd.f32 %v283, %v513
        %v515 = vpop.f32.mrf.mxu0
        %516 = vmatprep.mubr.f32.mxu0 0.0
        %517 = vmatmul.mubr.f32.gmra.mxu0 %v329
        %v518 = vpop.f32.mrf.mxu0
        %v519 = vadd.f32 %v283, %v518
        %v520 = vpop.f32.mrf.mxu0
        %521 = vmatprep.mubr.f32.mxu0 0.0
        %522 = vmatmul.mubr.f32.gmra.mxu0 %v332
        %v523 = vpop.f32.mrf.mxu0
        %v524 = vadd.f32 %v283, %v523
        %v525 = vpop.f32.mrf.mxu0
        %526 = vmatprep.mubr.f32.mxu0 0.0
        %527 = vmatmul.mubr.f32.gmra.mxu0 %v335
        %v528 = vpop.f32.mrf.mxu0
        %v529 = vadd.f32 %v283, %v528
        %v530 = vpop.f32.mrf.mxu0
        %531 = vmatprep.mubr.f32.mxu0 0.0
        %532 = vmatmul.mubr.f32.gmra.mxu0 %v338
        %v533 = vpop.f32.mrf.mxu0
        %v534 = vadd.f32 %v283, %v533
        %v535 = vpop.f32.mrf.mxu0
        %536 = vmatprep.mubr.f32.mxu0 0.0
        %537 = vmatmul.mubr.f32.gmra.mxu0 %v341
        %v538 = vpop.f32.mrf.mxu0
        %v539 = vadd.f32 %v283, %v538
        %v540 = vpop.f32.mrf.mxu0
        %541 = vmatprep.mubr.f32.mxu0 0.0
        %542 = vmatmul.mubr.f32.gmra.mxu0 %v344
        %v543 = vpop.f32.mrf.mxu0
        %v544 = vadd.f32 %v283, %v543
        %v545 = vpop.f32.mrf.mxu0
        %546 = vmatprep.mubr.f32.mxu0 0.0
        %547 = vmatmul.mubr.f32.gmra.mxu0 %v347
        %v548 = vpop.f32.mrf.mxu0
        %v549 = vadd.f32 %v283, %v548
        %v550 = vpop.f32.mrf.mxu0
        %551 = vmatprep.mubr.f32.mxu0 0.0
        %552 = vmatmul.mubr.f32.gmra.mxu0 %v350
        %v553 = vpop.f32.mrf.mxu0
        %v554 = vadd.f32 %v283, %v553
        %v555 = vpop.f32.mrf.mxu0
        %556 = vmatprep.mubr.f32.mxu0 0.0
        %557 = vmatmul.mubr.f32.gmra.mxu0 %v353
        %v558 = vpop.f32.mrf.mxu0
        %v559 = vadd.f32 %v283, %v558
        %v560 = vpop.f32.mrf.mxu0
        %561 = vmatprep.mubr.f32.mxu0 0.0
        %562 = vmatmul.mubr.f32.gmra.mxu0 %v356
        %v563 = vpop.f32.mrf.mxu0
        %v564 = vadd.f32 %v283, %v563
        %v565 = vpop.f32.mrf.mxu0
        %566 = vmatprep.mubr.f32.mxu0 0.0
        %567 = vmatmul.mubr.f32.gmra.mxu0 %v359
        %v568 = vpop.f32.mrf.mxu0
        %v569 = vadd.f32 %v283, %v568
        %v570 = vpop.f32.mrf.mxu0
        %571 = vmatprep.mubr.f32.mxu0 0.0
        %572 = vmatmul.mubr.f32.gmra.mxu0 %v362
        %v573 = vpop.f32.mrf.mxu0
        %v574 = vadd.f32 %v283, %v573
        %v575 = vpop.f32.mrf.mxu0
        %576 = vmatprep.mubr.f32.mxu0 0.0
        %577 = vmatmul.mubr.f32.gmra.mxu0 %v365
        %v578 = vpop.f32.mrf.mxu0
        %v579 = vadd.f32 %v283, %v578
        %v580 = vpop.f32.mrf.mxu0
        %581 = vmatprep.mubr.f32.mxu0 0.0
        %582 = vmatmul.mubr.f32.gmra.mxu0 %v368
        %v583 = vpop.f32.mrf.mxu0
        %v584 = vadd.f32 %v283, %v583
        %v585 = vpop.f32.mrf.mxu0
        %586 = vmatprep.mubr.f32.mxu0 0.0
        %587 = vmatmul.mubr.f32.gmra.mxu0 %v371
        %v588 = vpop.f32.mrf.mxu0
        %v589 = vadd.f32 %v283, %v588
        %v590 = vpop.f32.mrf.mxu0
        %591 = vmatprep.mubr.f32.mxu0 0.0
        %592 = vmatmul.mubr.f32.gmra.mxu0 %v374
        %v593 = vpop.f32.mrf.mxu0
        %v594 = vadd.f32 %v283, %v593
        %v595 = vpop.f32.mrf.mxu0
        %596 = vmatprep.mubr.f32.mxu0 0.0
        %597 = vmatmul.mubr.f32.gmra.mxu0 %v377
        %v598 = vpop.f32.mrf.mxu0
        %v599 = vadd.f32 %v283, %v598
        %v600 = vpop.f32.mrf.mxu0
        %601 = vmatprep.mubr.f32.mxu0 0.0
        %602 = vmatmul.mubr.f32.gmra.mxu0 %v380
        %v603 = vpop.f32.mrf.mxu0
        %v604 = vadd.f32 %v283, %v603
        %v605 = vpop.f32.mrf.mxu0
        %606 = vdwg.mxu0
        %v607 = vpack.c.bf16 %v454, %v449
        %v608 = vpack.c.bf16 %v464, %v459
        %v609 = vpack.c.bf16 %v474, %v469
        %v610 = vpack.c.bf16 %v484, %v479
        %v611 = vpack.c.bf16 %v494, %v489
        %v612 = vpack.c.bf16 %v504, %v499
        %v613 = vpack.c.bf16 %v514, %v509
        %v614 = vpack.c.bf16 %v524, %v519
        %v615 = vpack.c.bf16 %v534, %v529
        %v616 = vpack.c.bf16 %v544, %v539
        %v617 = vpack.c.bf16 %v554, %v549
        %v618 = vpack.c.bf16 %v564, %v559
        %v619 = vpack.c.bf16 %v574, %v569
        %v620 = vpack.c.bf16 %v584, %v579
        %v621 = vpack.c.bf16 %v594, %v589
        %v622 = vpack.c.bf16 %v604, %v599
        %v639 = vunpack.c.l.b16 %v607
        %v640 = vunpack.c.h.b16 %v607
        %v641 = vunpack.c.l.b16 %v608
        %v642 = vunpack.c.h.b16 %v608
        %v643 = vunpack.c.l.b16 %v609
        %v644 = vunpack.c.h.b16 %v609
        %v645 = vunpack.c.l.b16 %v610
        %v646 = vunpack.c.h.b16 %v610
        %v647 = vunpack.c.l.b16 %v611
        %v648 = vunpack.c.h.b16 %v611
        %v649 = vunpack.c.l.b16 %v612
        %v650 = vunpack.c.h.b16 %v612
        %v651 = vunpack.c.l.b16 %v613
        %v652 = vunpack.c.h.b16 %v613
        %v653 = vunpack.c.l.b16 %v614
        %v654 = vunpack.c.h.b16 %v614
        %v655 = vunpack.c.l.b16 %v615
        %v656 = vunpack.c.h.b16 %v615
        %v657 = vunpack.c.l.b16 %v616
        %v658 = vunpack.c.h.b16 %v616
        %v659 = vunpack.c.l.b16 %v617
        %v660 = vunpack.c.h.b16 %v617
        %v661 = vunpack.c.l.b16 %v618
        %v662 = vunpack.c.h.b16 %v618
        %v663 = vunpack.c.l.b16 %v619
        %v664 = vunpack.c.h.b16 %v619
        %v665 = vunpack.c.l.b16 %v620
        %v666 = vunpack.c.h.b16 %v620
        %v667 = vunpack.c.l.b16 %v621
        %v668 = vunpack.c.h.b16 %v621
        %v669 = vunpack.c.l.b16 %v622
        %v670 = vunpack.c.h.b16 %v622
        %v671 = vpack.c.b16 %v639, %v639
        %v672 = vpack.c.b16 %v640, %v640
        %v673 = vpack.c.b16 %v641, %v641
        %v674 = vpack.c.b16 %v642, %v642
        %v675 = vpack.c.b16 %v643, %v643
        %v676 = vpack.c.b16 %v644, %v644
        %v677 = vpack.c.b16 %v645, %v645
        %v678 = vpack.c.b16 %v646, %v646
        %v679 = vpack.c.b16 %v647, %v647
        %v680 = vpack.c.b16 %v648, %v648
        %v681 = vpack.c.b16 %v649, %v649
        %v682 = vpack.c.b16 %v650, %v650
        %v683 = vpack.c.b16 %v651, %v651
        %v684 = vpack.c.b16 %v652, %v652
        %v685 = vpack.c.b16 %v653, %v653
        %v686 = vpack.c.b16 %v654, %v654
        %v687 = vpack.c.b16 %v655, %v655
        %v688 = vpack.c.b16 %v656, %v656
        %v689 = vpack.c.b16 %v657, %v657
        %v690 = vpack.c.b16 %v658, %v658
        %v691 = vpack.c.b16 %v659, %v659
        %v692 = vpack.c.b16 %v660, %v660
        %v693 = vpack.c.b16 %v661, %v661
        %v694 = vpack.c.b16 %v662, %v662
        %v695 = vpack.c.b16 %v663, %v663
        %v696 = vpack.c.b16 %v664, %v664
        %v697 = vpack.c.b16 %v665, %v665
        %v698 = vpack.c.b16 %v666, %v666
        %v699 = vpack.c.b16 %v667, %v667
        %v700 = vpack.c.b16 %v668, %v668
        %v701 = vpack.c.b16 %v669, %v669
        %v702 = vpack.c.b16 %v670, %v670
        %vm735 = vcmask 781312
        %736 = vst.msk [vmem:[%s238] sm:$0xf] %vm735, %v671
        %737 = vst.msk [vmem:[%s238 + $0x4] sm:$0xf] %vm735, %v672
        %738 = vst.msk [vmem:[%s238 + $0x8] sm:$0xf] %vm735, %v673
        %739 = vst.msk [vmem:[%s238 + $0xc] sm:$0xf] %vm735, %v674
        %740 = vst.msk [vmem:[%s238 + $0x10] sm:$0xf] %vm735, %v675
        %741 = vst.msk [vmem:[%s238 + $0x14] sm:$0xf] %vm735, %v676
        %742 = vst.msk [vmem:[%s238 + $0x18] sm:$0xf] %vm735, %v677
        %743 = vst.msk [vmem:[%s238 + $0x1c] sm:$0xf] %vm735, %v678
        %744 = vst.msk [vmem:[%s238 + $0x20] sm:$0xf] %vm735, %v679
        %745 = vst.msk [vmem:[%s238 + $0x24] sm:$0xf] %vm735, %v680
        %746 = vst.msk [vmem:[%s238 + $0x28] sm:$0xf] %vm735, %v681
        %747 = vst.msk [vmem:[%s238 + $0x2c] sm:$0xf] %vm735, %v682
        %748 = vst.msk [vmem:[%s238 + $0x30] sm:$0xf] %vm735, %v683
        %749 = vst.msk [vmem:[%s238 + $0x34] sm:$0xf] %vm735, %v684
        %750 = vst.msk [vmem:[%s238 + $0x38] sm:$0xf] %vm735, %v685
        %751 = vst.msk [vmem:[%s238 + $0x3c] sm:$0xf] %vm735, %v686
        %752 = vst.msk [vmem:[%s238 + $0x40] sm:$0xf] %vm735, %v687
        %753 = vst.msk [vmem:[%s238 + $0x44] sm:$0xf] %vm735, %v688
        %754 = vst.msk [vmem:[%s238 + $0x48] sm:$0xf] %vm735, %v689
        %755 = vst.msk [vmem:[%s238 + $0x4c] sm:$0xf] %vm735, %v690
        %756 = vst.msk [vmem:[%s238 + $0x50] sm:$0xf] %vm735, %v691
        %757 = vst.msk [vmem:[%s238 + $0x54] sm:$0xf] %vm735, %v692
        %758 = vst.msk [vmem:[%s238 + $0x58] sm:$0xf] %vm735, %v693
        %759 = vst.msk [vmem:[%s238 + $0x5c] sm:$0xf] %vm735, %v694
        %760 = vst.msk [vmem:[%s238 + $0x60] sm:$0xf] %vm735, %v695
        %761 = vst.msk [vmem:[%s238 + $0x64] sm:$0xf] %vm735, %v696
        %762 = vst.msk [vmem:[%s238 + $0x68] sm:$0xf] %vm735, %v697
        %763 = vst.msk [vmem:[%s238 + $0x6c] sm:$0xf] %vm735, %v698
        %764 = vst.msk [vmem:[%s238 + $0x70] sm:$0xf] %vm735, %v699
        %765 = vst.msk [vmem:[%s238 + $0x74] sm:$0xf] %vm735, %v700
        %766 = vst.msk [vmem:[%s238 + $0x78] sm:$0xf] %vm735, %v701
        %767 = vst.msk [vmem:[%s238 + $0x7c] sm:$0xf] %vm735, %v702
        %vm800 = vcmask 1040384
        %v801 = vrot.slane %v449, 7
        %v802 = vrot.slane %v454, 7
        %v803 = vsel %vm800, %v801, %v802
        %v804 = vrot.slane %v459, 7
        %v805 = vrot.slane %v464, 7
        %v806 = vsel %vm800, %v804, %v805
        %v807 = vrot.slane %v469, 7
        %v808 = vrot.slane %v474, 7
        %v809 = vsel %vm800, %v807, %v808
        %v810 = vrot.slane %v479, 7
        %v811 = vrot.slane %v484, 7
        %v812 = vsel %vm800, %v810, %v811
        %v813 = vrot.slane %v489, 7
        %v814 = vrot.slane %v494, 7
        %v815 = vsel %vm800, %v813, %v814
        %v816 = vrot.slane %v499, 7
        %v817 = vrot.slane %v504, 7
        %v818 = vsel %vm800, %v816, %v817
        %v819 = vrot.slane %v509, 7
        %v820 = vrot.slane %v514, 7
        %v821 = vsel %vm800, %v819, %v820
        %v822 = vrot.slane %v519, 7
        %v823 = vrot.slane %v524, 7
        %v824 = vsel %vm800, %v822, %v823
        %v825 = vrot.slane %v529, 7
        %v826 = vrot.slane %v534, 7
        %v827 = vsel %vm800, %v825, %v826
        %v828 = vrot.slane %v539, 7
        %v829 = vrot.slane %v544, 7
        %v830 = vsel %vm800, %v828, %v829
        %v831 = vrot.slane %v549, 7
        %v832 = vrot.slane %v554, 7
        %v833 = vsel %vm800, %v831, %v832
        %v834 = vrot.slane %v559, 7
        %v835 = vrot.slane %v564, 7
        %v836 = vsel %vm800, %v834, %v835
        %v837 = vrot.slane %v569, 7
        %v838 = vrot.slane %v574, 7
        %v839 = vsel %vm800, %v837, %v838
        %v840 = vrot.slane %v579, 7
        %v841 = vrot.slane %v584, 7
        %v842 = vsel %vm800, %v840, %v841
        %v843 = vrot.slane %v589, 7
        %v844 = vrot.slane %v594, 7
        %v845 = vsel %vm800, %v843, %v844
        %v846 = vrot.slane %v599, 7
        %v847 = vrot.slane %v604, 7
        %v848 = vsel %vm800, %v846, %v847
        %v881 = vsel %vm800, %v449, %v801
        %v882 = vsel %vm800, %v459, %v804
        %v883 = vsel %vm800, %v469, %v807
        %v884 = vsel %vm800, %v479, %v810
        %v885 = vsel %vm800, %v489, %v813
        %v886 = vsel %vm800, %v499, %v816
        %v887 = vsel %vm800, %v509, %v819
        %v888 = vsel %vm800, %v519, %v822
        %v889 = vsel %vm800, %v529, %v825
        %v890 = vsel %vm800, %v539, %v828
        %v891 = vsel %vm800, %v549, %v831
        %v892 = vsel %vm800, %v559, %v834
        %v893 = vsel %vm800, %v569, %v837
        %v894 = vsel %vm800, %v579, %v840
        %v895 = vsel %vm800, %v589, %v843
        %v896 = vsel %vm800, %v599, %v846
        %vm897 = vcmask 1046528
        %v898 = vrot.slane %v449, 1
        %v899 = vrot.slane %v454, 1
        %v900 = vsel %vm897, %v898, %v899
        %v901 = vrot.slane %v459, 1
        %v902 = vrot.slane %v464, 1
        %v903 = vsel %vm897, %v901, %v902
        %v904 = vrot.slane %v469, 1
        %v905 = vrot.slane %v474, 1
        %v906 = vsel %vm897, %v904, %v905
        %v907 = vrot.slane %v479, 1
        %v908 = vrot.slane %v484, 1
        %v909 = vsel %vm897, %v907, %v908
        %v910 = vrot.slane %v489, 1
        %v911 = vrot.slane %v494, 1
        %v912 = vsel %vm897, %v910, %v911
        %v913 = vrot.slane %v499, 1
        %v914 = vrot.slane %v504, 1
        %v915 = vsel %vm897, %v913, %v914
        %v916 = vrot.slane %v509, 1
        %v917 = vrot.slane %v514, 1
        %v918 = vsel %vm897, %v916, %v917
        %v919 = vrot.slane %v519, 1
        %v920 = vrot.slane %v524, 1
        %v921 = vsel %vm897, %v919, %v920
        %v922 = vrot.slane %v529, 1
        %v923 = vrot.slane %v534, 1
        %v924 = vsel %vm897, %v922, %v923
        %v925 = vrot.slane %v539, 1
        %v926 = vrot.slane %v544, 1
        %v927 = vsel %vm897, %v925, %v926
        %v928 = vrot.slane %v549, 1
        %v929 = vrot.slane %v554, 1
        %v930 = vsel %vm897, %v928, %v929
        %v931 = vrot.slane %v559, 1
        %v932 = vrot.slane %v564, 1
        %v933 = vsel %vm897, %v931, %v932
        %v934 = vrot.slane %v569, 1
        %v935 = vrot.slane %v574, 1
        %v936 = vsel %vm897, %v934, %v935
        %v937 = vrot.slane %v579, 1
        %v938 = vrot.slane %v584, 1
        %v939 = vsel %vm897, %v937, %v938
        %v940 = vrot.slane %v589, 1
        %v941 = vrot.slane %v594, 1
        %v942 = vsel %vm897, %v940, %v941
        %v943 = vrot.slane %v599, 1
        %v944 = vrot.slane %v604, 1
        %v945 = vsel %vm897, %v943, %v944
        %v978 = vsel %vm897, %v899, %v454
        %v979 = vsel %vm897, %v902, %v464
        %v980 = vsel %vm897, %v905, %v474
        %v981 = vsel %vm897, %v908, %v484
        %v982 = vsel %vm897, %v911, %v494
        %v983 = vsel %vm897, %v914, %v504
        %v984 = vsel %vm897, %v917, %v514
        %v985 = vsel %vm897, %v920, %v524
        %v986 = vsel %vm897, %v923, %v534
        %v987 = vsel %vm897, %v926, %v544
        %v988 = vsel %vm897, %v929, %v554
        %v989 = vsel %vm897, %v932, %v564
        %v990 = vsel %vm897, %v935, %v574
        %v991 = vsel %vm897, %v938, %v584
        %v992 = vsel %vm897, %v941, %v594
        %v993 = vsel %vm897, %v944, %v604
        %vm994 = vcmask 64512
        %v995 = vsel %vm994, %v449, %v459
        %v996 = vsel %vm994, %v454, %v464
        %v997 = vsel %vm994, %v449, %v469
        %v998 = vsel %vm994, %v454, %v474
        %v999 = vsel %vm994, %v459, %v479
        %v1000 = vsel %vm994, %v464, %v484
        %v1001 = vsel %vm994, %v469, %v489
        %v1002 = vsel %vm994, %v474, %v494
        %v1003 = vsel %vm994, %v479, %v499
        %v1004 = vsel %vm994, %v484, %v504
        %v1005 = vsel %vm994, %v489, %v509
        %v1006 = vsel %vm994, %v494, %v514
        %v1007 = vsel %vm994, %v499, %v519
        %v1008 = vsel %vm994, %v504, %v524
        %v1009 = vsel %vm994, %v509, %v529
        %v1010 = vsel %vm994, %v514, %v534
        %v1011 = vsel %vm994, %v519, %v539
        %v1012 = vsel %vm994, %v524, %v544
        %v1013 = vsel %vm994, %v529, %v549
        %v1014 = vsel %vm994, %v534, %v554
        %v1015 = vsel %vm994, %v539, %v559
        %v1016 = vsel %vm994, %v544, %v564
        %v1017 = vsel %vm994, %v549, %v569
        %v1018 = vsel %vm994, %v554, %v574
        %v1019 = vsel %vm994, %v559, %v579
        %v1020 = vsel %vm994, %v564, %v584
        %v1021 = vsel %vm994, %v569, %v589
        %v1022 = vsel %vm994, %v574, %v594
        %v1023 = vsel %vm994, %v579, %v599
        %v1024 = vsel %vm994, %v584, %v604
        %v1025 = vsel %vm994, %v589, %v599
        %v1026 = vsel %vm994, %v594, %v604
        %vm1027 = vcmask 130048
        %v1028 = vsel %vm1027, %v995, %v881
        %v1029 = vsel %vm1027, %v996, %v803
        %v1030 = vsel %vm1027, %v997, %v882
        %v1031 = vsel %vm1027, %v998, %v806
        %v1032 = vsel %vm1027, %v999, %v883
        %v1033 = vsel %vm1027, %v1000, %v809
        %v1034 = vsel %vm1027, %v1001, %v884
        %v1035 = vsel %vm1027, %v1002, %v812
        %v1036 = vsel %vm1027, %v1003, %v885
        %v1037 = vsel %vm1027, %v1004, %v815
        %v1038 = vsel %vm1027, %v1005, %v886
        %v1039 = vsel %vm1027, %v1006, %v818
        %v1040 = vsel %vm1027, %v1007, %v887
        %v1041 = vsel %vm1027, %v1008, %v821
        %v1042 = vsel %vm1027, %v1009, %v888
        %v1043 = vsel %vm1027, %v1010, %v824
        %v1044 = vsel %vm1027, %v1011, %v889
        %v1045 = vsel %vm1027, %v1012, %v827
        %v1046 = vsel %vm1027, %v1013, %v890
        %v1047 = vsel %vm1027, %v1014, %v830
        %v1048 = vsel %vm1027, %v1015, %v891
        %v1049 = vsel %vm1027, %v1016, %v833
        %v1050 = vsel %vm1027, %v1017, %v892
        %v1051 = vsel %vm1027, %v1018, %v836
        %v1052 = vsel %vm1027, %v1019, %v893
        %v1053 = vsel %vm1027, %v1020, %v839
        %v1054 = vsel %vm1027, %v1021, %v894
        %v1055 = vsel %vm1027, %v1022, %v842
        %v1056 = vsel %vm1027, %v1023, %v895
        %v1057 = vsel %vm1027, %v1024, %v845
        %v1058 = vsel %vm1027, %v1025, %v896
        %v1059 = vsel %vm1027, %v1026, %v848
        %vm1060 = vcmask 195584
        %v1061 = vsel %vm1060, %v1028, %v900
        %v1062 = vsel %vm1060, %v1029, %v978
        %v1063 = vsel %vm1060, %v1030, %v903
        %v1064 = vsel %vm1060, %v1031, %v979
        %v1065 = vsel %vm1060, %v1032, %v906
        %v1066 = vsel %vm1060, %v1033, %v980
        %v1067 = vsel %vm1060, %v1034, %v909
        %v1068 = vsel %vm1060, %v1035, %v981
        %v1069 = vsel %vm1060, %v1036, %v912
        %v1070 = vsel %vm1060, %v1037, %v982
        %v1071 = vsel %vm1060, %v1038, %v915
        %v1072 = vsel %vm1060, %v1039, %v983
        %v1073 = vsel %vm1060, %v1040, %v918
        %v1074 = vsel %vm1060, %v1041, %v984
        %v1075 = vsel %vm1060, %v1042, %v921
        %v1076 = vsel %vm1060, %v1043, %v985
        %v1077 = vsel %vm1060, %v1044, %v924
        %v1078 = vsel %vm1060, %v1045, %v986
        %v1079 = vsel %vm1060, %v1046, %v927
        %v1080 = vsel %vm1060, %v1047, %v987
        %v1081 = vsel %vm1060, %v1048, %v930
        %v1082 = vsel %vm1060, %v1049, %v988
        %v1083 = vsel %vm1060, %v1050, %v933
        %v1084 = vsel %vm1060, %v1051, %v989
        %v1085 = vsel %vm1060, %v1052, %v936
        %v1086 = vsel %vm1060, %v1053, %v990
        %v1087 = vsel %vm1060, %v1054, %v939
        %v1088 = vsel %vm1060, %v1055, %v991
        %v1089 = vsel %vm1060, %v1056, %v942
        %v1090 = vsel %vm1060, %v1057, %v992
        %v1091 = vsel %vm1060, %v1058, %v945
        %v1092 = vsel %vm1060, %v1059, %v993
        %1109 = vrot.lane.b32.xlu0 %v881, 96
        %v1110 = vpop.permute.xlu0 %1109
        %1111 = vrot.lane.b32.xlu0 %v803, 96
        %v1112 = vpop.permute.xlu0 %1111
        %1113 = vrot.lane.b32.xlu0 %v882, 96
        %v1114 = vpop.permute.xlu0 %1113
        %1115 = vrot.lane.b32.xlu0 %v806, 96
        %v1116 = vpop.permute.xlu0 %1115
        %1117 = vrot.lane.b32.xlu0 %v883, 96
        %v1118 = vpop.permute.xlu0 %1117
        %1119 = vrot.lane.b32.xlu0 %v809, 96
        %v1120 = vpop.permute.xlu0 %1119
        %1121 = vrot.lane.b32.xlu0 %v884, 96
        %v1122 = vpop.permute.xlu0 %1121
        %1123 = vrot.lane.b32.xlu0 %v812, 96
        %v1124 = vpop.permute.xlu0 %1123
        %1125 = vrot.lane.b32.xlu0 %v885, 96
        %v1126 = vpop.permute.xlu0 %1125
        %1127 = vrot.lane.b32.xlu0 %v815, 96
        %v1128 = vpop.permute.xlu0 %1127
        %1129 = vrot.lane.b32.xlu0 %v886, 96
        %v1130 = vpop.permute.xlu0 %1129
        %1131 = vrot.lane.b32.xlu0 %v818, 96
        %v1132 = vpop.permute.xlu0 %1131
        %1133 = vrot.lane.b32.xlu0 %v887, 96
        %v1134 = vpop.permute.xlu0 %1133
        %1135 = vrot.lane.b32.xlu0 %v821, 96
        %v1136 = vpop.permute.xlu0 %1135
        %1137 = vrot.lane.b32.xlu0 %v888, 96
        %v1138 = vpop.permute.xlu0 %1137
        %1139 = vrot.lane.b32.xlu0 %v824, 96
        %v1140 = vpop.permute.xlu0 %1139
        %1141 = vrot.lane.b32.xlu0 %v889, 96
        %v1142 = vpop.permute.xlu0 %1141
        %1143 = vrot.lane.b32.xlu0 %v827, 96
        %v1144 = vpop.permute.xlu0 %1143
        %1145 = vrot.lane.b32.xlu0 %v890, 96
        %v1146 = vpop.permute.xlu0 %1145
        %1147 = vrot.lane.b32.xlu0 %v830, 96
        %v1148 = vpop.permute.xlu0 %1147
        %1149 = vrot.lane.b32.xlu0 %v891, 96
        %v1150 = vpop.permute.xlu0 %1149
        %1151 = vrot.lane.b32.xlu0 %v833, 96
        %v1152 = vpop.permute.xlu0 %1151
        %1153 = vrot.lane.b32.xlu0 %v892, 96
        %v1154 = vpop.permute.xlu0 %1153
        %1155 = vrot.lane.b32.xlu0 %v836, 96
        %v1156 = vpop.permute.xlu0 %1155
        %1157 = vrot.lane.b32.xlu0 %v893, 96
        %v1158 = vpop.permute.xlu0 %1157
        %1159 = vrot.lane.b32.xlu0 %v839, 96
        %v1160 = vpop.permute.xlu0 %1159
        %1161 = vrot.lane.b32.xlu0 %v894, 96
        %v1162 = vpop.permute.xlu0 %1161
        %1163 = vrot.lane.b32.xlu0 %v842, 96
        %v1164 = vpop.permute.xlu0 %1163
        %1165 = vrot.lane.b32.xlu0 %v895, 96
        %v1166 = vpop.permute.xlu0 %1165
        %1167 = vrot.lane.b32.xlu0 %v845, 96
        %v1168 = vpop.permute.xlu0 %1167
        %1169 = vrot.lane.b32.xlu0 %v896, 96
        %v1170 = vpop.permute.xlu0 %1169
        %1171 = vrot.lane.b32.xlu0 %v848, 96
        %v1172 = vpop.permute.xlu0 %1171
        %1221 = vrot.lane.b32.xlu0 %v900, 96
        %v1222 = vpop.permute.xlu0 %1221
        %1223 = vrot.lane.b32.xlu0 %v978, 96
        %v1224 = vpop.permute.xlu0 %1223
        %1225 = vrot.lane.b32.xlu0 %v903, 96
        %v1226 = vpop.permute.xlu0 %1225
        %1227 = vrot.lane.b32.xlu0 %v979, 96
        %v1228 = vpop.permute.xlu0 %1227
        %1229 = vrot.lane.b32.xlu0 %v906, 96
        %v1230 = vpop.permute.xlu0 %1229
        %1231 = vrot.lane.b32.xlu0 %v980, 96
        %v1232 = vpop.permute.xlu0 %1231
        %1233 = vrot.lane.b32.xlu0 %v909, 96
        %v1234 = vpop.permute.xlu0 %1233
        %1235 = vrot.lane.b32.xlu0 %v981, 96
        %v1236 = vpop.permute.xlu0 %1235
        %1237 = vrot.lane.b32.xlu0 %v912, 96
        %v1238 = vpop.permute.xlu0 %1237
        %1239 = vrot.lane.b32.xlu0 %v982, 96
        %v1240 = vpop.permute.xlu0 %1239
        %1241 = vrot.lane.b32.xlu0 %v915, 96
        %v1242 = vpop.permute.xlu0 %1241
        %1243 = vrot.lane.b32.xlu0 %v983, 96
        %v1244 = vpop.permute.xlu0 %1243
        %1245 = vrot.lane.b32.xlu0 %v918, 96
        %v1246 = vpop.permute.xlu0 %1245
        %1247 = vrot.lane.b32.xlu0 %v984, 96
        %v1248 = vpop.permute.xlu0 %1247
        %1249 = vrot.lane.b32.xlu0 %v921, 96
        %v1250 = vpop.permute.xlu0 %1249
        %1251 = vrot.lane.b32.xlu0 %v985, 96
        %v1252 = vpop.permute.xlu0 %1251
        %1253 = vrot.lane.b32.xlu0 %v924, 96
        %v1254 = vpop.permute.xlu0 %1253
        %1255 = vrot.lane.b32.xlu0 %v986, 96
        %v1256 = vpop.permute.xlu0 %1255
        %1257 = vrot.lane.b32.xlu0 %v927, 96
        %v1258 = vpop.permute.xlu0 %1257
        %1259 = vrot.lane.b32.xlu0 %v987, 96
        %v1260 = vpop.permute.xlu0 %1259
        %1261 = vrot.lane.b32.xlu0 %v930, 96
        %v1262 = vpop.permute.xlu0 %1261
        %1263 = vrot.lane.b32.xlu0 %v988, 96
        %v1264 = vpop.permute.xlu0 %1263
        %1265 = vrot.lane.b32.xlu0 %v933, 96
        %v1266 = vpop.permute.xlu0 %1265
        %1267 = vrot.lane.b32.xlu0 %v989, 96
        %v1268 = vpop.permute.xlu0 %1267
        %1269 = vrot.lane.b32.xlu0 %v936, 96
        %v1270 = vpop.permute.xlu0 %1269
        %1271 = vrot.lane.b32.xlu0 %v990, 96
        %v1272 = vpop.permute.xlu0 %1271
        %1273 = vrot.lane.b32.xlu0 %v939, 96
        %v1274 = vpop.permute.xlu0 %1273
        %1275 = vrot.lane.b32.xlu0 %v991, 96
        %v1276 = vpop.permute.xlu0 %1275
        %1277 = vrot.lane.b32.xlu0 %v942, 96
        %v1278 = vpop.permute.xlu0 %1277
        %1279 = vrot.lane.b32.xlu0 %v992, 96
        %v1280 = vpop.permute.xlu0 %1279
        %1281 = vrot.lane.b32.xlu0 %v945, 96
        %v1282 = vpop.permute.xlu0 %1281
        %1283 = vrot.lane.b32.xlu0 %v993, 96
        %v1284 = vpop.permute.xlu0 %1283
        %1317 = vrot.lane.b32.xlu0 %v449, 96
        %v1318 = vpop.permute.xlu0 %1317
        %1319 = vrot.lane.b32.xlu0 %v454, 96
        %v1320 = vpop.permute.xlu0 %1319
        %1321 = vrot.lane.b32.xlu0 %v459, 96
        %v1322 = vpop.permute.xlu0 %1321
        %1323 = vrot.lane.b32.xlu0 %v464, 96
        %v1324 = vpop.permute.xlu0 %1323
        %1325 = vrot.lane.b32.xlu0 %v469, 96
        %v1326 = vpop.permute.xlu0 %1325
        %1327 = vrot.lane.b32.xlu0 %v474, 96
        %v1328 = vpop.permute.xlu0 %1327
        %1329 = vrot.lane.b32.xlu0 %v479, 96
        %v1330 = vpop.permute.xlu0 %1329
        %1331 = vrot.lane.b32.xlu0 %v484, 96
        %v1332 = vpop.permute.xlu0 %1331
        %1333 = vrot.lane.b32.xlu0 %v489, 96
        %v1334 = vpop.permute.xlu0 %1333
        %1335 = vrot.lane.b32.xlu0 %v494, 96
        %v1336 = vpop.permute.xlu0 %1335
        %1337 = vrot.lane.b32.xlu0 %v499, 96
        %v1338 = vpop.permute.xlu0 %1337
        %1339 = vrot.lane.b32.xlu0 %v504, 96
        %v1340 = vpop.permute.xlu0 %1339
        %1341 = vrot.lane.b32.xlu0 %v509, 96
        %v1342 = vpop.permute.xlu0 %1341
        %1343 = vrot.lane.b32.xlu0 %v514, 96
        %v1344 = vpop.permute.xlu0 %1343
        %1345 = vrot.lane.b32.xlu0 %v519, 96
        %v1346 = vpop.permute.xlu0 %1345
        %1347 = vrot.lane.b32.xlu0 %v524, 96
        %v1348 = vpop.permute.xlu0 %1347
        %1349 = vrot.lane.b32.xlu0 %v529, 96
        %v1350 = vpop.permute.xlu0 %1349
        %1351 = vrot.lane.b32.xlu0 %v534, 96
        %v1352 = vpop.permute.xlu0 %1351
        %1353 = vrot.lane.b32.xlu0 %v539, 96
        %v1354 = vpop.permute.xlu0 %1353
        %1355 = vrot.lane.b32.xlu0 %v544, 96
        %v1356 = vpop.permute.xlu0 %1355
        %1357 = vrot.lane.b32.xlu0 %v549, 96
        %v1358 = vpop.permute.xlu0 %1357
        %1359 = vrot.lane.b32.xlu0 %v554, 96
        %v1360 = vpop.permute.xlu0 %1359
        %1361 = vrot.lane.b32.xlu0 %v559, 96
        %v1362 = vpop.permute.xlu0 %1361
        %1363 = vrot.lane.b32.xlu0 %v564, 96
        %v1364 = vpop.permute.xlu0 %1363
        %1365 = vrot.lane.b32.xlu0 %v569, 96
        %v1366 = vpop.permute.xlu0 %1365
        %1367 = vrot.lane.b32.xlu0 %v574, 96
        %v1368 = vpop.permute.xlu0 %1367
        %1369 = vrot.lane.b32.xlu0 %v579, 96
        %v1370 = vpop.permute.xlu0 %1369
        %1371 = vrot.lane.b32.xlu0 %v584, 96
        %v1372 = vpop.permute.xlu0 %1371
        %1373 = vrot.lane.b32.xlu0 %v589, 96
        %v1374 = vpop.permute.xlu0 %1373
        %1375 = vrot.lane.b32.xlu0 %v594, 96
        %v1376 = vpop.permute.xlu0 %1375
        %1407 = vrot.lane.b32.xlu0 %v599, 96
        %v1408 = vpop.permute.xlu0 %1407
        %1409 = vrot.lane.b32.xlu0 %v604, 96
        %v1410 = vpop.permute.xlu0 %1409
        %v1413 = vsel %vm994, %v1110, %v1222
        %v1414 = vsel %vm994, %v1112, %v1224
        %v1415 = vsel %vm994, %v1114, %v1226
        %v1416 = vsel %vm994, %v1116, %v1228
        %v1417 = vsel %vm994, %v1118, %v1230
        %v1418 = vsel %vm994, %v1120, %v1232
        %v1419 = vsel %vm994, %v1122, %v1234
        %v1420 = vsel %vm994, %v1124, %v1236
        %v1421 = vsel %vm994, %v1126, %v1238
        %v1422 = vsel %vm994, %v1128, %v1240
        %v1423 = vsel %vm994, %v1130, %v1242
        %v1424 = vsel %vm994, %v1132, %v1244
        %v1425 = vsel %vm994, %v1134, %v1246
        %v1426 = vsel %vm994, %v1136, %v1248
        %v1427 = vsel %vm994, %v1138, %v1250
        %v1428 = vsel %vm994, %v1140, %v1252
        %v1429 = vsel %vm994, %v1142, %v1254
        %v1430 = vsel %vm994, %v1144, %v1256
        %v1431 = vsel %vm994, %v1146, %v1258
        %v1432 = vsel %vm994, %v1148, %v1260
        %v1433 = vsel %vm994, %v1150, %v1262
        %v1434 = vsel %vm994, %v1152, %v1264
        %v1435 = vsel %vm994, %v1154, %v1266
        %v1436 = vsel %vm994, %v1156, %v1268
        %v1437 = vsel %vm994, %v1158, %v1270
        %v1438 = vsel %vm994, %v1160, %v1272
        %v1439 = vsel %vm994, %v1162, %v1274
        %v1440 = vsel %vm994, %v1164, %v1276
        %v1441 = vsel %vm994, %v1166, %v1278
        %v1442 = vsel %vm994, %v1168, %v1280
        %v1443 = vsel %vm994, %v1170, %v1282
        %v1444 = vsel %vm994, %v1172, %v1284
        %v1445 = vsel %vm1027, %v1413, %v1318
        %v1446 = vsel %vm1027, %v1414, %v1320
        %v1447 = vsel %vm1027, %v1415, %v1318
        %v1448 = vsel %vm1027, %v1416, %v1320
        %v1449 = vsel %vm1027, %v1417, %v1322
        %v1450 = vsel %vm1027, %v1418, %v1324
        %v1451 = vsel %vm1027, %v1419, %v1326
        %v1452 = vsel %vm1027, %v1420, %v1328
        %v1453 = vsel %vm1027, %v1421, %v1330
        %v1454 = vsel %vm1027, %v1422, %v1332
        %v1455 = vsel %vm1027, %v1423, %v1334
        %v1456 = vsel %vm1027, %v1424, %v1336
        %v1457 = vsel %vm1027, %v1425, %v1338
        %v1458 = vsel %vm1027, %v1426, %v1340
        %v1459 = vsel %vm1027, %v1427, %v1342
        %v1460 = vsel %vm1027, %v1428, %v1344
        %v1461 = vsel %vm1027, %v1429, %v1346
        %v1462 = vsel %vm1027, %v1430, %v1348
        %v1463 = vsel %vm1027, %v1431, %v1350
        %v1464 = vsel %vm1027, %v1432, %v1352
        %v1465 = vsel %vm1027, %v1433, %v1354
        %v1466 = vsel %vm1027, %v1434, %v1356
        %v1467 = vsel %vm1027, %v1435, %v1358
        %v1468 = vsel %vm1027, %v1436, %v1360
        %v1469 = vsel %vm1027, %v1437, %v1362
        %v1470 = vsel %vm1027, %v1438, %v1364
        %v1471 = vsel %vm1027, %v1439, %v1366
        %v1472 = vsel %vm1027, %v1440, %v1368
        %v1473 = vsel %vm1027, %v1441, %v1370
        %v1474 = vsel %vm1027, %v1442, %v1372
        %v1475 = vsel %vm1027, %v1443, %v1374
        %v1476 = vsel %vm1027, %v1444, %v1376
        %v1477 = vsel %vm1060, %v1445, %v1322
        %v1478 = vsel %vm1060, %v1446, %v1324
        %v1479 = vsel %vm1060, %v1447, %v1326
        %v1480 = vsel %vm1060, %v1448, %v1328
        %v1481 = vsel %vm1060, %v1449, %v1330
        %v1482 = vsel %vm1060, %v1450, %v1332
        %v1483 = vsel %vm1060, %v1451, %v1334
        %v1484 = vsel %vm1060, %v1452, %v1336
        %v1485 = vsel %vm1060, %v1453, %v1338
        %v1486 = vsel %vm1060, %v1454, %v1340
        %v1487 = vsel %vm1060, %v1455, %v1342
        %v1488 = vsel %vm1060, %v1456, %v1344
        %v1489 = vsel %vm1060, %v1457, %v1346
        %v1490 = vsel %vm1060, %v1458, %v1348
        %v1491 = vsel %vm1060, %v1459, %v1350
        %v1492 = vsel %vm1060, %v1460, %v1352
        %v1493 = vsel %vm1060, %v1461, %v1354
        %v1494 = vsel %vm1060, %v1462, %v1356
        %v1495 = vsel %vm1060, %v1463, %v1358
        %v1496 = vsel %vm1060, %v1464, %v1360
        %v1497 = vsel %vm1060, %v1465, %v1362
        %v1498 = vsel %vm1060, %v1466, %v1364
        %v1499 = vsel %vm1060, %v1467, %v1366
        %v1500 = vsel %vm1060, %v1468, %v1368
        %v1501 = vsel %vm1060, %v1469, %v1370
        %v1502 = vsel %vm1060, %v1470, %v1372
        %v1503 = vsel %vm1060, %v1471, %v1374
        %v1504 = vsel %vm1060, %v1472, %v1376
        %v1505 = vsel %vm1060, %v1473, %v1408
        %v1506 = vsel %vm1060, %v1474, %v1410
        %v1507 = vsel %vm1060, %v1475, %v1408
        %v1508 = vsel %vm1060, %v1476, %v1410
        %v1509 = vadd.f32 %v1061, %v1477
        %v1510 = vadd.f32 %v1062, %v1478
        %v1511 = vadd.f32 %v1063, %v1479
        %v1512 = vadd.f32 %v1064, %v1480
        %v1513 = vadd.f32 %v1065, %v1481
        %v1514 = vadd.f32 %v1066, %v1482
        %v1515 = vadd.f32 %v1067, %v1483
        %v1516 = vadd.f32 %v1068, %v1484
        %v1517 = vadd.f32 %v1069, %v1485
        %v1518 = vadd.f32 %v1070, %v1486
        %v1519 = vadd.f32 %v1071, %v1487
        %v1520 = vadd.f32 %v1072, %v1488
        %v1521 = vadd.f32 %v1073, %v1489
        %v1522 = vadd.f32 %v1074, %v1490
        %v1523 = vadd.f32 %v1075, %v1491
        %v1524 = vadd.f32 %v1076, %v1492
        %v1525 = vadd.f32 %v1077, %v1493
        %v1526 = vadd.f32 %v1078, %v1494
        %v1527 = vadd.f32 %v1079, %v1495
        %v1528 = vadd.f32 %v1080, %v1496
        %v1529 = vadd.f32 %v1081, %v1497
        %v1530 = vadd.f32 %v1082, %v1498
        %v1531 = vadd.f32 %v1083, %v1499
        %v1532 = vadd.f32 %v1084, %v1500
        %v1533 = vadd.f32 %v1085, %v1501
        %v1534 = vadd.f32 %v1086, %v1502
        %v1535 = vadd.f32 %v1087, %v1503
        %v1536 = vadd.f32 %v1088, %v1504
        %v1537 = vadd.f32 %v1089, %v1505
        %v1538 = vadd.f32 %v1090, %v1506
        %v1539 = vadd.f32 %v1091, %v1507
        %v1540 = vadd.f32 %v1092, %v1508
        %1541 = vrot.lane.b32.xlu0 %v449, 64
        %v1542 = vpop.permute.xlu0 %1541
        %1543 = vrot.lane.b32.xlu0 %v454, 64
        %v1544 = vpop.permute.xlu0 %1543
        %1545 = vrot.lane.b32.xlu0 %v459, 64
        %v1546 = vpop.permute.xlu0 %1545
        %1547 = vrot.lane.b32.xlu0 %v464, 64
        %v1548 = vpop.permute.xlu0 %1547
        %1549 = vrot.lane.b32.xlu0 %v469, 64
        %v1550 = vpop.permute.xlu0 %1549
        %1551 = vrot.lane.b32.xlu0 %v474, 64
        %v1552 = vpop.permute.xlu0 %1551
        %1553 = vrot.lane.b32.xlu0 %v479, 64
        %v1554 = vpop.permute.xlu0 %1553
        %1555 = vrot.lane.b32.xlu0 %v484, 64
        %v1556 = vpop.permute.xlu0 %1555
        %1557 = vrot.lane.b32.xlu0 %v489, 64
        %v1558 = vpop.permute.xlu0 %1557
        %1559 = vrot.lane.b32.xlu0 %v494, 64
        %v1560 = vpop.permute.xlu0 %1559
        %1561 = vrot.lane.b32.xlu0 %v499, 64
        %v1562 = vpop.permute.xlu0 %1561
        %1563 = vrot.lane.b32.xlu0 %v504, 64
        %v1564 = vpop.permute.xlu0 %1563
        %1565 = vrot.lane.b32.xlu0 %v509, 64
        %v1566 = vpop.permute.xlu0 %1565
        %1567 = vrot.lane.b32.xlu0 %v514, 64
        %v1568 = vpop.permute.xlu0 %1567
        %1569 = vrot.lane.b32.xlu0 %v519, 64
        %v1570 = vpop.permute.xlu0 %1569
        %1571 = vrot.lane.b32.xlu0 %v524, 64
        %v1572 = vpop.permute.xlu0 %1571
        %1573 = vrot.lane.b32.xlu0 %v529, 64
        %v1574 = vpop.permute.xlu0 %1573
        %1575 = vrot.lane.b32.xlu0 %v534, 64
        %v1576 = vpop.permute.xlu0 %1575
        %1577 = vrot.lane.b32.xlu0 %v539, 64
        %v1578 = vpop.permute.xlu0 %1577
        %1579 = vrot.lane.b32.xlu0 %v544, 64
        %v1580 = vpop.permute.xlu0 %1579
        %1581 = vrot.lane.b32.xlu0 %v549, 64
        %v1582 = vpop.permute.xlu0 %1581
        %1583 = vrot.lane.b32.xlu0 %v554, 64
        %v1584 = vpop.permute.xlu0 %1583
        %1585 = vrot.lane.b32.xlu0 %v559, 64
        %v1586 = vpop.permute.xlu0 %1585
        %1587 = vrot.lane.b32.xlu0 %v564, 64
        %v1588 = vpop.permute.xlu0 %1587
        %1589 = vrot.lane.b32.xlu0 %v569, 64
        %v1590 = vpop.permute.xlu0 %1589
        %1591 = vrot.lane.b32.xlu0 %v574, 64
        %v1592 = vpop.permute.xlu0 %1591
        %1593 = vrot.lane.b32.xlu0 %v579, 64
        %v1594 = vpop.permute.xlu0 %1593
        %1595 = vrot.lane.b32.xlu0 %v584, 64
        %v1596 = vpop.permute.xlu0 %1595
        %1597 = vrot.lane.b32.xlu0 %v589, 64
        %v1598 = vpop.permute.xlu0 %1597
        %1599 = vrot.lane.b32.xlu0 %v594, 64
        %v1600 = vpop.permute.xlu0 %1599
        %1601 = vrot.lane.b32.xlu0 %v599, 64
        %v1602 = vpop.permute.xlu0 %1601
        %1603 = vrot.lane.b32.xlu0 %v604, 64
        %v1604 = vpop.permute.xlu0 %1603
        %v1637 = vadd.f32 %v1509, %v1542
        %v1638 = vadd.f32 %v1510, %v1544
        %v1639 = vadd.f32 %v1511, %v1546
        %v1640 = vadd.f32 %v1512, %v1548
        %v1641 = vadd.f32 %v1513, %v1550
        %v1642 = vadd.f32 %v1514, %v1552
        %v1643 = vadd.f32 %v1515, %v1554
        %v1644 = vadd.f32 %v1516, %v1556
        %v1645 = vadd.f32 %v1517, %v1558
        %v1646 = vadd.f32 %v1518, %v1560
        %v1647 = vadd.f32 %v1519, %v1562
        %v1648 = vadd.f32 %v1520, %v1564
        %v1649 = vadd.f32 %v1521, %v1566
        %v1650 = vadd.f32 %v1522, %v1568
        %v1651 = vadd.f32 %v1523, %v1570
        %v1652 = vadd.f32 %v1524, %v1572
        %v1653 = vadd.f32 %v1525, %v1574
        %v1654 = vadd.f32 %v1526, %v1576
        %v1655 = vadd.f32 %v1527, %v1578
        %v1656 = vadd.f32 %v1528, %v1580
        %v1657 = vadd.f32 %v1529, %v1582
        %v1658 = vadd.f32 %v1530, %v1584
        %v1659 = vadd.f32 %v1531, %v1586
        %v1660 = vadd.f32 %v1532, %v1588
        %v1661 = vadd.f32 %v1533, %v1590
        %v1662 = vadd.f32 %v1534, %v1592
        %v1663 = vadd.f32 %v1535, %v1594
        %v1664 = vadd.f32 %v1536, %v1596
        %v1665 = vadd.f32 %v1537, %v1598
        %v1666 = vadd.f32 %v1538, %v1600
        %v1667 = vadd.f32 %v1539, %v1602
        %v1668 = vadd.f32 %v1540, %v1604
        %v1669 = vsel %vm285, %v1637, 0.0
        %v1670 = vsel %vm285, %v1638, 0.0
        %v1671 = vadd.f32 %v1669, %v1670
        %v1672 = vsel %vm285, %v1639, 0.0
        %v1673 = vadd.f32 %v1671, %v1672
        %v1674 = vsel %vm285, %v1640, 0.0
        %v1675 = vadd.f32 %v1673, %v1674
        %v1676 = vsel %vm285, %v1641, 0.0
        %v1677 = vadd.f32 %v1675, %v1676
        %v1678 = vsel %vm285, %v1642, 0.0
        %v1679 = vadd.f32 %v1677, %v1678
        %v1680 = vsel %vm285, %v1643, 0.0
        %v1681 = vadd.f32 %v1679, %v1680
        %v1682 = vsel %vm285, %v1644, 0.0
        %v1683 = vadd.f32 %v1681, %v1682
        %v1684 = vsel %vm285, %v1645, 0.0
        %v1685 = vadd.f32 %v1683, %v1684
        %v1686 = vsel %vm285, %v1646, 0.0
        %v1687 = vadd.f32 %v1685, %v1686
        %v1688 = vsel %vm285, %v1647, 0.0
        %v1689 = vadd.f32 %v1687, %v1688
        %v1690 = vsel %vm285, %v1648, 0.0
        %v1691 = vadd.f32 %v1689, %v1690
        %v1692 = vsel %vm285, %v1649, 0.0
        %v1693 = vadd.f32 %v1691, %v1692
        %v1694 = vsel %vm285, %v1650, 0.0
        %v1695 = vadd.f32 %v1693, %v1694
        %v1696 = vsel %vm285, %v1651, 0.0
        %v1697 = vadd.f32 %v1695, %v1696
        %v1698 = vsel %vm285, %v1652, 0.0
        %v1699 = vadd.f32 %v1697, %v1698
        %v1700 = vsel %vm285, %v1653, 0.0
        %v1701 = vadd.f32 %v1699, %v1700
        %v1702 = vsel %vm285, %v1654, 0.0
        %v1703 = vadd.f32 %v1701, %v1702
        %v1704 = vsel %vm285, %v1655, 0.0
        %v1705 = vadd.f32 %v1703, %v1704
        %v1706 = vsel %vm285, %v1656, 0.0
        %v1707 = vadd.f32 %v1705, %v1706
        %v1708 = vsel %vm285, %v1657, 0.0
        %v1709 = vadd.f32 %v1707, %v1708
        %v1710 = vsel %vm285, %v1658, 0.0
        %v1711 = vadd.f32 %v1709, %v1710
        %v1712 = vsel %vm285, %v1659, 0.0
        %v1713 = vadd.f32 %v1711, %v1712
        %v1714 = vsel %vm285, %v1660, 0.0
        %v1715 = vadd.f32 %v1713, %v1714
        %v1716 = vsel %vm285, %v1661, 0.0
        %v1717 = vadd.f32 %v1715, %v1716
        %v1718 = vsel %vm285, %v1662, 0.0
        %v1719 = vadd.f32 %v1717, %v1718
        %v1720 = vsel %vm285, %v1663, 0.0
        %v1721 = vadd.f32 %v1719, %v1720
        %v1722 = vsel %vm285, %v1664, 0.0
        %v1723 = vadd.f32 %v1721, %v1722
        %v1724 = vsel %vm285, %v1665, 0.0
        %v1725 = vadd.f32 %v1723, %v1724
        %v1726 = vsel %vm285, %v1666, 0.0
        %v1727 = vadd.f32 %v1725, %v1726
        %v1728 = vsel %vm285, %v1667, 0.0
        %v1729 = vadd.f32 %v1727, %v1728
        %v1730 = vsel %vm285, %v1668, 0.0
        %v1731 = vadd.f32 %v1729, %v1730
        %v1732 = vrot.slane %v1731, 4
        %v1733 = vadd.f32 %v1731, %v1732
        %v1734 = vrot.slane %v1733, 2
        %v1735 = vadd.f32 %v1733, %v1734
        %v1736 = vrot.slane %v1735, 1
        %v1737 = vadd.f32 %v1735, %v1736
        %vm1738 = vcmask 253952
        %1739 = vst.msk [vmem:[%s241] sm:$0x1] %vm1738, %v1737
        %p1740 = scmp.lt.s32.totalorder %s20, 1
        %s1741 = scalar_select %p1740, %s20, 1
        %s1742 = smul.addr %s1741, 32
        %s1743 = smul.addr %s1742, 4
        %s1744 = scalar_lea.vmem %s3, %s1743
        %p1745 = scmp.lt.s32.totalorder %s20, 1
        %s1746 = scalar_select %p1745, %s20, 1
        %s1747 = scalar_lea.vmem %s4, %s1746
        // Predicated region
        $region41: #{s2_attention_forward.2} parent=31 // pred_check
          %p1748 = pneg %p106
        $region42: #{s2_attention_forward.2} parent=31 // pred_check_branch
          %1750 = sbr.rel (%p1748) target = $region44
        $region43: #{s2_attention_forward.2} parent=31 // pred_region
          _
        $region44: #{s2_attention_forward.2} parent=31 // pred_fallthru
          _
        // Predicated region
        $region45: #{s2_attention_forward.2} parent=31 // pred_check
          %p1751 = pneg %p132
        $region46: #{s2_attention_forward.2} parent=31 // pred_check_branch
          %1753 = sbr.rel (%p1751) target = $region48
        $region47: #{s2_attention_forward.2} parent=31 // pred_region
          _
        $region48: #{s2_attention_forward.2} parent=31 // pred_fallthru
          _
      $region32: #{s2_attention_forward.2} parent=5 // pred_fallthru
        _
      %p1754 = scmp.le.s32.totalorder 2, %s15
      // Predicated region
      $region49: #{s2_attention_forward.2} parent=5 // pred_check
        %p1755 = pneg %p1754
      $region50: #{s2_attention_forward.2} parent=5 // pred_check_branch
        %1757 = sbr.rel (%p1755) target = $region52
      $region51: #{s2_attention_forward.2} parent=5 // pred_region
        %s1758 = ssub.s32 %s15, 2
        // Predicated region
        $region53: #{s2_attention_forward.2} parent=51 // pred_check
          %p1759 = pneg %p112
        $region54: #{s2_attention_forward.2} parent=51 // pred_check_branch
          %1761 = sbr.rel (%p1759) target = $region56
        $region55: #{s2_attention_forward.2} parent=51 // pred_region
          %p1762 = scmp.lt.s32.totalorder %s21, 1
          %s1763 = scalar_select %p1762, %s21, 1
          %s1764 = smul.addr %s1763, 32
          %s1765 = smul.addr %s1764, 4
          %s1766 = scalar_lea.vmem %s3, %s1765
        $region56: #{s2_attention_forward.2} parent=51 // pred_fallthru
          _
        // Predicated region
        $region57: #{s2_attention_forward.2} parent=51 // pred_check
          %p1767 = pneg %p138
        $region58: #{s2_attention_forward.2} parent=51 // pred_check_branch
          %1769 = sbr.rel (%p1767) target = $region60
        $region59: #{s2_attention_forward.2} parent=51 // pred_region
          %p1770 = scmp.lt.s32.totalorder %s21, 1
          %s1771 = scalar_select %p1770, %s21, 1
          %s1772 = scalar_lea.vmem %s4, %s1771
        $region60: #{s2_attention_forward.2} parent=51 // pred_fallthru
          _
      $region52: #{s2_attention_forward.2} parent=5 // pred_fallthru
        _
    $region6: #{s2_attention_forward.2} parent=1 // loop_footer
      %s19 = sadd.s32 1, %s15
    $region7: #{s2_attention_forward.2} parent=1 // loop_footer_branch
      %14 = sbr.rel target = $region3
    $region8: #{s2_attention_forward.2} parent=1 // loop_exit
      _
    %1773 = vsyncpa [#allocation3], 1
    %s1774 = scalar_lea.sflag [#allocation3], 1
    %1775 = vsyncpa %s1774, 1
    %1776 = vsyncpa [#allocation5], 1

// kernel: s2_attention_forward.3
$region0: #{s2_attention_forward.3}
  #allocation0 [shape = 'u32[]', space=smem, size = 0x4, offset = 0x4, fixed_abs, tag = 'smem constant byte address 0x4 - core index']
  #allocation1 [shape = 'u32[144,128]{1,0:T(1,128)}', space=vmem, size = 0x12000, scoped, tag = 'internal scratch']
  %s0 = inlined_call_operand.vmem [shape: bf16[2,256,96], index: 0, kind: input, shape index: {}]
  %s1 = inlined_call_operand.vmem [shape: f32[2,3,32], index: 1, kind: input, shape index: {}]
  %s2 = inlined_call_operand.vmem [shape: f32[32,32], index: 2, kind: input, shape index: {}]
  %s3 = inlined_call_operand.vmem [shape: f32[1,32], index: 3, kind: input, shape index: {}]
  %s4 = inlined_call_operand.hbm [shape: f32[2,256,32], index: 4, kind: output, shape index: {}]
  %s5 = sld [smem:[#allocation0]]
  $region49: #{s2_attention_forward.3} parent=0
    _
  %s7 = ssub.s32 1, %s5
  %s8 = scalar_select 0, %s7, %s5
  $region1: #{s2_attention_forward.3} parent=0
    #allocation2 [shape = 'u8[262144]{0}', space=vmem, size = 0x40000, scoped, tag = 'output window, operand 0']
    #allocation3 [shape = 's32[2]{0}', space=sflag, size = 0x8, scoped, tag = 'scoped memory for s2_attention_forward.3']
    %9 = vsyncpa [#allocation3], 0
    %s10 = scalar_lea.sflag [#allocation3], 1
    %11 = vsyncpa %s10, 0
    loop: start=0, step=1, limit=4
    $region2: #{s2_attention_forward.3} parent=1 // loop_pre_header
      _
    $region3: #{s2_attention_forward.3} parent=1 // loop_header
      %s13 = sphi 0, %s17
      %p14 = scmp.ge.s32.totalorder %s13, 4
      %s23 = sphi 0, %s25
      %s26 = sphi 0, %s23
      %s27 = sphi 0, %s26
      %s43 = sphi 0, %s27
      %s49 = sphi 0, %s51
      %s52 = sphi 0, %s49
      %s53 = sphi 0, %s52
      %s69 = sphi 0, %s53
      %s73 = sphi 0, %s73
      %s75 = sphi 0, %s73
      %s76 = sphi 0, %s75
      %s90 = sphi 0, %s76
      %s94 = sphi 0, %s94
      %s96 = sphi 0, %s94
      %s97 = sphi 0, %s96
      %s111 = sphi 0, %s97
      %s117 = sphi 0, %s119
      %s120 = sphi 0, %s117
      %s121 = sphi 0, %s120
      %s137 = sphi 0, %s121
    $region4: #{s2_attention_forward.3} parent=1 // loop_header_branch
      %16 = sbr.rel (%p14) target = $region8
    $region5: #{s2_attention_forward.3} parent=1 // loop_body
      %s18 = ssub.s32 %s13, 1
      %s19 = ssub.s32 %s13, 2
      %s20 = sadd.s32 %s13, 1
      %s21 = ssub.s32 %s13, %s20
      %p22 = scmp.eq.s32.totalorder %s21, 0
      %s24 = sadd.s32 %s23, 1
      %s25 = scalar_select %p22, %s23, %s24
      %p28 = pneg %p22
      %p29 = scmp.eq.s32.totalorder %s13, 1
      %p30 = por %p28, %p29
      %p31 = scmp.ne.s32.totalorder %s23, %s26
      %p32 = scmp.eq.s32.totalorder %s13, 0
      %p33 = por %p31, %p32
      %p34 = scmp.ne.s32.totalorder %s23, %s26
      %p35 = scmp.eq.s32.totalorder %s18, 1
      %p36 = por %p34, %p35
      %p37 = scmp.ne.s32.totalorder %s26, %s27
      %p38 = scmp.eq.s32.totalorder %s18, 0
      %p39 = por %p37, %p38
      %p40 = scmp.ne.s32.totalorder %s26, %s27
      %p41 = scmp.eq.s32.totalorder %s19, 1
      %p42 = por %p40, %p41
      %p44 = scmp.ne.s32.totalorder %s27, %s43
      %p45 = scmp.eq.s32.totalorder %s19, 0
      %p46 = por %p44, %p45
      %s47 = ssub.s32 %s13, %s20
      %p48 = scmp.eq.s32.totalorder %s47, 0
      %s50 = sadd.s32 %s49, 1
      %s51 = scalar_select %p48, %s49, %s50
      %p54 = pneg %p48
      %p55 = scmp.eq.s32.totalorder %s13, 1
      %p56 = por %p54, %p55
      %p57 = scmp.ne.s32.totalorder %s49, %s52
      %p58 = scmp.eq.s32.totalorder %s13, 0
      %p59 = por %p57, %p58
      %p60 = scmp.ne.s32.totalorder %s49, %s52
      %p61 = scmp.eq.s32.totalorder %s18, 1
      %p62 = por %p60, %p61
      %p63 = scmp.ne.s32.totalorder %s52, %s53
      %p64 = scmp.eq.s32.totalorder %s18, 0
      %p65 = por %p63, %p64
      %p66 = scmp.ne.s32.totalorder %s52, %s53
      %p67 = scmp.eq.s32.totalorder %s19, 1
      %p68 = por %p66, %p67
      %p70 = scmp.ne.s32.totalorder %s53, %s69
      %p71 = scmp.eq.s32.totalorder %s19, 0
      %p72 = por %p70, %p71
      %s74 = sadd.s32 %s73, 1
      %p77 = scmp.eq.s32.totalorder %s13, 1
      %p78 = scmp.ne.s32.totalorder %s73, %s75
      %p79 = scmp.eq.s32.totalorder %s13, 0
      %p80 = por %p78, %p79
      %p81 = scmp.ne.s32.totalorder %s73, %s75
      %p82 = scmp.eq.s32.totalorder %s18, 1
      %p83 = por %p81, %p82
      %p84 = scmp.ne.s32.totalorder %s75, %s76
      %p85 = scmp.eq.s32.totalorder %s18, 0
      %p86 = por %p84, %p85
      %p87 = scmp.ne.s32.totalorder %s75, %s76
      %p88 = scmp.eq.s32.totalorder %s19, 1
      %p89 = por %p87, %p88
      %p91 = scmp.ne.s32.totalorder %s76, %s90
      %p92 = scmp.eq.s32.totalorder %s19, 0
      %p93 = por %p91, %p92
      %s95 = sadd.s32 %s94, 1
      %p98 = scmp.eq.s32.totalorder %s13, 1
      %p99 = scmp.ne.s32.totalorder %s94, %s96
      %p100 = scmp.eq.s32.totalorder %s13, 0
      %p101 = por %p99, %p100
      %p102 = scmp.ne.s32.totalorder %s94, %s96
      %p103 = scmp.eq.s32.totalorder %s18, 1
      %p104 = por %p102, %p103
      %p105 = scmp.ne.s32.totalorder %s96, %s97
      %p106 = scmp.eq.s32.totalorder %s18, 0
      %p107 = por %p105, %p106
      %p108 = scmp.ne.s32.totalorder %s96, %s97
      %p109 = scmp.eq.s32.totalorder %s19, 1
      %p110 = por %p108, %p109
      %p112 = scmp.ne.s32.totalorder %s97, %s111
      %p113 = scmp.eq.s32.totalorder %s19, 0
      %p114 = por %p112, %p113
      %s115 = ssub.s32 %s13, %s20
      %p116 = scmp.eq.s32.totalorder %s115, 0
      %s118 = sadd.s32 %s117, 1
      %s119 = scalar_select %p116, %s117, %s118
      %p122 = pneg %p116
      %p123 = scmp.eq.s32.totalorder %s13, 1
      %p124 = por %p122, %p123
      %p125 = scmp.ne.s32.totalorder %s117, %s120
      %p126 = scmp.eq.s32.totalorder %s13, 0
      %p127 = por %p125, %p126
      %p128 = scmp.ne.s32.totalorder %s117, %s120
      %p129 = scmp.eq.s32.totalorder %s18, 1
      %p130 = por %p128, %p129
      %p131 = scmp.ne.s32.totalorder %s120, %s121
      %p132 = scmp.eq.s32.totalorder %s18, 0
      %p133 = por %p131, %p132
      %p134 = scmp.ne.s32.totalorder %s120, %s121
      %p135 = scmp.eq.s32.totalorder %s19, 1
      %p136 = por %p134, %p135
      %p138 = scmp.ne.s32.totalorder %s121, %s137
      %p139 = scmp.eq.s32.totalorder %s19, 0
      %p140 = por %p138, %p139
      %p141 = scmp.le.s32.totalorder 1, %s13
      %p142 = scmp.lt.s32.totalorder %s13, 3
      %p143 = pnand %p141, %p142
      %p144 = pneg %p143
      // Predicated region
      $region9: #{s2_attention_forward.3} parent=5 // pred_check
        _
      $region10: #{s2_attention_forward.3} parent=5 // pred_check_branch
        %146 = sbr.rel (%p143) target = $region12
      $region11: #{s2_attention_forward.3} parent=5 // pred_region
        %s147 = ssub.s32 %s13, 1
        // Predicated region
        $region13: #{s2_attention_forward.3} parent=11 // pred_check
          %p148 = pneg %p86
        $region14: #{s2_attention_forward.3} parent=11 // pred_check_branch
          %150 = sbr.rel (%p148) target = $region16
        $region15: #{s2_attention_forward.3} parent=11 // pred_region
          _
        $region16: #{s2_attention_forward.3} parent=11 // pred_fallthru
          _
        // Predicated region
        $region17: #{s2_attention_forward.3} parent=11 // pred_check
          %p151 = pneg %p107
        $region18: #{s2_attention_forward.3} parent=11 // pred_check_branch
          %153 = sbr.rel (%p151) target = $region20
        $region19: #{s2_attention_forward.3} parent=11 // pred_region
          _
        $region20: #{s2_attention_forward.3} parent=11 // pred_fallthru
          _
      $region12: #{s2_attention_forward.3} parent=5 // pred_fallthru
        _
      %p154 = scmp.lt.s32.totalorder %s13, 2
      // Predicated region
      $region21: #{s2_attention_forward.3} parent=5 // pred_check
        %p155 = pneg %p154
      $region22: #{s2_attention_forward.3} parent=5 // pred_check_branch
        %157 = sbr.rel (%p155) target = $region24
      $region23: #{s2_attention_forward.3} parent=5 // pred_region
        // Predicated region
        $region25: #{s2_attention_forward.3} parent=23 // pred_check
          %p158 = pneg %p33
        $region26: #{s2_attention_forward.3} parent=23 // pred_check_branch
          %160 = sbr.rel (%p158) target = $region28
        $region27: #{s2_attention_forward.3} parent=23 // pred_region
          %p161 = scmp.lt.s32.totalorder %s13, 1
          %s162 = scalar_select %p161, %s13, 1
          %s163 = smul.addr %s162, 32
          %s164 = smul.addr %s163, 4
          %s165 = scalar_lea.vmem %s0, %s164
        $region28: #{s2_attention_forward.3} parent=23 // pred_fallthru
          _
        // Predicated region
        $region29: #{s2_attention_forward.3} parent=23 // pred_check
          %p166 = pneg %p59
        $region30: #{s2_attention_forward.3} parent=23 // pred_check_branch
          %168 = sbr.rel (%p166) target = $region32
        $region31: #{s2_attention_forward.3} parent=23 // pred_region
          %p169 = scmp.lt.s32.totalorder %s13, 1
          %s170 = scalar_select %p169, %s13, 1
          %s171 = smul.addr %s170, 4
          %s172 = scalar_lea.vmem %s1, %s171
        $region32: #{s2_attention_forward.3} parent=23 // pred_fallthru
          _
      $region24: #{s2_attention_forward.3} parent=5 // pred_fallthru
        _
      %p173 = scmp.le.s32.totalorder 1, %s13
      %p174 = scmp.lt.s32.totalorder %s13, 3
      %p175 = pnand %p173, %p174
      %p176 = pneg %p175
      // Predicated region
      $region33: #{s2_attention_forward.3} parent=5 // pred_check
        _
      $region34: #{s2_attention_forward.3} parent=5 // pred_check_branch
        %178 = sbr.rel (%p175) target = $region36
      $region35: #{s2_attention_forward.3} parent=5 // pred_region
        %s179 = ssub.s32 %s13, 1
        %p180 = scmp.lt.s32.totalorder %s18, 1
        %s181 = scalar_select %p180, %s18, 1
        %s182 = smul.addr %s181, 32
        %s183 = smul.addr %s182, 4
        %s184 = scalar_lea.vmem %s0, %s183
        %p185 = pneg %p39
        %p186 = pneg %p36
        %p187 = scmp.lt.s32.totalorder %s18, 1
        %s188 = scalar_select %p187, %s18, 1
        %s189 = smul.addr %s188, 4
        %s190 = scalar_lea.vmem %s1, %s189
        %p191 = pneg %p65
        %p192 = pneg %p62
        %p193 = pneg %p86
        %p194 = pneg %p83
        %p195 = pneg %p107
        %p196 = pneg %p104
        %p197 = pneg %p133
        %p198 = pneg %p130
        %s199 = sand.u32 %s120, 1
        %s200 = scalar_lea.sflag [#allocation3], %s199
        %s201 = sand.u32 %s120, 1
        %s202 = smul.addr %s201, 256
        %s203 = scalar_lea.vmem [#allocation2], %s202
        %p204 = scmp.lt.s32.totalorder %s18, 1
        %s205 = scalar_select %p204, %s18, 1
        %s206 = smul.addr %s205, 32
        %s207 = smul.addr %s206, 4
        %s208 = scalar_lea.vmem %s0, %s207
        %p209 = scmp.lt.s32.totalorder %s18, 1
        %s210 = scalar_select %p209, %s18, 1
        %s211 = smul.addr %s210, 4
        %s212 = scalar_lea.vmem %s1, %s211
        %v213 = vld [vmem:[%s208] sm:$0xf]
        %v214 = vld [vmem:[%s208 + $0x4] sm:$0xf]
        %v215 = vld [vmem:[%s208 + $0x8] sm:$0xf]
        %v216 = vld [vmem:[%s208 + $0xc] sm:$0xf]
        %v217 = vld [vmem:[%s208 + $0x10] sm:$0xf]
        %v218 = vld [vmem:[%s208 + $0x14] sm:$0xf]
        %v219 = vld [vmem:[%s208 + $0x18] sm:$0xf]
        %v220 = vld [vmem:[%s208 + $0x1c] sm:$0xf]
        %v221 = vld [vmem:[%s208 + $0x20] sm:$0xf]
        %v222 = vld [vmem:[%s208 + $0x24] sm:$0xf]
        %v223 = vld [vmem:[%s208 + $0x28] sm:$0xf]
        %v224 = vld [vmem:[%s208 + $0x2c] sm:$0xf]
        %v225 = vld [vmem:[%s208 + $0x30] sm:$0xf]
        %v226 = vld [vmem:[%s208 + $0x34] sm:$0xf]
        %v227 = vld [vmem:[%s208 + $0x38] sm:$0xf]
        %v228 = vld [vmem:[%s208 + $0x3c] sm:$0xf]
        %v229 = vld [vmem:[%s208 + $0x40] sm:$0xf]
        %v230 = vld [vmem:[%s208 + $0x44] sm:$0xf]
        %v231 = vld [vmem:[%s208 + $0x48] sm:$0xf]
        %v232 = vld [vmem:[%s208 + $0x4c] sm:$0xf]
        %v233 = vld [vmem:[%s208 + $0x50] sm:$0xf]
        %v234 = vld [vmem:[%s208 + $0x54] sm:$0xf]
        %v235 = vld [vmem:[%s208 + $0x58] sm:$0xf]
        %v236 = vld [vmem:[%s208 + $0x5c] sm:$0xf]
        %v237 = vld [vmem:[%s208 + $0x60] sm:$0xf]
        %v238 = vld [vmem:[%s208 + $0x64] sm:$0xf]
        %v239 = vld [vmem:[%s208 + $0x68] sm:$0xf]
        %v240 = vld [vmem:[%s208 + $0x6c] sm:$0xf]
        %v241 = vld [vmem:[%s208 + $0x70] sm:$0xf]
        %v242 = vld [vmem:[%s208 + $0x74] sm:$0xf]
        %v243 = vld [vmem:[%s208 + $0x78] sm:$0xf]
        %v244 = vld [vmem:[%s208 + $0x7c] sm:$0xf]
        %v245 = vunpack.c.l.bf16 %v213
        %v246 = vunpack.c.l.bf16 %v214
        %v247 = vunpack.c.l.bf16 %v215
        %v248 = vunpack.c.l.bf16 %v216
        %v249 = vunpack.c.l.bf16 %v217
        %v250 = vunpack.c.l.bf16 %v218
        %v251 = vunpack.c.l.bf16 %v219
        %v252 = vunpack.c.l.bf16 %v220
        %v253 = vunpack.c.l.bf16 %v221
        %v254 = vunpack.c.l.bf16 %v222
        %v255 = vunpack.c.l.bf16 %v223
        %v256 = vunpack.c.l.bf16 %v224
        %v257 = vunpack.c.l.bf16 %v225
        %v258 = vunpack.c.l.bf16 %v226
        %v259 = vunpack.c.l.bf16 %v227
        %v260 = vunpack.c.l.bf16 %v228
        %v261 = vunpack.c.l.bf16 %v229
        %v262 = vunpack.c.l.bf16 %v230
        %v263 = vunpack.c.l.bf16 %v231
        %v264 = vunpack.c.l.bf16 %v232
        %v265 = vunpack.c.l.bf16 %v233
        %v266 = vunpack.c.l.bf16 %v234
        %v267 = vunpack.c.l.bf16 %v235
        %v268 = vunpack.c.l.bf16 %v236
        %v269 = vunpack.c.l.bf16 %v237
        %v270 = vunpack.c.l.bf16 %v238
        %v271 = vunpack.c.l.bf16 %v239
        %v272 = vunpack.c.l.bf16 %v240
        %v273 = vunpack.c.l.bf16 %v241
        %v274 = vunpack.c.l.bf16 %v242
        %v275 = vunpack.c.l.bf16 %v243
        %v276 = vunpack.c.l.bf16 %v244
        %vm309 = vcmask 1040384
        %v310 = vrot.slane %v245, 7
        %v311 = vrot.slane %v246, 7
        %v312 = vsel %vm309, %v310, %v311
        %v313 = vrot.slane %v247, 7
        %v314 = vrot.slane %v248, 7
        %v315 = vsel %vm309, %v313, %v314
        %v316 = vrot.slane %v249, 7
        %v317 = vrot.slane %v250, 7
        %v318 = vsel %vm309, %v316, %v317
        %v319 = vrot.slane %v251, 7
        %v320 = vrot.slane %v252, 7
        %v321 = vsel %vm309, %v319, %v320
        %v322 = vrot.slane %v253, 7
        %v323 = vrot.slane %v254, 7
        %v324 = vsel %vm309, %v322, %v323
        %v325 = vrot.slane %v255, 7
        %v326 = vrot.slane %v256, 7
        %v327 = vsel %vm309, %v325, %v326
        %v328 = vrot.slane %v257, 7
        %v329 = vrot.slane %v258, 7
        %v330 = vsel %vm309, %v328, %v329
        %v331 = vrot.slane %v259, 7
        %v332 = vrot.slane %v260, 7
        %v333 = vsel %vm309, %v331, %v332
        %v334 = vrot.slane %v261, 7
        %v335 = vrot.slane %v262, 7
        %v336 = vsel %vm309, %v334, %v335
        %v337 = vrot.slane %v263, 7
        %v338 = vrot.slane %v264, 7
        %v339 = vsel %vm309, %v337, %v338
        %v340 = vrot.slane %v265, 7
        %v341 = vrot.slane %v266, 7
        %v342 = vsel %vm309, %v340, %v341
        %v343 = vrot.slane %v267, 7
        %v344 = vrot.slane %v268, 7
        %v345 = vsel %vm309, %v343, %v344
        %v346 = vrot.slane %v269, 7
        %v347 = vrot.slane %v270, 7
        %v348 = vsel %vm309, %v346, %v347
        %v349 = vrot.slane %v271, 7
        %v350 = vrot.slane %v272, 7
        %v351 = vsel %vm309, %v349, %v350
        %v352 = vrot.slane %v273, 7
        %v353 = vrot.slane %v274, 7
        %v354 = vsel %vm309, %v352, %v353
        %v355 = vrot.slane %v275, 7
        %v356 = vrot.slane %v276, 7
        %v357 = vsel %vm309, %v355, %v356
        %v390 = vsel %vm309, %v245, %v310
        %v391 = vsel %vm309, %v247, %v313
        %v392 = vsel %vm309, %v249, %v316
        %v393 = vsel %vm309, %v251, %v319
        %v394 = vsel %vm309, %v253, %v322
        %v395 = vsel %vm309, %v255, %v325
        %v396 = vsel %vm309, %v257, %v328
        %v397 = vsel %vm309, %v259, %v331
        %v398 = vsel %vm309, %v261, %v334
        %v399 = vsel %vm309, %v263, %v337
        %v400 = vsel %vm309, %v265, %v340
        %v401 = vsel %vm309, %v267, %v343
        %v402 = vsel %vm309, %v269, %v346
        %v403 = vsel %vm309, %v271, %v349
        %v404 = vsel %vm309, %v273, %v352
        %v405 = vsel %vm309, %v275, %v355
        %vm406 = vcmask 1046528
        %v407 = vrot.slane %v245, 1
        %v408 = vrot.slane %v246, 1
        %v409 = vsel %vm406, %v407, %v408
        %v410 = vrot.slane %v247, 1
        %v411 = vrot.slane %v248, 1
        %v412 = vsel %vm406, %v410, %v411
        %v413 = vrot.slane %v249, 1
        %v414 = vrot.slane %v250, 1
        %v415 = vsel %vm406, %v413, %v414
        %v416 = vrot.slane %v251, 1
        %v417 = vrot.slane %v252, 1
        %v418 = vsel %vm406, %v416, %v417
        %v419 = vrot.slane %v253, 1
        %v420 = vrot.slane %v254, 1
        %v421 = vsel %vm406, %v419, %v420
        %v422 = vrot.slane %v255, 1
        %v423 = vrot.slane %v256, 1
        %v424 = vsel %vm406, %v422, %v423
        %v425 = vrot.slane %v257, 1
        %v426 = vrot.slane %v258, 1
        %v427 = vsel %vm406, %v425, %v426
        %v428 = vrot.slane %v259, 1
        %v429 = vrot.slane %v260, 1
        %v430 = vsel %vm406, %v428, %v429
        %v431 = vrot.slane %v261, 1
        %v432 = vrot.slane %v262, 1
        %v433 = vsel %vm406, %v431, %v432
        %v434 = vrot.slane %v263, 1
        %v435 = vrot.slane %v264, 1
        %v436 = vsel %vm406, %v434, %v435
        %v437 = vrot.slane %v265, 1
        %v438 = vrot.slane %v266, 1
        %v439 = vsel %vm406, %v437, %v438
        %v440 = vrot.slane %v267, 1
        %v441 = vrot.slane %v268, 1
        %v442 = vsel %vm406, %v440, %v441
        %v443 = vrot.slane %v269, 1
        %v444 = vrot.slane %v270, 1
        %v445 = vsel %vm406, %v443, %v444
        %v446 = vrot.slane %v271, 1
        %v447 = vrot.slane %v272, 1
        %v448 = vsel %vm406, %v446, %v447
        %v449 = vrot.slane %v273, 1
        %v450 = vrot.slane %v274, 1
        %v451 = vsel %vm406, %v449, %v450
        %v452 = vrot.slane %v275, 1
        %v453 = vrot.slane %v276, 1
        %v454 = vsel %vm406, %v452, %v453
        %v487 = vsel %vm406, %v408, %v246
        %v488 = vsel %vm406, %v411, %v248
        %v489 = vsel %vm406, %v414, %v250
        %v490 = vsel %vm406, %v417, %v252
        %v491 = vsel %vm406, %v420, %v254
        %v492 = vsel %vm406, %v423, %v256
        %v493 = vsel %vm406, %v426, %v258
        %v494 = vsel %vm406, %v429, %v260
        %v495 = vsel %vm406, %v432, %v262
        %v496 = vsel %vm406, %v435, %v264
        %v497 = vsel %vm406, %v438, %v266
        %v498 = vsel %vm406, %v441, %v268
        %v499 = vsel %vm406, %v444, %v270
        %v500 = vsel %vm406, %v447, %v272
        %v501 = vsel %vm406, %v450, %v274
        %v502 = vsel %vm406, %v453, %v276
        %vm503 = vcmask 64512
        %v504 = vsel %vm503, %v245, %v247
        %v505 = vsel %vm503, %v246, %v248
        %v506 = vsel %vm503, %v245, %v249
        %v507 = vsel %vm503, %v246, %v250
        %v508 = vsel %vm503, %v247, %v251
        %v509 = vsel %vm503, %v248, %v252
        %v510 = vsel %vm503, %v249, %v253
        %v511 = vsel %vm503, %v250, %v254
        %v512 = vsel %vm503, %v251, %v255
        %v513 = vsel %vm503, %v252, %v256
        %v514 = vsel %vm503, %v253, %v257
        %v515 = vsel %vm503, %v254, %v258
        %v516 = vsel %vm503, %v255, %v259
        %v517 = vsel %vm503, %v256, %v260
        %v518 = vsel %vm503, %v257, %v261
        %v519 = vsel %vm503, %v258, %v262
        %v520 = vsel %vm503, %v259, %v263
        %v521 = vsel %vm503, %v260, %v264
        %v522 = vsel %vm503, %v261, %v265
        %v523 = vsel %vm503, %v262, %v266
        %v524 = vsel %vm503, %v263, %v267
        %v525 = vsel %vm503, %v264, %v268
        %v526 = vsel %vm503, %v265, %v269
        %v527 = vsel %vm503, %v266, %v270
        %v528 = vsel %vm503, %v267, %v271
        %v529 = vsel %vm503, %v268, %v272
        %v530 = vsel %vm503, %v269, %v273
        %v531 = vsel %vm503, %v270, %v274
        %v532 = vsel %vm503, %v271, %v275
        %v533 = vsel %vm503, %v272, %v276
        %v534 = vsel %vm503, %v273, %v275
        %v535 = vsel %vm503, %v274, %v276
        %vm536 = vcmask 130048
        %v537 = vsel %vm536, %v504, %v390
        %v538 = vsel %vm536, %v505, %v312
        %v539 = vsel %vm536, %v506, %v391
        %v540 = vsel %vm536, %v507, %v315
        %v541 = vsel %vm536, %v508, %v392
        %v542 = vsel %vm536, %v509, %v318
        %v543 = vsel %vm536, %v510, %v393
        %v544 = vsel %vm536, %v511, %v321
        %v545 = vsel %vm536, %v512, %v394
        %v546 = vsel %vm536, %v513, %v324
        %v547 = vsel %vm536, %v514, %v395
        %v548 = vsel %vm536, %v515, %v327
        %v549 = vsel %vm536, %v516, %v396
        %v550 = vsel %vm536, %v517, %v330
        %v551 = vsel %vm536, %v518, %v397
        %v552 = vsel %vm536, %v519, %v333
        %v553 = vsel %vm536, %v520, %v398
        %v554 = vsel %vm536, %v521, %v336
        %v555 = vsel %vm536, %v522, %v399
        %v556 = vsel %vm536, %v523, %v339
        %v557 = vsel %vm536, %v524, %v400
        %v558 = vsel %vm536, %v525, %v342
        %v559 = vsel %vm536, %v526, %v401
        %v560 = vsel %vm536, %v527, %v345
        %v561 = vsel %vm536, %v528, %v402
        %v562 = vsel %vm536, %v529, %v348
        %v563 = vsel %vm536, %v530, %v403
        %v564 = vsel %vm536, %v531, %v351
        %v565 = vsel %vm536, %v532, %v404
        %v566 = vsel %vm536, %v533, %v354
        %v567 = vsel %vm536, %v534, %v405
        %v568 = vsel %vm536, %v535, %v357
        %vm569 = vcmask 195584
        %v570 = vsel %vm569, %v537, %v409
        %v571 = vsel %vm569, %v538, %v487
        %v572 = vsel %vm569, %v539, %v412
        %v573 = vsel %vm569, %v540, %v488
        %v574 = vsel %vm569, %v541, %v415
        %v575 = vsel %vm569, %v542, %v489
        %v576 = vsel %vm569, %v543, %v418
        %v577 = vsel %vm569, %v544, %v490
        %v578 = vsel %vm569, %v545, %v421
        %v579 = vsel %vm569, %v546, %v491
        %v580 = vsel %vm569, %v547, %v424
        %v581 = vsel %vm569, %v548, %v492
        %v582 = vsel %vm569, %v549, %v427
        %v583 = vsel %vm569, %v550, %v493
        %v584 = vsel %vm569, %v551, %v430
        %v585 = vsel %vm569, %v552, %v494
        %v586 = vsel %vm569, %v553, %v433
        %v587 = vsel %vm569, %v554, %v495
        %v588 = vsel %vm569, %v555, %v436
        %v589 = vsel %vm569, %v556, %v496
        %v590 = vsel %vm569, %v557, %v439
        %v591 = vsel %vm569, %v558, %v497
        %v592 = vsel %vm569, %v559, %v442
        %v593 = vsel %vm569, %v560, %v498
        %v594 = vsel %vm569, %v561, %v445
        %v595 = vsel %vm569, %v562, %v499
        %v596 = vsel %vm569, %v563, %v448
        %v597 = vsel %vm569, %v564, %v500
        %v598 = vsel %vm569, %v565, %v451
        %v599 = vsel %vm569, %v566, %v501
        %v600 = vsel %vm569, %v567, %v454
        %v601 = vsel %vm569, %v568, %v502
        %618 = vrot.lane.b32.xlu0 %v390, 96
        %v619 = vpop.permute.xlu0 %618
        %620 = vrot.lane.b32.xlu0 %v312, 96
        %v621 = vpop.permute.xlu0 %620
        %622 = vrot.lane.b32.xlu0 %v391, 96
        %v623 = vpop.permute.xlu0 %622
        %624 = vrot.lane.b32.xlu0 %v315, 96
        %v625 = vpop.permute.xlu0 %624
        %626 = vrot.lane.b32.xlu0 %v392, 96
        %v627 = vpop.permute.xlu0 %626
        %628 = vrot.lane.b32.xlu0 %v318, 96
        %v629 = vpop.permute.xlu0 %628
        %630 = vrot.lane.b32.xlu0 %v393, 96
        %v631 = vpop.permute.xlu0 %630
        %632 = vrot.lane.b32.xlu0 %v321, 96
        %v633 = vpop.permute.xlu0 %632
        %634 = vrot.lane.b32.xlu0 %v394, 96
        %v635 = vpop.permute.xlu0 %634
        %636 = vrot.lane.b32.xlu0 %v324, 96
        %v637 = vpop.permute.xlu0 %636
        %638 = vrot.lane.b32.xlu0 %v395, 96
        %v639 = vpop.permute.xlu0 %638
        %640 = vrot.lane.b32.xlu0 %v327, 96
        %v641 = vpop.permute.xlu0 %640
        %642 = vrot.lane.b32.xlu0 %v396, 96
        %v643 = vpop.permute.xlu0 %642
        %644 = vrot.lane.b32.xlu0 %v330, 96
        %v645 = vpop.permute.xlu0 %644
        %646 = vrot.lane.b32.xlu0 %v397, 96
        %v647 = vpop.permute.xlu0 %646
        %648 = vrot.lane.b32.xlu0 %v333, 96
        %v649 = vpop.permute.xlu0 %648
        %650 = vrot.lane.b32.xlu0 %v398, 96
        %v651 = vpop.permute.xlu0 %650
        %652 = vrot.lane.b32.xlu0 %v336, 96
        %v653 = vpop.permute.xlu0 %652
        %654 = vrot.lane.b32.xlu0 %v399, 96
        %v655 = vpop.permute.xlu0 %654
        %656 = vrot.lane.b32.xlu0 %v339, 96
        %v657 = vpop.permute.xlu0 %656
        %658 = vrot.lane.b32.xlu0 %v400, 96
        %v659 = vpop.permute.xlu0 %658
        %660 = vrot.lane.b32.xlu0 %v342, 96
        %v661 = vpop.permute.xlu0 %660
        %662 = vrot.lane.b32.xlu0 %v401, 96
        %v663 = vpop.permute.xlu0 %662
        %664 = vrot.lane.b32.xlu0 %v345, 96
        %v665 = vpop.permute.xlu0 %664
        %666 = vrot.lane.b32.xlu0 %v402, 96
        %v667 = vpop.permute.xlu0 %666
        %668 = vrot.lane.b32.xlu0 %v348, 96
        %v669 = vpop.permute.xlu0 %668
        %670 = vrot.lane.b32.xlu0 %v403, 96
        %v671 = vpop.permute.xlu0 %670
        %672 = vrot.lane.b32.xlu0 %v351, 96
        %v673 = vpop.permute.xlu0 %672
        %674 = vrot.lane.b32.xlu0 %v404, 96
        %v675 = vpop.permute.xlu0 %674
        %676 = vrot.lane.b32.xlu0 %v354, 96
        %v677 = vpop.permute.xlu0 %676
        %678 = vrot.lane.b32.xlu0 %v405, 96
        %v679 = vpop.permute.xlu0 %678
        %680 = vrot.lane.b32.xlu0 %v357, 96
        %v681 = vpop.permute.xlu0 %680
        %730 = vrot.lane.b32.xlu0 %v409, 96
        %v731 = vpop.permute.xlu0 %730
        %732 = vrot.lane.b32.xlu0 %v487, 96
        %v733 = vpop.permute.xlu0 %732
        %734 = vrot.lane.b32.xlu0 %v412, 96
        %v735 = vpop.permute.xlu0 %734
        %736 = vrot.lane.b32.xlu0 %v488, 96
        %v737 = vpop.permute.xlu0 %736
        %738 = vrot.lane.b32.xlu0 %v415, 96
        %v739 = vpop.permute.xlu0 %738
        %740 = vrot.lane.b32.xlu0 %v489, 96
        %v741 = vpop.permute.xlu0 %740
        %742 = vrot.lane.b32.xlu0 %v418, 96
        %v743 = vpop.permute.xlu0 %742
        %744 = vrot.lane.b32.xlu0 %v490, 96
        %v745 = vpop.permute.xlu0 %744
        %746 = vrot.lane.b32.xlu0 %v421, 96
        %v747 = vpop.permute.xlu0 %746
        %748 = vrot.lane.b32.xlu0 %v491, 96
        %v749 = vpop.permute.xlu0 %748
        %750 = vrot.lane.b32.xlu0 %v424, 96
        %v751 = vpop.permute.xlu0 %750
        %752 = vrot.lane.b32.xlu0 %v492, 96
        %v753 = vpop.permute.xlu0 %752
        %754 = vrot.lane.b32.xlu0 %v427, 96
        %v755 = vpop.permute.xlu0 %754
        %756 = vrot.lane.b32.xlu0 %v493, 96
        %v757 = vpop.permute.xlu0 %756
        %758 = vrot.lane.b32.xlu0 %v430, 96
        %v759 = vpop.permute.xlu0 %758
        %760 = vrot.lane.b32.xlu0 %v494, 96
        %v761 = vpop.permute.xlu0 %760
        %762 = vrot.lane.b32.xlu0 %v433, 96
        %v763 = vpop.permute.xlu0 %762
        %764 = vrot.lane.b32.xlu0 %v495, 96
        %v765 = vpop.permute.xlu0 %764
        %766 = vrot.lane.b32.xlu0 %v436, 96
        %v767 = vpop.permute.xlu0 %766
        %768 = vrot.lane.b32.xlu0 %v496, 96
        %v769 = vpop.permute.xlu0 %768
        %770 = vrot.lane.b32.xlu0 %v439, 96
        %v771 = vpop.permute.xlu0 %770
        %772 = vrot.lane.b32.xlu0 %v497, 96
        %v773 = vpop.permute.xlu0 %772
        %774 = vrot.lane.b32.xlu0 %v442, 96
        %v775 = vpop.permute.xlu0 %774
        %776 = vrot.lane.b32.xlu0 %v498, 96
        %v777 = vpop.permute.xlu0 %776
        %778 = vrot.lane.b32.xlu0 %v445, 96
        %v779 = vpop.permute.xlu0 %778
        %780 = vrot.lane.b32.xlu0 %v499, 96
        %v781 = vpop.permute.xlu0 %780
        %782 = vrot.lane.b32.xlu0 %v448, 96
        %v783 = vpop.permute.xlu0 %782
        %784 = vrot.lane.b32.xlu0 %v500, 96
        %v785 = vpop.permute.xlu0 %784
        %786 = vrot.lane.b32.xlu0 %v451, 96
        %v787 = vpop.permute.xlu0 %786
        %788 = vrot.lane.b32.xlu0 %v501, 96
        %v789 = vpop.permute.xlu0 %788
        %790 = vrot.lane.b32.xlu0 %v454, 96
        %v791 = vpop.permute.xlu0 %790
        %792 = vrot.lane.b32.xlu0 %v502, 96
        %v793 = vpop.permute.xlu0 %792
        %826 = vrot.lane.b32.xlu0 %v245, 96
        %v827 = vpop.permute.xlu0 %826
        %828 = vrot.lane.b32.xlu0 %v246, 96
        %v829 = vpop.permute.xlu0 %828
        %830 = vrot.lane.b32.xlu0 %v247, 96
        %v831 = vpop.permute.xlu0 %830
        %832 = vrot.lane.b32.xlu0 %v248, 96
        %v833 = vpop.permute.xlu0 %832
        %834 = vrot.lane.b32.xlu0 %v249, 96
        %v835 = vpop.permute.xlu0 %834
        %836 = vrot.lane.b32.xlu0 %v250, 96
        %v837 = vpop.permute.xlu0 %836
        %838 = vrot.lane.b32.xlu0 %v251, 96
        %v839 = vpop.permute.xlu0 %838
        %840 = vrot.lane.b32.xlu0 %v252, 96
        %v841 = vpop.permute.xlu0 %840
        %842 = vrot.lane.b32.xlu0 %v253, 96
        %v843 = vpop.permute.xlu0 %842
        %844 = vrot.lane.b32.xlu0 %v254, 96
        %v845 = vpop.permute.xlu0 %844
        %846 = vrot.lane.b32.xlu0 %v255, 96
        %v847 = vpop.permute.xlu0 %846
        %848 = vrot.lane.b32.xlu0 %v256, 96
        %v849 = vpop.permute.xlu0 %848
        %850 = vrot.lane.b32.xlu0 %v257, 96
        %v851 = vpop.permute.xlu0 %850
        %852 = vrot.lane.b32.xlu0 %v258, 96
        %v853 = vpop.permute.xlu0 %852
        %854 = vrot.lane.b32.xlu0 %v259, 96
        %v855 = vpop.permute.xlu0 %854
        %856 = vrot.lane.b32.xlu0 %v260, 96
        %v857 = vpop.permute.xlu0 %856
        %858 = vrot.lane.b32.xlu0 %v261, 96
        %v859 = vpop.permute.xlu0 %858
        %860 = vrot.lane.b32.xlu0 %v262, 96
        %v861 = vpop.permute.xlu0 %860
        %862 = vrot.lane.b32.xlu0 %v263, 96
        %v863 = vpop.permute.xlu0 %862
        %864 = vrot.lane.b32.xlu0 %v264, 96
        %v865 = vpop.permute.xlu0 %864
        %866 = vrot.lane.b32.xlu0 %v265, 96
        %v867 = vpop.permute.xlu0 %866
        %868 = vrot.lane.b32.xlu0 %v266, 96
        %v869 = vpop.permute.xlu0 %868
        %870 = vrot.lane.b32.xlu0 %v267, 96
        %v871 = vpop.permute.xlu0 %870
        %872 = vrot.lane.b32.xlu0 %v268, 96
        %v873 = vpop.permute.xlu0 %872
        %874 = vrot.lane.b32.xlu0 %v269, 96
        %v875 = vpop.permute.xlu0 %874
        %876 = vrot.lane.b32.xlu0 %v270, 96
        %v877 = vpop.permute.xlu0 %876
        %878 = vrot.lane.b32.xlu0 %v271, 96
        %v879 = vpop.permute.xlu0 %878
        %880 = vrot.lane.b32.xlu0 %v272, 96
        %v881 = vpop.permute.xlu0 %880
        %882 = vrot.lane.b32.xlu0 %v273, 96
        %v883 = vpop.permute.xlu0 %882
        %884 = vrot.lane.b32.xlu0 %v274, 96
        %v885 = vpop.permute.xlu0 %884
        %916 = vrot.lane.b32.xlu0 %v275, 96
        %v917 = vpop.permute.xlu0 %916
        %918 = vrot.lane.b32.xlu0 %v276, 96
        %v919 = vpop.permute.xlu0 %918
        %v922 = vsel %vm503, %v619, %v731
        %v923 = vsel %vm503, %v621, %v733
        %v924 = vsel %vm503, %v623, %v735
        %v925 = vsel %vm503, %v625, %v737
        %v926 = vsel %vm503, %v627, %v739
        %v927 = vsel %vm503, %v629, %v741
        %v928 = vsel %vm503, %v631, %v743
        %v929 = vsel %vm503, %v633, %v745
        %v930 = vsel %vm503, %v635, %v747
        %v931 = vsel %vm503, %v637, %v749
        %v932 = vsel %vm503, %v639, %v751
        %v933 = vsel %vm503, %v641, %v753
        %v934 = vsel %vm503, %v643, %v755
        %v935 = vsel %vm503, %v645, %v757
        %v936 = vsel %vm503, %v647, %v759
        %v937 = vsel %vm503, %v649, %v761
        %v938 = vsel %vm503, %v651, %v763
        %v939 = vsel %vm503, %v653, %v765
        %v940 = vsel %vm503, %v655, %v767
        %v941 = vsel %vm503, %v657, %v769
        %v942 = vsel %vm503, %v659, %v771
        %v943 = vsel %vm503, %v661, %v773
        %v944 = vsel %vm503, %v663, %v775
        %v945 = vsel %vm503, %v665, %v777
        %v946 = vsel %vm503, %v667, %v779
        %v947 = vsel %vm503, %v669, %v781
        %v948 = vsel %vm503, %v671, %v783
        %v949 = vsel %vm503, %v673, %v785
        %v950 = vsel %vm503, %v675, %v787
        %v951 = vsel %vm503, %v677, %v789
        %v952 = vsel %vm503, %v679, %v791
        %v953 = vsel %vm503, %v681, %v793
        %v954 = vsel %vm536, %v922, %v827
        %v955 = vsel %vm536, %v923, %v829
        %v956 = vsel %vm536, %v924, %v827
        %v957 = vsel %vm536, %v925, %v829
        %v958 = vsel %vm536, %v926, %v831
        %v959 = vsel %vm536, %v927, %v833
        %v960 = vsel %vm536, %v928, %v835
        %v961 = vsel %vm536, %v929, %v837
        %v962 = vsel %vm536, %v930, %v839
        %v963 = vsel %vm536, %v931, %v841
        %v964 = vsel %vm536, %v932, %v843
        %v965 = vsel %vm536, %v933, %v845
        %v966 = vsel %vm536, %v934, %v847
        %v967 = vsel %vm536, %v935, %v849
        %v968 = vsel %vm536, %v936, %v851
        %v969 = vsel %vm536, %v937, %v853
        %v970 = vsel %vm536, %v938, %v855
        %v971 = vsel %vm536, %v939, %v857
        %v972 = vsel %vm536, %v940, %v859
        %v973 = vsel %vm536, %v941, %v861
        %v974 = vsel %vm536, %v942, %v863
        %v975 = vsel %vm536, %v943, %v865
        %v976 = vsel %vm536, %v944, %v867
        %v977 = vsel %vm536, %v945, %v869
        %v978 = vsel %vm536, %v946, %v871
        %v979 = vsel %vm536, %v947, %v873
        %v980 = vsel %vm536, %v948, %v875
        %v981 = vsel %vm536, %v949, %v877
        %v982 = vsel %vm536, %v950, %v879
        %v983 = vsel %vm536, %v951, %v881
        %v984 = vsel %vm536, %v952, %v883
        %v985 = vsel %vm536, %v953, %v885
        %v986 = vsel %vm569, %v954, %v831
        %v987 = vsel %vm569, %v955, %v833
        %v988 = vsel %vm569, %v956, %v835
        %v989 = vsel %vm569, %v957, %v837
        %v990 = vsel %vm569, %v958, %v839
        %v991 = vsel %vm569, %v959, %v841
        %v992 = vsel %vm569, %v960, %v843
        %v993 = vsel %vm569, %v961, %v845
        %v994 = vsel %vm569, %v962, %v847
        %v995 = vsel %vm569, %v963, %v849
        %v996 = vsel %vm569, %v964, %v851
        %v997 = vsel %vm569, %v965, %v853
        %v998 = vsel %vm569, %v966, %v855
        %v999 = vsel %vm569, %v967, %v857
        %v1000 = vsel %vm569, %v968, %v859
        %v1001 = vsel %vm569, %v969, %v861
        %v1002 = vsel %vm569, %v970, %v863
        %v1003 = vsel %vm569, %v971, %v865
        %v1004 = vsel %vm569, %v972, %v867
        %v1005 = vsel %vm569, %v973, %v869
        %v1006 = vsel %vm569, %v974, %v871
        %v1007 = vsel %vm569, %v975, %v873
        %v1008 = vsel %vm569, %v976, %v875
        %v1009 = vsel %vm569, %v977, %v877
        %v1010 = vsel %vm569, %v978, %v879
        %v1011 = vsel %vm569, %v979, %v881
        %v1012 = vsel %vm569, %v980, %v883
        %v1013 = vsel %vm569, %v981, %v885
        %v1014 = vsel %vm569, %v982, %v917
        %v1015 = vsel %vm569, %v983, %v919
        %v1016 = vsel %vm569, %v984, %v917
        %v1017 = vsel %vm569, %v985, %v919
        %v1018 = vld [vmem:[%s212] sm:$0x7]
        %vm1019 = vcmask 256000
        %v1020 = vsel %vm1019, %v1018, -inf
        %v1021 = vrot.slane %v1020, 4
        %v1022 = vmax.f32 %v1020, %v1021
        %v1023 = vrot.slane %v1022, 2
        %v1024 = vmax.f32 %v1022, %v1023
        %v1025 = vrot.slane %v1024, 1
        %v1026 = vmax.f32 %v1024, %v1025
        %v1027 = vsub.f32 %v1018, %v1026
        %v1028 = vmul.f32 %v1027, 1.442695
        %v1029 = vpow.pop %v1028
        %v1030 = vsel %vm1019, %v1029, 0.0
        %v1031 = vrot.slane %v1030, 4
        %v1032 = vadd.f32 %v1030, %v1031
        %v1033 = vrot.slane %v1032, 2
        %v1034 = vadd.f32 %v1032, %v1033
        %v1035 = vrot.slane %v1034, 1
        %v1036 = vadd.f32 %v1034, %v1035
        %v1037 = vrcp.pop %v1036
        %v1038 = vmul.f32 %v1029, %v1037
        %v1039 = vlaneseq
        %v1040 = vshrl.u32 %v1039, 7
        %v1041 = vsub.s32 0, %v1040
        %v1042 = vrot.slane %v1038, %v1041
        %v1043 = vmul.f32 %v1042, %v570
        %v1044 = vmul.f32 %v1042, %v571
        %v1045 = vmul.f32 %v1042, %v572
        %v1046 = vmul.f32 %v1042, %v573
        %v1047 = vmul.f32 %v1042, %v574
        %v1048 = vmul.f32 %v1042, %v575
        %v1049 = vmul.f32 %v1042, %v576
        %v1050 = vmul.f32 %v1042, %v577
        %v1051 = vmul.f32 %v1042, %v578
        %v1052 = vmul.f32 %v1042, %v579
        %v1053 = vmul.f32 %v1042, %v580
        %v1054 = vmul.f32 %v1042, %v581
        %v1055 = vmul.f32 %v1042, %v582
        %v1056 = vmul.f32 %v1042, %v583
        %v1057 = vmul.f32 %v1042, %v584
        %v1058 = vmul.f32 %v1042, %v585
        %v1059 = vmul.f32 %v1042, %v586
        %v1060 = vmul.f32 %v1042, %v587
        %v1061 = vmul.f32 %v1042, %v588
        %v1062 = vmul.f32 %v1042, %v589
        %v1063 = vmul.f32 %v1042, %v590
        %v1064 = vmul.f32 %v1042, %v591
        %v1065 = vmul.f32 %v1042, %v592
        %v1066 = vmul.f32 %v1042, %v593
        %v1067 = vmul.f32 %v1042, %v594
        %v1068 = vmul.f32 %v1042, %v595
        %v1069 = vmul.f32 %v1042, %v596
        %v1070 = vmul.f32 %v1042, %v597
        %v1071 = vmul.f32 %v1042, %v598
        %v1072 = vmul.f32 %v1042, %v599
        %v1073 = vmul.f32 %v1042, %v600
        %v1074 = vmul.f32 %v1042, %v601
        %v1075 = vlaneseq
        %v1076 = vshrl.u32 %v1075, 7
        %v1077 = vsub.s32 1, %v1076
        %v1078 = vrot.slane %v1038, %v1077
        %v1079 = vmul.f32 %v1078, %v986
        %v1080 = vmul.f32 %v1078, %v987
        %v1081 = vmul.f32 %v1078, %v988
        %v1082 = vmul.f32 %v1078, %v989
        %v1083 = vmul.f32 %v1078, %v990
        %v1084 = vmul.f32 %v1078, %v991
        %v1085 = vmul.f32 %v1078, %v992
        %v1086 = vmul.f32 %v1078, %v993
        %v1087 = vmul.f32 %v1078, %v994
        %v1088 = vmul.f32 %v1078, %v995
        %v1089 = vmul.f32 %v1078, %v996
        %v1090 = vmul.f32 %v1078, %v997
        %v1091 = vmul.f32 %v1078, %v998
        %v1092 = vmul.f32 %v1078, %v999
        %v1093 = vmul.f32 %v1078, %v1000
        %v1094 = vmul.f32 %v1078, %v1001
        %v1095 = vmul.f32 %v1078, %v1002
        %v1096 = vmul.f32 %v1078, %v1003
        %v1097 = vmul.f32 %v1078, %v1004
        %v1098 = vmul.f32 %v1078, %v1005
        %v1099 = vmul.f32 %v1078, %v1006
        %v1100 = vmul.f32 %v1078, %v1007
        %v1101 = vmul.f32 %v1078, %v1008
        %v1102 = vmul.f32 %v1078, %v1009
        %v1103 = vmul.f32 %v1078, %v1010
        %v1104 = vmul.f32 %v1078, %v1011
        %v1105 = vmul.f32 %v1078, %v1012
        %v1106 = vmul.f32 %v1078, %v1013
        %v1107 = vmul.f32 %v1078, %v1014
        %v1108 = vmul.f32 %v1078, %v1015
        %v1109 = vmul.f32 %v1078, %v1016
        %v1110 = vmul.f32 %v1078, %v1017
        %v1111 = vadd.f32 %v1043, %v1079
        %v1112 = vadd.f32 %v1044, %v1080
        %v1113 = vadd.f32 %v1045, %v1081
        %v1114 = vadd.f32 %v1046, %v1082
        %v1115 = vadd.f32 %v1047, %v1083
        %v1116 = vadd.f32 %v1048, %v1084
        %v1117 = vadd.f32 %v1049, %v1085
        %v1118 = vadd.f32 %v1050, %v1086
        %v1119 = vadd.f32 %v1051, %v1087
        %v1120 = vadd.f32 %v1052, %v1088
        %v1121 = vadd.f32 %v1053, %v1089
        %v1122 = vadd.f32 %v1054, %v1090
        %v1123 = vadd.f32 %v1055, %v1091
        %v1124 = vadd.f32 %v1056, %v1092
        %v1125 = vadd.f32 %v1057, %v1093
        %v1126 = vadd.f32 %v1058, %v1094
        %v1127 = vadd.f32 %v1059, %v1095
        %v1128 = vadd.f32 %v1060, %v1096
        %v1129 = vadd.f32 %v1061, %v1097
        %v1130 = vadd.f32 %v1062, %v1098
        %v1131 = vadd.f32 %v1063, %v1099
        %v1132 = vadd.f32 %v1064, %v1100
        %v1133 = vadd.f32 %v1065, %v1101
        %v1134 = vadd.f32 %v1066, %v1102
        %v1135 = vadd.f32 %v1067, %v1103
        %v1136 = vadd.f32 %v1068, %v1104
        %v1137 = vadd.f32 %v1069, %v1105
        %v1138 = vadd.f32 %v1070, %v1106
        %v1139 = vadd.f32 %v1071, %v1107
        %v1140 = vadd.f32 %v1072, %v1108
        %v1141 = vadd.f32 %v1073, %v1109
        %v1142 = vadd.f32 %v1074, %v1110
        %v1143 = vlaneseq
        %v1144 = vshrl.u32 %v1143, 7
        %v1145 = vsub.s32 2, %v1144
        %v1146 = vrot.slane %v1038, %v1145
        %1147 = vrot.lane.b32.xlu0 %v245, 64
        %v1148 = vpop.permute.xlu0 %1147
        %1149 = vrot.lane.b32.xlu0 %v246, 64
        %v1150 = vpop.permute.xlu0 %1149
        %1151 = vrot.lane.b32.xlu0 %v247, 64
        %v1152 = vpop.permute.xlu0 %1151
        %1153 = vrot.lane.b32.xlu0 %v248, 64
        %v1154 = vpop.permute.xlu0 %1153
        %1155 = vrot.lane.b32.xlu0 %v249, 64
        %v1156 = vpop.permute.xlu0 %1155
        %1157 = vrot.lane.b32.xlu0 %v250, 64
        %v1158 = vpop.permute.xlu0 %1157
        %1159 = vrot.lane.b32.xlu0 %v251, 64
        %v1160 = vpop.permute.xlu0 %1159
        %1161 = vrot.lane.b32.xlu0 %v252, 64
        %v1162 = vpop.permute.xlu0 %1161
        %1163 = vrot.lane.b32.xlu0 %v253, 64
        %v1164 = vpop.permute.xlu0 %1163
        %1165 = vrot.lane.b32.xlu0 %v254, 64
        %v1166 = vpop.permute.xlu0 %1165
        %1167 = vrot.lane.b32.xlu0 %v255, 64
        %v1168 = vpop.permute.xlu0 %1167
        %1169 = vrot.lane.b32.xlu0 %v256, 64
        %v1170 = vpop.permute.xlu0 %1169
        %1171 = vrot.lane.b32.xlu0 %v257, 64
        %v1172 = vpop.permute.xlu0 %1171
        %1173 = vrot.lane.b32.xlu0 %v258, 64
        %v1174 = vpop.permute.xlu0 %1173
        %1175 = vrot.lane.b32.xlu0 %v259, 64
        %v1176 = vpop.permute.xlu0 %1175
        %1177 = vrot.lane.b32.xlu0 %v260, 64
        %v1178 = vpop.permute.xlu0 %1177
        %1179 = vrot.lane.b32.xlu0 %v261, 64
        %v1180 = vpop.permute.xlu0 %1179
        %1181 = vrot.lane.b32.xlu0 %v262, 64
        %v1182 = vpop.permute.xlu0 %1181
        %1183 = vrot.lane.b32.xlu0 %v263, 64
        %v1184 = vpop.permute.xlu0 %1183
        %1185 = vrot.lane.b32.xlu0 %v264, 64
        %v1186 = vpop.permute.xlu0 %1185
        %1187 = vrot.lane.b32.xlu0 %v265, 64
        %v1188 = vpop.permute.xlu0 %1187
        %1189 = vrot.lane.b32.xlu0 %v266, 64
        %v1190 = vpop.permute.xlu0 %1189
        %1191 = vrot.lane.b32.xlu0 %v267, 64
        %v1192 = vpop.permute.xlu0 %1191
        %1193 = vrot.lane.b32.xlu0 %v268, 64
        %v1194 = vpop.permute.xlu0 %1193
        %1195 = vrot.lane.b32.xlu0 %v269, 64
        %v1196 = vpop.permute.xlu0 %1195
        %1197 = vrot.lane.b32.xlu0 %v270, 64
        %v1198 = vpop.permute.xlu0 %1197
        %1199 = vrot.lane.b32.xlu0 %v271, 64
        %v1200 = vpop.permute.xlu0 %1199
        %1201 = vrot.lane.b32.xlu0 %v272, 64
        %v1202 = vpop.permute.xlu0 %1201
        %1203 = vrot.lane.b32.xlu0 %v273, 64
        %v1204 = vpop.permute.xlu0 %1203
        %1205 = vrot.lane.b32.xlu0 %v274, 64
        %v1206 = vpop.permute.xlu0 %1205
        %1207 = vrot.lane.b32.xlu0 %v275, 64
        %v1208 = vpop.permute.xlu0 %1207
        %1209 = vrot.lane.b32.xlu0 %v276, 64
        %v1210 = vpop.permute.xlu0 %1209
        %v1243 = vmul.f32 %v1146, %v1148
        %v1244 = vmul.f32 %v1146, %v1150
        %v1245 = vmul.f32 %v1146, %v1152
        %v1246 = vmul.f32 %v1146, %v1154
        %v1247 = vmul.f32 %v1146, %v1156
        %v1248 = vmul.f32 %v1146, %v1158
        %v1249 = vmul.f32 %v1146, %v1160
        %v1250 = vmul.f32 %v1146, %v1162
        %v1251 = vmul.f32 %v1146, %v1164
        %v1252 = vmul.f32 %v1146, %v1166
        %v1253 = vmul.f32 %v1146, %v1168
        %v1254 = vmul.f32 %v1146, %v1170
        %v1255 = vmul.f32 %v1146, %v1172
        %v1256 = vmul.f32 %v1146, %v1174
        %v1257 = vmul.f32 %v1146, %v1176
        %v1258 = vmul.f32 %v1146, %v1178
        %v1259 = vmul.f32 %v1146, %v1180
        %v1260 = vmul.f32 %v1146, %v1182
        %v1261 = vmul.f32 %v1146, %v1184
        %v1262 = vmul.f32 %v1146, %v1186
        %v1263 = vmul.f32 %v1146, %v1188
        %v1264 = vmul.f32 %v1146, %v1190
        %v1265 = vmul.f32 %v1146, %v1192
        %v1266 = vmul.f32 %v1146, %v1194
        %v1267 = vmul.f32 %v1146, %v1196
        %v1268 = vmul.f32 %v1146, %v1198
        %v1269 = vmul.f32 %v1146, %v1200
        %v1270 = vmul.f32 %v1146, %v1202
        %v1271 = vmul.f32 %v1146, %v1204
        %v1272 = vmul.f32 %v1146, %v1206
        %v1273 = vmul.f32 %v1146, %v1208
        %v1274 = vmul.f32 %v1146, %v1210
        %v1275 = vadd.f32 %v1111, %v1243
        %v1276 = vadd.f32 %v1112, %v1244
        %v1277 = vadd.f32 %v1113, %v1245
        %v1278 = vadd.f32 %v1114, %v1246
        %v1279 = vadd.f32 %v1115, %v1247
        %v1280 = vadd.f32 %v1116, %v1248
        %v1281 = vadd.f32 %v1117, %v1249
        %v1282 = vadd.f32 %v1118, %v1250
        %v1283 = vadd.f32 %v1119, %v1251
        %v1284 = vadd.f32 %v1120, %v1252
        %v1285 = vadd.f32 %v1121, %v1253
        %v1286 = vadd.f32 %v1122, %v1254
        %v1287 = vadd.f32 %v1123, %v1255
        %v1288 = vadd.f32 %v1124, %v1256
        %v1289 = vadd.f32 %v1125, %v1257
        %v1290 = vadd.f32 %v1126, %v1258
        %v1291 = vadd.f32 %v1127, %v1259
        %v1292 = vadd.f32 %v1128, %v1260
        %v1293 = vadd.f32 %v1129, %v1261
        %v1294 = vadd.f32 %v1130, %v1262
        %v1295 = vadd.f32 %v1131, %v1263
        %v1296 = vadd.f32 %v1132, %v1264
        %v1297 = vadd.f32 %v1133, %v1265
        %v1298 = vadd.f32 %v1134, %v1266
        %v1299 = vadd.f32 %v1135, %v1267
        %v1300 = vadd.f32 %v1136, %v1268
        %v1301 = vadd.f32 %v1137, %v1269
        %v1302 = vadd.f32 %v1138, %v1270
        %v1303 = vadd.f32 %v1139, %v1271
        %v1304 = vadd.f32 %v1140, %v1272
        %v1305 = vadd.f32 %v1141, %v1273
        %v1306 = vadd.f32 %v1142, %v1274
        %v1307 = vld [vmem:[%s2] sm:$0xff]
        %v1308 = vld [vmem:[%s2 + $0x8] sm:$0xff]
        %v1309 = vld [vmem:[%s2 + $0x10] sm:$0xff]
        %v1310 = vld [vmem:[%s2 + $0x18] sm:$0xff]
        %v1311 = vld [vmem:[%s3] sm:$0x1]
        %v1313 = vlaneseq
        %v1314 = vshrl.u32 %v1313, 7
        %v1315 = vsub.s32 0, %v1314
        %v1316 = vrot.slane %v1311, %v1315
        %vm1318 = vcmask 261120
        %v1320 = vsel %vm1318, %v1275, 0
        %v1323 = vsel %vm1318, %v1276, 0
        %v1326 = vsel %vm1318, %v1277, 0
        %v1329 = vsel %vm1318, %v1278, 0
        %v1332 = vsel %vm1318, %v1279, 0
        %v1335 = vsel %vm1318, %v1280, 0
        %v1338 = vsel %vm1318, %v1281, 0
        %v1341 = vsel %vm1318, %v1282, 0
        %v1344 = vsel %vm1318, %v1283, 0
        %v1347 = vsel %vm1318, %v1284, 0
        %v1350 = vsel %vm1318, %v1285, 0
        %v1353 = vsel %vm1318, %v1286, 0
        %v1356 = vsel %vm1318, %v1287, 0
        %v1359 = vsel %vm1318, %v1288, 0
        %v1362 = vsel %vm1318, %v1289, 0
        %v1365 = vsel %vm1318, %v1290, 0
        %v1368 = vsel %vm1318, %v1291, 0
        %v1371 = vsel %vm1318, %v1292, 0
        %v1374 = vsel %vm1318, %v1293, 0
        %v1377 = vsel %vm1318, %v1294, 0
        %v1380 = vsel %vm1318, %v1295, 0
        %v1383 = vsel %vm1318, %v1296, 0
        %v1386 = vsel %vm1318, %v1297, 0
        %v1389 = vsel %vm1318, %v1298, 0
        %v1392 = vsel %vm1318, %v1299, 0
        %v1395 = vsel %vm1318, %v1300, 0
        %v1398 = vsel %vm1318, %v1301, 0
        %v1401 = vsel %vm1318, %v1302, 0
        %v1404 = vsel %vm1318, %v1303, 0
        %v1407 = vsel %vm1318, %v1304, 0
        %v1410 = vsel %vm1318, %v1305, 0
        %v1413 = vsel %vm1318, %v1306, 0
        %1415 = vmatprep.subr.mxu0 0.0
        %1416 = vmatpush1.msra.mxu0 0.0
        %1417 = vmatprep.subr.mxu0 0.0
        %1418 = vmatpush1.msra.mxu0 0.0
        %1419 = vmatprep.subr.mxu0 0.0
        %1420 = vmatpush1.msra.mxu0 0.0
        %1421 = vmatprep.subr.mxu0 0.0
        %1422 = vmatpush1.msra.mxu0 0.0
        %1423 = vmatprep.subr.mxu0 0.0
        %1424 = vmatpush1.msra.mxu0 0.0
        %1425 = vmatprep.subr.mxu0 0.0
        %1426 = vmatpush1.msra.mxu0 0.0
        %1427 = vmatprep.subr.mxu0 0.0
        %1428 = vmatpush1.msra.mxu0 0.0
        %1429 = vmatprep.subr.mxu0 0.0
        %1430 = vmatpush1.msra.mxu0 0.0
        %1431 = vmatprep.subr.mxu0 0.0
        %1432 = vmatpush1.msra.mxu0 0.0
        %1433 = vmatprep.subr.mxu0 0.0
        %1434 = vmatpush1.msra.mxu0 0.0
        %1435 = vmatprep.subr.mxu0 0.0
        %1436 = vmatpush1.msra.mxu0 0.0
        %1437 = vmatprep.subr.mxu0 0.0
        %1438 = vmatpush1.msra.mxu0 0.0
        %1439 = vmatprep.subr.mxu0 0.0
        %1440 = vmatpush1.msra.mxu0 %v1310
        %1441 = vmatprep.subr.mxu0 0.0
        %1442 = vmatpush1.msra.mxu0 %v1309
        %1443 = vmatprep.subr.mxu0 0.0
        %1444 = vmatpush1.msra.mxu0 %v1308
        %1445 = vmatprep.subr.mxu0 0.0
        %1446 = vmatpush1.msra.mxu0 %v1307
        %1447 = vmatprep.subr.mxu0 0.0
        %1448 = vmatpush2.msra.mxu0 0.0
        %1449 = vmatprep.subr.mxu0 0.0
        %1450 = vmatpush2.msra.mxu0 0.0
        %1451 = vmatprep.subr.mxu0 0.0
        %1452 = vmatpush2.msra.mxu0 0.0
        %1453 = vmatprep.subr.mxu0 0.0
        %1454 = vmatpush2.msra.mxu0 0.0
        %1455 = vmatprep.subr.mxu0 0.0
        %1456 = vmatpush2.msra.mxu0 0.0
        %1457 = vmatprep.subr.mxu0 0.0
        %1458 = vmatpush2.msra.mxu0 0.0
        %1459 = vmatprep.subr.mxu0 0.0
        %1460 = vmatpush2.msra.mxu0 0.0
        %1461 = vmatprep.subr.mxu0 0.0
        %1462 = vmatpush2.msra.mxu0 0.0
        %1463 = vmatprep.subr.mxu0 0.0
        %1464 = vmatpush2.msra.mxu0 0.0
        %1465 = vmatprep.subr.mxu0 0.0
        %1466 = vmatpush2.msra.mxu0 0.0
        %1467 = vmatprep.subr.mxu0 0.0
        %1468 = vmatpush2.msra.mxu0 0.0
        %1469 = vmatprep.subr.mxu0 0.0
        %1470 = vmatpush2.msra.mxu0 0.0
        %1471 = vmatprep.subr.mxu0 0.0
        %1472 = vmatpush2.msra.mxu0 0.0
        %1473 = vmatprep.subr.mxu0 0.0
        %1474 = vmatpush2.msra.mxu0 0.0
        %1475 = vmatprep.subr.mxu0 0.0
        %1476 = vmatpush2.msra.mxu0 0.0
        %1477 = vmatprep.subr.mxu0 0.0
        %1478 = vmatpush2.msra.mxu0 0.0
        %1479 = vmatprep.mubr.f32.mxu0 0.0
        %1480 = vmatmul.mubr.f32.gmra.mxu0 %v1320
        %v1481 = vpop.f32.mrf.mxu0
        %v1482 = vadd.f32 %v1316, %v1481
        %v1483 = vpop.f32.mrf.mxu0
        %1484 = vmatprep.mubr.f32.mxu0 0.0
        %1485 = vmatmul.mubr.f32.gmra.mxu0 %v1323
        %v1486 = vpop.f32.mrf.mxu0
        %v1487 = vadd.f32 %v1316, %v1486
        %v1488 = vpop.f32.mrf.mxu0
        %1489 = vmatprep.mubr.f32.mxu0 0.0
        %1490 = vmatmul.mubr.f32.gmra.mxu0 %v1326
        %v1491 = vpop.f32.mrf.mxu0
        %v1492 = vadd.f32 %v1316, %v1491
        %v1493 = vpop.f32.mrf.mxu0
        %1494 = vmatprep.mubr.f32.mxu0 0.0
        %1495 = vmatmul.mubr.f32.gmra.mxu0 %v1329
        %v1496 = vpop.f32.mrf.mxu0
        %v1497 = vadd.f32 %v1316, %v1496
        %v1498 = vpop.f32.mrf.mxu0
        %1499 = vmatprep.mubr.f32.mxu0 0.0
        %1500 = vmatmul.mubr.f32.gmra.mxu0 %v1332
        %v1501 = vpop.f32.mrf.mxu0
        %v1502 = vadd.f32 %v1316, %v1501
        %v1503 = vpop.f32.mrf.mxu0
        %1504 = vmatprep.mubr.f32.mxu0 0.0
        %1505 = vmatmul.mubr.f32.gmra.mxu0 %v1335
        %v1506 = vpop.f32.mrf.mxu0
        %v1507 = vadd.f32 %v1316, %v1506
        %v1508 = vpop.f32.mrf.mxu0
        %1509 = vmatprep.mubr.f32.mxu0 0.0
        %1510 = vmatmul.mubr.f32.gmra.mxu0 %v1338
        %v1511 = vpop.f32.mrf.mxu0
        %v1512 = vadd.f32 %v1316, %v1511
        %v1513 = vpop.f32.mrf.mxu0
        %1514 = vmatprep.mubr.f32.mxu0 0.0
        %1515 = vmatmul.mubr.f32.gmra.mxu0 %v1341
        %v1516 = vpop.f32.mrf.mxu0
        %v1517 = vadd.f32 %v1316, %v1516
        %v1518 = vpop.f32.mrf.mxu0
        %1519 = vmatprep.mubr.f32.mxu0 0.0
        %1520 = vmatmul.mubr.f32.gmra.mxu0 %v1344
        %v1521 = vpop.f32.mrf.mxu0
        %v1522 = vadd.f32 %v1316, %v1521
        %v1523 = vpop.f32.mrf.mxu0
        %1524 = vmatprep.mubr.f32.mxu0 0.0
        %1525 = vmatmul.mubr.f32.gmra.mxu0 %v1347
        %v1526 = vpop.f32.mrf.mxu0
        %v1527 = vadd.f32 %v1316, %v1526
        %v1528 = vpop.f32.mrf.mxu0
        %1529 = vmatprep.mubr.f32.mxu0 0.0
        %1530 = vmatmul.mubr.f32.gmra.mxu0 %v1350
        %v1531 = vpop.f32.mrf.mxu0
        %v1532 = vadd.f32 %v1316, %v1531
        %v1533 = vpop.f32.mrf.mxu0
        %1534 = vmatprep.mubr.f32.mxu0 0.0
        %1535 = vmatmul.mubr.f32.gmra.mxu0 %v1353
        %v1536 = vpop.f32.mrf.mxu0
        %v1537 = vadd.f32 %v1316, %v1536
        %v1538 = vpop.f32.mrf.mxu0
        %1539 = vmatprep.mubr.f32.mxu0 0.0
        %1540 = vmatmul.mubr.f32.gmra.mxu0 %v1356
        %v1541 = vpop.f32.mrf.mxu0
        %v1542 = vadd.f32 %v1316, %v1541
        %v1543 = vpop.f32.mrf.mxu0
        %1544 = vmatprep.mubr.f32.mxu0 0.0
        %1545 = vmatmul.mubr.f32.gmra.mxu0 %v1359
        %v1546 = vpop.f32.mrf.mxu0
        %v1547 = vadd.f32 %v1316, %v1546
        %v1548 = vpop.f32.mrf.mxu0
        %1549 = vmatprep.mubr.f32.mxu0 0.0
        %1550 = vmatmul.mubr.f32.gmra.mxu0 %v1362
        %v1551 = vpop.f32.mrf.mxu0
        %v1552 = vadd.f32 %v1316, %v1551
        %v1553 = vpop.f32.mrf.mxu0
        %1554 = vmatprep.mubr.f32.mxu0 0.0
        %1555 = vmatmul.mubr.f32.gmra.mxu0 %v1365
        %v1556 = vpop.f32.mrf.mxu0
        %v1557 = vadd.f32 %v1316, %v1556
        %v1558 = vpop.f32.mrf.mxu0
        %1559 = vmatprep.mubr.f32.mxu0 0.0
        %1560 = vmatmul.mubr.f32.gmra.mxu0 %v1368
        %v1561 = vpop.f32.mrf.mxu0
        %v1562 = vadd.f32 %v1316, %v1561
        %v1563 = vpop.f32.mrf.mxu0
        %1564 = vmatprep.mubr.f32.mxu0 0.0
        %1565 = vmatmul.mubr.f32.gmra.mxu0 %v1371
        %v1566 = vpop.f32.mrf.mxu0
        %v1567 = vadd.f32 %v1316, %v1566
        %v1568 = vpop.f32.mrf.mxu0
        %1569 = vmatprep.mubr.f32.mxu0 0.0
        %1570 = vmatmul.mubr.f32.gmra.mxu0 %v1374
        %v1571 = vpop.f32.mrf.mxu0
        %v1572 = vadd.f32 %v1316, %v1571
        %v1573 = vpop.f32.mrf.mxu0
        %1574 = vmatprep.mubr.f32.mxu0 0.0
        %1575 = vmatmul.mubr.f32.gmra.mxu0 %v1377
        %v1576 = vpop.f32.mrf.mxu0
        %v1577 = vadd.f32 %v1316, %v1576
        %v1578 = vpop.f32.mrf.mxu0
        %1579 = vmatprep.mubr.f32.mxu0 0.0
        %1580 = vmatmul.mubr.f32.gmra.mxu0 %v1380
        %v1581 = vpop.f32.mrf.mxu0
        %v1582 = vadd.f32 %v1316, %v1581
        %v1583 = vpop.f32.mrf.mxu0
        %1584 = vmatprep.mubr.f32.mxu0 0.0
        %1585 = vmatmul.mubr.f32.gmra.mxu0 %v1383
        %v1586 = vpop.f32.mrf.mxu0
        %v1587 = vadd.f32 %v1316, %v1586
        %v1588 = vpop.f32.mrf.mxu0
        %1589 = vmatprep.mubr.f32.mxu0 0.0
        %1590 = vmatmul.mubr.f32.gmra.mxu0 %v1386
        %v1591 = vpop.f32.mrf.mxu0
        %v1592 = vadd.f32 %v1316, %v1591
        %v1593 = vpop.f32.mrf.mxu0
        %1594 = vmatprep.mubr.f32.mxu0 0.0
        %1595 = vmatmul.mubr.f32.gmra.mxu0 %v1389
        %v1596 = vpop.f32.mrf.mxu0
        %v1597 = vadd.f32 %v1316, %v1596
        %v1598 = vpop.f32.mrf.mxu0
        %1599 = vmatprep.mubr.f32.mxu0 0.0
        %1600 = vmatmul.mubr.f32.gmra.mxu0 %v1392
        %v1601 = vpop.f32.mrf.mxu0
        %v1602 = vadd.f32 %v1316, %v1601
        %v1603 = vpop.f32.mrf.mxu0
        %1604 = vmatprep.mubr.f32.mxu0 0.0
        %1605 = vmatmul.mubr.f32.gmra.mxu0 %v1395
        %v1606 = vpop.f32.mrf.mxu0
        %v1607 = vadd.f32 %v1316, %v1606
        %v1608 = vpop.f32.mrf.mxu0
        %1609 = vmatprep.mubr.f32.mxu0 0.0
        %1610 = vmatmul.mubr.f32.gmra.mxu0 %v1398
        %v1611 = vpop.f32.mrf.mxu0
        %v1612 = vadd.f32 %v1316, %v1611
        %v1613 = vpop.f32.mrf.mxu0
        %1614 = vmatprep.mubr.f32.mxu0 0.0
        %1615 = vmatmul.mubr.f32.gmra.mxu0 %v1401
        %v1616 = vpop.f32.mrf.mxu0
        %v1617 = vadd.f32 %v1316, %v1616
        %v1618 = vpop.f32.mrf.mxu0
        %1619 = vmatprep.mubr.f32.mxu0 0.0
        %1620 = vmatmul.mubr.f32.gmra.mxu0 %v1404
        %v1621 = vpop.f32.mrf.mxu0
        %v1622 = vadd.f32 %v1316, %v1621
        %v1623 = vpop.f32.mrf.mxu0
        %1624 = vmatprep.mubr.f32.mxu0 0.0
        %1625 = vmatmul.mubr.f32.gmra.mxu0 %v1407
        %v1626 = vpop.f32.mrf.mxu0
        %v1627 = vadd.f32 %v1316, %v1626
        %v1628 = vpop.f32.mrf.mxu0
        %1629 = vmatprep.mubr.f32.mxu0 0.0
        %1630 = vmatmul.mubr.f32.gmra.mxu0 %v1410
        %v1631 = vpop.f32.mrf.mxu0
        %v1632 = vadd.f32 %v1316, %v1631
        %v1633 = vpop.f32.mrf.mxu0
        %1634 = vmatprep.mubr.f32.mxu0 0.0
        %1635 = vmatmul.mubr.f32.gmra.mxu0 %v1413
        %v1636 = vpop.f32.mrf.mxu0
        %v1637 = vadd.f32 %v1316, %v1636
        %v1638 = vpop.f32.mrf.mxu0
        %1639 = vdwg.mxu0
        %1640 = vst.msk [vmem:[%s203] sm:$0xff] %vm1318, %v1482
        %1641 = vst.msk [vmem:[%s203 + $0x8] sm:$0xff] %vm1318, %v1487
        %1642 = vst.msk [vmem:[%s203 + $0x10] sm:$0xff] %vm1318, %v1492
        %1643 = vst.msk [vmem:[%s203 + $0x18] sm:$0xff] %vm1318, %v1497
        %1644 = vst.msk [vmem:[%s203 + $0x20] sm:$0xff] %vm1318, %v1502
        %1645 = vst.msk [vmem:[%s203 + $0x28] sm:$0xff] %vm1318, %v1507
        %1646 = vst.msk [vmem:[%s203 + $0x30] sm:$0xff] %vm1318, %v1512
        %1647 = vst.msk [vmem:[%s203 + $0x38] sm:$0xff] %vm1318, %v1517
        %1648 = vst.msk [vmem:[%s203 + $0x40] sm:$0xff] %vm1318, %v1522
        %1649 = vst.msk [vmem:[%s203 + $0x48] sm:$0xff] %vm1318, %v1527
        %1650 = vst.msk [vmem:[%s203 + $0x50] sm:$0xff] %vm1318, %v1532
        %1651 = vst.msk [vmem:[%s203 + $0x58] sm:$0xff] %vm1318, %v1537
        %1652 = vst.msk [vmem:[%s203 + $0x60] sm:$0xff] %vm1318, %v1542
        %1653 = vst.msk [vmem:[%s203 + $0x68] sm:$0xff] %vm1318, %v1547
        %1654 = vst.msk [vmem:[%s203 + $0x70] sm:$0xff] %vm1318, %v1552
        %1655 = vst.msk [vmem:[%s203 + $0x78] sm:$0xff] %vm1318, %v1557
        %1656 = vst.msk [vmem:[%s203 + $0x80] sm:$0xff] %vm1318, %v1562
        %1657 = vst.msk [vmem:[%s203 + $0x88] sm:$0xff] %vm1318, %v1567
        %1658 = vst.msk [vmem:[%s203 + $0x90] sm:$0xff] %vm1318, %v1572
        %1659 = vst.msk [vmem:[%s203 + $0x98] sm:$0xff] %vm1318, %v1577
        %1660 = vst.msk [vmem:[%s203 + $0xa0] sm:$0xff] %vm1318, %v1582
        %1661 = vst.msk [vmem:[%s203 + $0xa8] sm:$0xff] %vm1318, %v1587
        %1662 = vst.msk [vmem:[%s203 + $0xb0] sm:$0xff] %vm1318, %v1592
        %1663 = vst.msk [vmem:[%s203 + $0xb8] sm:$0xff] %vm1318, %v1597
        %1664 = vst.msk [vmem:[%s203 + $0xc0] sm:$0xff] %vm1318, %v1602
        %1665 = vst.msk [vmem:[%s203 + $0xc8] sm:$0xff] %vm1318, %v1607
        %1666 = vst.msk [vmem:[%s203 + $0xd0] sm:$0xff] %vm1318, %v1612
        %1667 = vst.msk [vmem:[%s203 + $0xd8] sm:$0xff] %vm1318, %v1617
        %1668 = vst.msk [vmem:[%s203 + $0xe0] sm:$0xff] %vm1318, %v1622
        %1669 = vst.msk [vmem:[%s203 + $0xe8] sm:$0xff] %vm1318, %v1627
        %1670 = vst.msk [vmem:[%s203 + $0xf0] sm:$0xff] %vm1318, %v1632
        %1671 = vst.msk [vmem:[%s203 + $0xf8] sm:$0xff] %vm1318, %v1637
        %s1672 = sand.u32 %s120, 1
        %s1673 = scalar_lea.sflag [#allocation3], %s1672
        %s1674 = sand.u32 %s120, 1
        %s1675 = smul.addr %s1674, 256
        %s1676 = scalar_lea.vmem [#allocation2], %s1675
        // Predicated region
        $region37: #{s2_attention_forward.3} parent=35 // pred_check
          %p1677 = pneg %p130
        $region38: #{s2_attention_forward.3} parent=35 // pred_check_branch
          %1679 = sbr.rel (%p1677) target = $region40
        $region39: #{s2_attention_forward.3} parent=35 // pred_region
          %s1681 = ssub.s32 4096, 4096
          %1682 = vsyncadd %s1673, %s1681
          %s1683 = smul.addr %s18, 32
          %s1684 = smul.addr %s1683, 128
          %s1685 = scalar_lea.hbm %s4, %s1684
          %s1686 = sshll.u32 %s1676, 4
          %s1687 = int_to_ptr.vmem [resolvable:$true] %s1686
          %1692 = dma.vmem_to_hbm [thread:$0]  %s1687, 4096, %s1685, %s1673, 128, 128, 8
        $region40: #{s2_attention_forward.3} parent=35 // pred_fallthru
          _
      $region36: #{s2_attention_forward.3} parent=5 // pred_fallthru
        _
      %p1693 = scmp.le.s32.totalorder 2, %s13
      // Predicated region
      $region41: #{s2_attention_forward.3} parent=5 // pred_check
        %p1694 = pneg %p1693
      $region42: #{s2_attention_forward.3} parent=5 // pred_check_branch
        %1696 = sbr.rel (%p1694) target = $region44
      $region43: #{s2_attention_forward.3} parent=5 // pred_region
        %s1697 = ssub.s32 %s13, 2
        // Predicated region
        $region45: #{s2_attention_forward.3} parent=43 // pred_check
          %p1698 = pneg %p136
        $region46: #{s2_attention_forward.3} parent=43 // pred_check_branch
          %1700 = sbr.rel (%p1698) target = $region48
        $region47: #{s2_attention_forward.3} parent=43 // pred_region
          %s1701 = sand.u32 %s121, 1
          %s1702 = scalar_lea.sflag [#allocation3], %s1701
          %s1703 = sand.u32 %s121, 1
          %s1704 = smul.addr %s1703, 256
          %s1705 = scalar_lea.vmem [#allocation2], %s1704
          %1706 = dma.done %s1702, 4096
        $region48: #{s2_attention_forward.3} parent=43 // pred_fallthru
          _
      $region44: #{s2_attention_forward.3} parent=5 // pred_fallthru
        _
    $region6: #{s2_attention_forward.3} parent=1 // loop_footer
      %s17 = sadd.s32 1, %s13
    $region7: #{s2_attention_forward.3} parent=1 // loop_footer_branch
      %12 = sbr.rel target = $region3
    $region8: #{s2_attention_forward.3} parent=1 // loop_exit
      _
    %1707 = vsyncpa [#allocation3], 1
    %s1708 = scalar_lea.sflag [#allocation3], 1
    %1709 = vsyncpa %s1708, 1

</llo_original>
